<compile_context>
chip_gen: v6e
topology: v6e:2x2x1
jax: 0.10.0
libtpu: 0.0.40
codegen_flags: <defaults>
</compile_context>

<pallas_src>
import jax
import jax.numpy as jnp
from jax import lax
from jax.experimental import pallas as pl
from jax.experimental.pallas import tpu as pltpu
import numpy as np

LANE = 128


def _round_up(x, m):
    return (x + m - 1) // m * m


def bottleneck_kernel(x_ref, w1_ref, w2_ref, w3_ref, b1_ref, b2_ref, b3_ref,
                      o_ref, buf_ref):
    # x_ref block: (1, H, W, Cp) — one batch element per grid step, channels lane-dense.
    H, W, Cp = x_ref.shape[1], x_ref.shape[2], x_ref.shape[3]
    Pp = w1_ref.shape[1]
    Cop = w3_ref.shape[1]
    HW = H * W
    apron = (buf_ref.shape[0] - HW) // 2            # sublane-aligned interior offset (>= W+1)

    # ---- conv1 (1x1) + folded bn1 + relu : one bf16 MXU matmul, f32 accumulation ----
    xb = x_ref[0].reshape(HW, Cp).astype(jnp.bfloat16)
    t = jnp.dot(xb, w1_ref[...], preferred_element_type=jnp.float32)
    t = jnp.maximum(t + b1_ref[...], 0.0)                              # (HW, Pp) f32

    # ---- conv2 (3x3, pad=1, stride=1): flat-shifted taps + 9 accumulating MXU matmuls ----
    # Zero only the small aprons (they realize the h-boundary zero padding); the interior is
    # fully rewritten every step, so no whole-buffer zero-fill is needed.
    buf_ref[:apron, :] = jnp.zeros((apron, Pp), jnp.bfloat16)
    buf_ref[apron + HW:, :] = jnp.zeros((buf_ref.shape[0] - apron - HW, Pp), jnp.bfloat16)
    buf_ref[apron:apron + HW, :] = t.astype(jnp.bfloat16)              # aligned, bf16, once

    # Per-row column masks: remove the w == 0 / w == W-1 wrap of the flat shift.
    w_pos = lax.broadcasted_iota(jnp.int32, (H, W, 1), 1).reshape(HW, 1)
    mask_l = (w_pos != 0).astype(jnp.bfloat16)          # used by taps with dw == 0
    mask_r = (w_pos != W - 1).astype(jnp.bfloat16)      # used by taps with dw == 2

    acc = None
    for dh in range(3):
        for dw in range(3):
            start = apron + (dh - 1) * W + (dw - 1)     # static offset, always in-bounds
            tap = buf_ref[start:start + HW, :]          # (HW, Pp) bf16
            if dw == 0:
                tap = tap * mask_l
            elif dw == 2:
                tap = tap * mask_r
            k = dh * 3 + dw
            p = jnp.dot(tap, w2_ref[k * Pp:(k + 1) * Pp, :],
                        preferred_element_type=jnp.float32)
            acc = p if acc is None else acc + p
    t2 = jnp.maximum(acc + b2_ref[...], 0.0)                           # (HW, Pp) f32

    # ---- conv3 (1x1) + folded bn3, residual add (f32) + relu ----
    t3 = jnp.dot(t2.astype(jnp.bfloat16), w3_ref[...],
                 preferred_element_type=jnp.float32)
    res = x_ref[0].reshape(HW, Cp).astype(jnp.float32)                 # re-read for residual
    out = jnp.maximum(t3 + b3_ref[...] + res, 0.0)                     # (HW, Cop)
    o_ref[0] = out.reshape(H, W, Cop).astype(o_ref.dtype)


def _vmem_limit_bytes(H, W, Cp, Pp, Cop, act_itemsize, apron):
    hw = H * W
    xb = 2 * hw * Cp * act_itemsize                       # input blocks (double-buffered)
    ob = 2 * hw * Cop * act_itemsize                      # output blocks (double-buffered)
    wb = (Cp * Pp + 9 * Pp * Pp + Pp * Cop) * 2 \
        + (2 * Pp + Cop) * 4                              # constant-index weights (single-buffered)
    sb = (hw + 2 * apron) * Pp * 2                        # bf16 conv2 staging scratch
    tb = (3 * Pp + 2 * Cop) * hw * 4                      # f32 intermediates (t, acc/t2, t3/out, res)
    est = int(1.25 * (xb + ob + wb + sb + tb)) + (4 << 20)

    cap = 48 << 20                                        # safe fallback on v5e/v6e/v7x alike
    try:                                                  # prefer the real capacity minus headroom
        info = pltpu.get_tpu_info()
        for name in ("vmem_capacity_bytes", "vmem_size_bytes", "vmem_bytes"):
            v = getattr(info, name, None)
            if v:
                cap = int(v) - (16 << 20)
                break
    except Exception:
        pass
    return max(min(max(est, 32 << 20), cap), 16 << 20)


def bottleneck_forward_nhwc(x_nhwc, kp):
    """x_nhwc: (N, H, W, Cp) with channels already zero-padded to the lane width; any float
    dtype (bf16 recommended inside a network).  Output: same layout/dtype."""
    N, H, W, Cp = x_nhwc.shape
    Cp_w, Pp = kp["w1"].shape
    Cop = kp["w3"].shape[1]
    assert Cp == Cp_w
    assert Cp == Cop, "residual path requires inplanes == planes*4 (stride=1, no downsample)"

    apron = _round_up(W + 1, 16)                 # bf16 sublane-packing aligned interior offset
    vmem_limit = _vmem_limit_bytes(H, W, Cp, Pp, Cop,
                                   jnp.dtype(x_nhwc.dtype).itemsize, apron)

    return pl.pallas_call(
        bottleneck_kernel,
        out_shape=jax.ShapeDtypeStruct((N, H, W, Cop), x_nhwc.dtype),
        grid_spec=pltpu.PrefetchScalarGridSpec(
            num_scalar_prefetch=0,
            grid=(N,),
            in_specs=[
                pl.BlockSpec((1, H, W, Cp), lambda n: (n, 0, 0, 0)),   # x
                pl.BlockSpec((Cp, Pp), lambda n: (0, 0)),              # w1 (bf16, bn1 folded)
                pl.BlockSpec((9 * Pp, Pp), lambda n: (0, 0)),          # w2 (bf16, bn2 folded)
                pl.BlockSpec((Pp, Cop), lambda n: (0, 0)),             # w3 (bf16, bn3 folded)
                pl.BlockSpec((1, Pp), lambda n: (0, 0)),               # b1
                pl.BlockSpec((1, Pp), lambda n: (0, 0)),               # b2
                pl.BlockSpec((1, Cop), lambda n: (0, 0)),              # b3
            ],
            out_specs=pl.BlockSpec((1, H, W, Cop), lambda n: (n, 0, 0, 0)),
            scratch_shapes=[
                pltpu.VMEM((H * W + 2 * apron, Pp), jnp.bfloat16),     # conv2 staging buffer
            ],
        ),
        compiler_params=pltpu.CompilerParams(
            dimension_semantics=("parallel",),
            vmem_limit_bytes=vmem_limit),
    )(x_nhwc, kp["w1"], kp["w2"], kp["w3"], kp["b1"], kp["b2"], kp["b3"])


def bottleneck_forward(x_nchw, kp):
    """NCHW float32 convenience wrapper mirroring the PyTorch module.  Inside a network, keep
    activations NHWC (ideally bf16) and call bottleneck_forward_nhwc directly — each transpose
    here is an extra full HBM pass."""
    N, Cin, H, W = x_nchw.shape
    Cp = kp["w1"].shape[0]
    assert Cin <= Cp
    x_nhwc = jnp.transpose(x_nchw, (0, 2, 3, 1))
    if Cp != Cin:
        x_nhwc = jnp.pad(x_nhwc, ((0, 0), (0, 0), (0, 0), (0, Cp - Cin)))
    out_nhwc = bottleneck_forward_nhwc(x_nhwc, kp)
    out_nhwc = out_nhwc[..., :Cin]                        # drop channel padding
    return jnp.transpose(out_nhwc, (0, 3, 1, 2))          # back to NCHW


# ---------------- parameter construction & preparation ----------------

def make_params(key, inplanes, planes):
    """Synthetic PyTorch-layout parameters (OIHW conv weights, BN as scale/bias)."""
    exp = 4
    ks = jax.random.split(key, 16)
    eps = 1e-5

    def bn_fold(kg, kb, km, kv, c):
        gamma = jax.random.uniform(kg, (c,), jnp.float32, 0.5, 1.5)
        beta = 0.1 * jax.random.normal(kb, (c,), jnp.float32)
        mean = 0.1 * jax.random.normal(km, (c,), jnp.float32)
        var = jax.random.uniform(kv, (c,), jnp.float32, 0.5, 1.5)
        scale = gamma / jnp.sqrt(var + eps)
        bias = beta - mean * scale
        return scale, bias

    W1 = 0.1 * jax.random.normal(ks[0], (planes, inplanes, 1, 1), jnp.float32)
    W2 = 0.1 * jax.random.normal(ks[1], (planes, planes, 3, 3), jnp.float32)
    W3 = 0.1 * jax.random.normal(ks[2], (planes * exp, planes, 1, 1), jnp.float32)

    s1, b1 = bn_fold(ks[3], ks[4], ks[5], ks[6], planes)
    s2, b2 = bn_fold(ks[7], ks[8], ks[9], ks[10], planes)
    s3, b3 = bn_fold(ks[11], ks[12], ks[13], ks[14], planes * exp)

    return dict(W1=W1, W2=W2, W3=W3, s1=s1, b1=b1, s2=s2, b2=b2, s3=s3, b3=b3)


def _pad2d(a, rows, cols):
    return jnp.pad(a, ((0, rows - a.shape[0]), (0, cols - a.shape[1])))


def prepare_kernel_params(tp):
    """Fold BN scale into the conv weights, transpose to kernel layout, zero-pad channel dims
    to the lane width (128) and cast matmul operands to bf16 (done once, offline)."""
    W1, W2, W3 = tp["W1"], tp["W2"], tp["W3"]
    P, Cin = W1.shape[0], W1.shape[1]
    Cout = W3.shape[0]

    Cp = _round_up(Cin, LANE)
    Pp = _round_up(P, LANE)
    Cop = _round_up(Cout, LANE)

    # conv1: OIHW (P, Cin, 1, 1) -> (Cin, P), bn1 scale folded over output channels
    w1 = jnp.transpose(W1[:, :, 0, 0], (1, 0)) * tp["s1"][None, :]
    # conv2: OIHW (P, P, 3, 3) -> (kh, kw, I, O), bn2 scale folded, pad per tap, -> (9*Pp, Pp)
    w2 = jnp.transpose(W2, (2, 3, 1, 0)) * tp["s2"][None, None, None, :]
    w2 = jnp.pad(w2, ((0, 0), (0, 0), (0, Pp - P), (0, Pp - P))).reshape(9 * Pp, Pp)
    # conv3: OIHW (4P, P, 1, 1) -> (P, 4P), bn3 scale folded
    w3 = jnp.transpose(W3[:, :, 0, 0], (1, 0)) * tp["s3"][None, :]

    return dict(
        w1=_pad2d(w1, Cp, Pp).astype(jnp.bfloat16),
        w2=w2.astype(jnp.bfloat16),
        w3=_pad2d(w3, Pp, Cop).astype(jnp.bfloat16),
        b1=_pad2d(tp["b1"].reshape(1, -1), 1, Pp),
        b2=_pad2d(tp["b2"].reshape(1, -1), 1, Pp),
        b3=_pad2d(tp["b3"].reshape(1, -1), 1, Cop),
    )


def reference_forward(x, p):
    """Plain-JAX f32 NCHW reference matching the PyTorch forward (dcn=None, downsample=None)."""
    dn = ("NCHW", "OIHW", "NCHW")

    def bn(y, s, b):
        return y * s[None, :, None, None] + b[None, :, None, None]

    out = lax.conv_general_dilated(x, p["W1"], (1, 1), ((0, 0), (0, 0)), dimension_numbers=dn)
    out = jnp.maximum(bn(out, p["s1"], p["b1"]), 0.0)
    out = lax.conv_general_dilated(out, p["W2"], (1, 1), ((1, 1), (1, 1)), dimension_numbers=dn)
    out = jnp.maximum(bn(out, p["s2"], p["b2"]), 0.0)
    out = lax.conv_general_dilated(out, p["W3"], (1, 1), ((0, 0), (0, 0)), dimension_numbers=dn)
    out = bn(out, p["s3"], p["b3"])
    out = out + x                      # residual (no downsample)
    return jnp.maximum(out, 0.0)


if __name__ == "__main__":
    key = jax.random.PRNGKey(0)
    k_x, k_p = jax.random.split(key)

    N, planes = 2, 4
    inplanes = planes * 4              # residual add works without downsample
    H = W = 16

    x = jax.random.normal(k_x, (N, inplanes, H, W), jnp.float32)   # NCHW like PyTorch
    torch_params = make_params(k_p, inplanes, planes)
    kernel_params = prepare_kernel_params(torch_params)

    out = jax.block_until_ready(bottleneck_forward(x, kernel_params))
    ref = jax.block_until_ready(reference_forward(x, torch_params))

    # bf16 MXU operands (f32 accumulation / residual) -> slightly looser tolerance than pure f32
    np.testing.assert_allclose(np.asarray(out), np.asarray(ref), rtol=2e-2, atol=2e-2)

    print("KERNEL_OK")
</pallas_src>

<mosaic_0001>
module attributes {stable_mosaic.version = 11 : i64} {
  func.func @bottleneck_kernel(%arg0: i32, %arg1: memref<1x16x16x128xf32, #tpu.memory_space<vmem>>, %arg2: memref<128x128xbf16, #tpu.memory_space<vmem>>, %arg3: memref<1152x128xbf16, #tpu.memory_space<vmem>>, %arg4: memref<128x128xbf16, #tpu.memory_space<vmem>>, %arg5: memref<1x128xf32, #tpu.memory_space<vmem>>, %arg6: memref<1x128xf32, #tpu.memory_space<vmem>>, %arg7: memref<1x128xf32, #tpu.memory_space<vmem>>, %arg8: memref<1x16x16x128xf32, #tpu.memory_space<vmem>>, %arg9: memref<320x128xbf16, #tpu.memory_space<vmem>>) attributes {dimension_semantics = [#tpu.dimension_semantics<parallel>], iteration_bounds = array<i64: 2>, scalar_prefetch = 0 : i64, scratch_operands = 1 : i64, tpu.core_type = #tpu.core_type<tc>, window_params = [{transform_indices = @transform_0, window_bounds = array<i64: 1, 16, 16, 128>}, {pipeline_mode = #tpu.pipeline_mode<synchronous>, transform_indices = @transform_1, window_bounds = array<i64: 128, 128>}, {pipeline_mode = #tpu.pipeline_mode<synchronous>, transform_indices = @transform_2, window_bounds = array<i64: 1152, 128>}, {pipeline_mode = #tpu.pipeline_mode<synchronous>, transform_indices = @transform_3, window_bounds = array<i64: 128, 128>}, {pipeline_mode = #tpu.pipeline_mode<synchronous>, transform_indices = @transform_4, window_bounds = array<i64: 1, 128>}, {pipeline_mode = #tpu.pipeline_mode<synchronous>, transform_indices = @transform_5, window_bounds = array<i64: 1, 128>}, {pipeline_mode = #tpu.pipeline_mode<synchronous>, transform_indices = @transform_6, window_bounds = array<i64: 1, 128>}, {transform_indices = @transform_7, window_bounds = array<i64: 1, 16, 16, 128>}]} {
    %c0 = arith.constant 0 : index
    %c0_0 = arith.constant 0 : index
    %c0_1 = arith.constant 0 : index
    %c0_2 = arith.constant 0 : index
    %0 = vector.load %arg1[%c0, %c0_0, %c0_1, %c0_2] : memref<1x16x16x128xf32, #tpu.memory_space<vmem>>, vector<1x16x16x128xf32>
    %1 = vector.shape_cast %0 : vector<1x16x16x128xf32> to vector<16x16x128xf32>
    %2 = vector.shape_cast %1 : vector<16x16x128xf32> to vector<256x128xf32>
    %3 = arith.truncf %2 : vector<256x128xf32> to vector<256x128xbf16>
    %c0_3 = arith.constant 0 : index
    %c0_4 = arith.constant 0 : index
    %4 = vector.load %arg2[%c0_3, %c0_4] : memref<128x128xbf16, #tpu.memory_space<vmem>>, vector<128x128xbf16>
    %cst = arith.constant dense<0.000000e+00> : vector<256x128xf32>
    %5 = tpu.matmul %3, %4, %cst {dimension_numbers = #tpu.dot_dimension_numbers<[1], [0], [0], [1], [0, 0, 1, 1], [], []>} : vector<256x128xbf16>, vector<128x128xbf16>, vector<256x128xf32> -> vector<256x128xf32>
    %c0_5 = arith.constant 0 : index
    %c0_6 = arith.constant 0 : index
    %6 = vector.load %arg5[%c0_5, %c0_6] : memref<1x128xf32, #tpu.memory_space<vmem>>, vector<1x128xf32>
    %7 = vector.broadcast %6 : vector<1x128xf32> to vector<256x128xf32>
    %8 = arith.addf %5, %7 : vector<256x128xf32>
    %cst_7 = arith.constant 0.000000e+00 : f32
    %9 = vector.broadcast %cst_7 : f32 to vector<256x128xf32>
    %10 = arith.maximumf %8, %9 : vector<256x128xf32>
    %cst_8 = arith.constant 0.000000e+00 : bf16
    %11 = vector.broadcast %cst_8 : bf16 to vector<32x128xbf16>
    %c0_9 = arith.constant 0 : index
    %c0_10 = arith.constant 0 : index
    %12 = vector.load %arg9[%c0_9, %c0_10] : memref<320x128xbf16, #tpu.memory_space<vmem>>, vector<32x128xbf16>
    tpu.vector_store %arg9[%c0_9, %c0_10], %11 {strides = array<i32>} : memref<320x128xbf16, #tpu.memory_space<vmem>>, vector<32x128xbf16>,
    %cst_11 = arith.constant 0.000000e+00 : bf16
    %13 = vector.broadcast %cst_11 : bf16 to vector<32x128xbf16>
    %c288 = arith.constant 288 : index
    %c0_12 = arith.constant 0 : index
    %14 = vector.load %arg9[%c288, %c0_12] : memref<320x128xbf16, #tpu.memory_space<vmem>>, vector<32x128xbf16>
    tpu.vector_store %arg9[%c288, %c0_12], %13 {strides = array<i32>} : memref<320x128xbf16, #tpu.memory_space<vmem>>, vector<32x128xbf16>,
    %15 = arith.truncf %10 : vector<256x128xf32> to vector<256x128xbf16>
    %c32 = arith.constant 32 : index
    %c0_13 = arith.constant 0 : index
    %16 = vector.load %arg9[%c32, %c0_13] : memref<320x128xbf16, #tpu.memory_space<vmem>>, vector<256x128xbf16>
    tpu.vector_store %arg9[%c32, %c0_13], %15 {strides = array<i32>} : memref<320x128xbf16, #tpu.memory_space<vmem>>, vector<256x128xbf16>,
    %17 = tpu.iota {dimensions = array<i32: 1>} : vector<16x16x1xi32>
    %18 = vector.shape_cast %17 : vector<16x16x1xi32> to vector<256x1xi32>
    %c0_i32 = arith.constant 0 : i32
    %19 = vector.broadcast %c0_i32 : i32 to vector<256x1xi32>
    %20 = arith.cmpi ne, %18, %19 : vector<256x1xi32>
    %21 = arith.extui %20 : vector<256x1xi1> to vector<256x1xi32>
    %22 = arith.sitofp %21 : vector<256x1xi32> to vector<256x1xf32>
    %23 = arith.truncf %22 : vector<256x1xf32> to vector<256x1xbf16>
    %c15_i32 = arith.constant 15 : i32
    %24 = vector.broadcast %c15_i32 : i32 to vector<256x1xi32>
    %25 = arith.cmpi ne, %18, %24 : vector<256x1xi32>
    %26 = arith.extui %25 : vector<256x1xi1> to vector<256x1xi32>
    %27 = arith.sitofp %26 : vector<256x1xi32> to vector<256x1xf32>
    %28 = arith.truncf %27 : vector<256x1xf32> to vector<256x1xbf16>
    %c15 = arith.constant 15 : index
    %c0_14 = arith.constant 0 : index
    %29 = vector.load %arg9[%c15, %c0_14] : memref<320x128xbf16, #tpu.memory_space<vmem>>, vector<256x128xbf16>
    %30 = vector.broadcast %23 : vector<256x1xbf16> to vector<256x128xbf16>
    %31 = arith.mulf %29, %30 : vector<256x128xbf16>
    %c0_15 = arith.constant 0 : index
    %c0_16 = arith.constant 0 : index
    %32 = vector.load %arg3[%c0_15, %c0_16] : memref<1152x128xbf16, #tpu.memory_space<vmem>>, vector<128x128xbf16>
    %cst_17 = arith.constant dense<0.000000e+00> : vector<256x128xf32>
    %33 = tpu.matmul %31, %32, %cst_17 {dimension_numbers = #tpu.dot_dimension_numbers<[1], [0], [0], [1], [0, 0, 1, 1], [], []>} : vector<256x128xbf16>, vector<128x128xbf16>, vector<256x128xf32> -> vector<256x128xf32>
    %c16 = arith.constant 16 : index
    %c0_18 = arith.constant 0 : index
    %34 = vector.load %arg9[%c16, %c0_18] : memref<320x128xbf16, #tpu.memory_space<vmem>>, vector<256x128xbf16>
    %c128 = arith.constant 128 : index
    %c0_19 = arith.constant 0 : index
    %35 = vector.load %arg3[%c128, %c0_19] : memref<1152x128xbf16, #tpu.memory_space<vmem>>, vector<128x128xbf16>
    %cst_20 = arith.constant dense<0.000000e+00> : vector<256x128xf32>
    %36 = tpu.matmul %34, %35, %cst_20 {dimension_numbers = #tpu.dot_dimension_numbers<[1], [0], [0], [1], [0, 0, 1, 1], [], []>} : vector<256x128xbf16>, vector<128x128xbf16>, vector<256x128xf32> -> vector<256x128xf32>
    %37 = arith.addf %33, %36 : vector<256x128xf32>
    %c17 = arith.constant 17 : index
    %c0_21 = arith.constant 0 : index
    %38 = vector.load %arg9[%c17, %c0_21] : memref<320x128xbf16, #tpu.memory_space<vmem>>, vector<256x128xbf16>
    %39 = vector.broadcast %28 : vector<256x1xbf16> to vector<256x128xbf16>
    %40 = arith.mulf %38, %39 : vector<256x128xbf16>
    %c256 = arith.constant 256 : index
    %c0_22 = arith.constant 0 : index
    %41 = vector.load %arg3[%c256, %c0_22] : memref<1152x128xbf16, #tpu.memory_space<vmem>>, vector<128x128xbf16>
    %cst_23 = arith.constant dense<0.000000e+00> : vector<256x128xf32>
    %42 = tpu.matmul %40, %41, %cst_23 {dimension_numbers = #tpu.dot_dimension_numbers<[1], [0], [0], [1], [0, 0, 1, 1], [], []>} : vector<256x128xbf16>, vector<128x128xbf16>, vector<256x128xf32> -> vector<256x128xf32>
    %43 = arith.addf %37, %42 : vector<256x128xf32>
    %c31 = arith.constant 31 : index
    %c0_24 = arith.constant 0 : index
    %44 = vector.load %arg9[%c31, %c0_24] : memref<320x128xbf16, #tpu.memory_space<vmem>>, vector<256x128xbf16>
    %45 = vector.broadcast %23 : vector<256x1xbf16> to vector<256x128xbf16>
    %46 = arith.mulf %44, %45 : vector<256x128xbf16>
    %c384 = arith.constant 384 : index
    %c0_25 = arith.constant 0 : index
    %47 = vector.load %arg3[%c384, %c0_25] : memref<1152x128xbf16, #tpu.memory_space<vmem>>, vector<128x128xbf16>
    %cst_26 = arith.constant dense<0.000000e+00> : vector<256x128xf32>
    %48 = tpu.matmul %46, %47, %cst_26 {dimension_numbers = #tpu.dot_dimension_numbers<[1], [0], [0], [1], [0, 0, 1, 1], [], []>} : vector<256x128xbf16>, vector<128x128xbf16>, vector<256x128xf32> -> vector<256x128xf32>
    %49 = arith.addf %43, %48 : vector<256x128xf32>
    %c32_27 = arith.constant 32 : index
    %c0_28 = arith.constant 0 : index
    %50 = vector.load %arg9[%c32_27, %c0_28] : memref<320x128xbf16, #tpu.memory_space<vmem>>, vector<256x128xbf16>
    %c512 = arith.constant 512 : index
    %c0_29 = arith.constant 0 : index
    %51 = vector.load %arg3[%c512, %c0_29] : memref<1152x128xbf16, #tpu.memory_space<vmem>>, vector<128x128xbf16>
    %cst_30 = arith.constant dense<0.000000e+00> : vector<256x128xf32>
    %52 = tpu.matmul %50, %51, %cst_30 {dimension_numbers = #tpu.dot_dimension_numbers<[1], [0], [0], [1], [0, 0, 1, 1], [], []>} : vector<256x128xbf16>, vector<128x128xbf16>, vector<256x128xf32> -> vector<256x128xf32>
    %53 = arith.addf %49, %52 : vector<256x128xf32>
    %c33 = arith.constant 33 : index
    %c0_31 = arith.constant 0 : index
    %54 = vector.load %arg9[%c33, %c0_31] : memref<320x128xbf16, #tpu.memory_space<vmem>>, vector<256x128xbf16>
    %55 = vector.broadcast %28 : vector<256x1xbf16> to vector<256x128xbf16>
    %56 = arith.mulf %54, %55 : vector<256x128xbf16>
    %c640 = arith.constant 640 : index
    %c0_32 = arith.constant 0 : index
    %57 = vector.load %arg3[%c640, %c0_32] : memref<1152x128xbf16, #tpu.memory_space<vmem>>, vector<128x128xbf16>
    %cst_33 = arith.constant dense<0.000000e+00> : vector<256x128xf32>
    %58 = tpu.matmul %56, %57, %cst_33 {dimension_numbers = #tpu.dot_dimension_numbers<[1], [0], [0], [1], [0, 0, 1, 1], [], []>} : vector<256x128xbf16>, vector<128x128xbf16>, vector<256x128xf32> -> vector<256x128xf32>
    %59 = arith.addf %53, %58 : vector<256x128xf32>
    %c47 = arith.constant 47 : index
    %c0_34 = arith.constant 0 : index
    %60 = vector.load %arg9[%c47, %c0_34] : memref<320x128xbf16, #tpu.memory_space<vmem>>, vector<256x128xbf16>
    %61 = vector.broadcast %23 : vector<256x1xbf16> to vector<256x128xbf16>
    %62 = arith.mulf %60, %61 : vector<256x128xbf16>
    %c768 = arith.constant 768 : index
    %c0_35 = arith.constant 0 : index
    %63 = vector.load %arg3[%c768, %c0_35] : memref<1152x128xbf16, #tpu.memory_space<vmem>>, vector<128x128xbf16>
    %cst_36 = arith.constant dense<0.000000e+00> : vector<256x128xf32>
    %64 = tpu.matmul %62, %63, %cst_36 {dimension_numbers = #tpu.dot_dimension_numbers<[1], [0], [0], [1], [0, 0, 1, 1], [], []>} : vector<256x128xbf16>, vector<128x128xbf16>, vector<256x128xf32> -> vector<256x128xf32>
    %65 = arith.addf %59, %64 : vector<256x128xf32>
    %c48 = arith.constant 48 : index
    %c0_37 = arith.constant 0 : index
    %66 = vector.load %arg9[%c48, %c0_37] : memref<320x128xbf16, #tpu.memory_space<vmem>>, vector<256x128xbf16>
    %c896 = arith.constant 896 : index
    %c0_38 = arith.constant 0 : index
    %67 = vector.load %arg3[%c896, %c0_38] : memref<1152x128xbf16, #tpu.memory_space<vmem>>, vector<128x128xbf16>
    %cst_39 = arith.constant dense<0.000000e+00> : vector<256x128xf32>
    %68 = tpu.matmul %66, %67, %cst_39 {dimension_numbers = #tpu.dot_dimension_numbers<[1], [0], [0], [1], [0, 0, 1, 1], [], []>} : vector<256x128xbf16>, vector<128x128xbf16>, vector<256x128xf32> -> vector<256x128xf32>
    %69 = arith.addf %65, %68 : vector<256x128xf32>
    %c49 = arith.constant 49 : index
    %c0_40 = arith.constant 0 : index
    %70 = vector.load %arg9[%c49, %c0_40] : memref<320x128xbf16, #tpu.memory_space<vmem>>, vector<256x128xbf16>
    %71 = vector.broadcast %28 : vector<256x1xbf16> to vector<256x128xbf16>
    %72 = arith.mulf %70, %71 : vector<256x128xbf16>
    %c1024 = arith.constant 1024 : index
    %c0_41 = arith.constant 0 : index
    %73 = vector.load %arg3[%c1024, %c0_41] : memref<1152x128xbf16, #tpu.memory_space<vmem>>, vector<128x128xbf16>
    %cst_42 = arith.constant dense<0.000000e+00> : vector<256x128xf32>
    %74 = tpu.matmul %72, %73, %cst_42 {dimension_numbers = #tpu.dot_dimension_numbers<[1], [0], [0], [1], [0, 0, 1, 1], [], []>} : vector<256x128xbf16>, vector<128x128xbf16>, vector<256x128xf32> -> vector<256x128xf32>
    %75 = arith.addf %69, %74 : vector<256x128xf32>
    %c0_43 = arith.constant 0 : index
    %c0_44 = arith.constant 0 : index
    %76 = vector.load %arg6[%c0_43, %c0_44] : memref<1x128xf32, #tpu.memory_space<vmem>>, vector<1x128xf32>
    %77 = vector.broadcast %76 : vector<1x128xf32> to vector<256x128xf32>
    %78 = arith.addf %75, %77 : vector<256x128xf32>
    %cst_45 = arith.constant 0.000000e+00 : f32
    %79 = vector.broadcast %cst_45 : f32 to vector<256x128xf32>
    %80 = arith.maximumf %78, %79 : vector<256x128xf32>
    %81 = arith.truncf %80 : vector<256x128xf32> to vector<256x128xbf16>
    %c0_46 = arith.constant 0 : index
    %c0_47 = arith.constant 0 : index
    %82 = vector.load %arg4[%c0_46, %c0_47] : memref<128x128xbf16, #tpu.memory_space<vmem>>, vector<128x128xbf16>
    %cst_48 = arith.constant dense<0.000000e+00> : vector<256x128xf32>
    %83 = tpu.matmul %81, %82, %cst_48 {dimension_numbers = #tpu.dot_dimension_numbers<[1], [0], [0], [1], [0, 0, 1, 1], [], []>} : vector<256x128xbf16>, vector<128x128xbf16>, vector<256x128xf32> -> vector<256x128xf32>
    %c0_49 = arith.constant 0 : index
    %c0_50 = arith.constant 0 : index
    %c0_51 = arith.constant 0 : index
    %c0_52 = arith.constant 0 : index
    %84 = vector.load %arg1[%c0_49, %c0_50, %c0_51, %c0_52] : memref<1x16x16x128xf32, #tpu.memory_space<vmem>>, vector<1x16x16x128xf32>
    %85 = vector.shape_cast %84 : vector<1x16x16x128xf32> to vector<16x16x128xf32>
    %86 = vector.shape_cast %85 : vector<16x16x128xf32> to vector<256x128xf32>
    %c0_53 = arith.constant 0 : index
    %c0_54 = arith.constant 0 : index
    %87 = vector.load %arg7[%c0_53, %c0_54] : memref<1x128xf32, #tpu.memory_space<vmem>>, vector<1x128xf32>
    %88 = vector.broadcast %87 : vector<1x128xf32> to vector<256x128xf32>
    %89 = arith.addf %83, %88 : vector<256x128xf32>
    %90 = arith.addf %89, %86 : vector<256x128xf32>
    %cst_55 = arith.constant 0.000000e+00 : f32
    %91 = vector.broadcast %cst_55 : f32 to vector<256x128xf32>
    %92 = arith.maximumf %90, %91 : vector<256x128xf32>
    %93 = vector.shape_cast %92 : vector<256x128xf32> to vector<16x16x128xf32>
    %c0_56 = arith.constant 0 : index
    %c0_57 = arith.constant 0 : index
    %c0_58 = arith.constant 0 : index
    %c0_59 = arith.constant 0 : index
    %94 = vector.load %arg8[%c0_56, %c0_57, %c0_58, %c0_59] : memref<1x16x16x128xf32, #tpu.memory_space<vmem>>, vector<1x16x16x128xf32>
    %95 = vector.shape_cast %94 : vector<1x16x16x128xf32> to vector<16x16x128xf32>
    %96 = vector.shape_cast %93 : vector<16x16x128xf32> to vector<1x16x16x128xf32>
    tpu.vector_store %arg8[%c0_56, %c0_57, %c0_58, %c0_59], %96 {strides = array<i32>} : memref<1x16x16x128xf32, #tpu.memory_space<vmem>>, vector<1x16x16x128xf32>,
    return
  }
  func.func @transform_0(%arg0: i32) -> (i32, i32, i32, i32) {
    %c0_i32 = arith.constant 0 : i32
    %c0_i32_0 = arith.constant 0 : i32
    %c0_i32_1 = arith.constant 0 : i32
    %c0_i32_2 = arith.constant 0 : i32
    return %arg0, %c0_i32, %c0_i32_0, %c0_i32_1 : i32, i32, i32, i32
  }
  func.func @transform_1(%arg0: i32) -> (i32, i32) {
    %c0_i32 = arith.constant 0 : i32
    %c0_i32_0 = arith.constant 0 : i32
    %c0_i32_1 = arith.constant 0 : i32
    return %c0_i32, %c0_i32_0 : i32, i32
  }
  func.func @transform_2(%arg0: i32) -> (i32, i32) {
    %c0_i32 = arith.constant 0 : i32
    %c0_i32_0 = arith.constant 0 : i32
    %c0_i32_1 = arith.constant 0 : i32
    return %c0_i32, %c0_i32_0 : i32, i32
  }
  func.func @transform_3(%arg0: i32) -> (i32, i32) {
    %c0_i32 = arith.constant 0 : i32
    %c0_i32_0 = arith.constant 0 : i32
    %c0_i32_1 = arith.constant 0 : i32
    return %c0_i32, %c0_i32_0 : i32, i32
  }
  func.func @transform_4(%arg0: i32) -> (i32, i32) {
    %c0_i32 = arith.constant 0 : i32
    %c0_i32_0 = arith.constant 0 : i32
    %c0_i32_1 = arith.constant 0 : i32
    return %c0_i32, %c0_i32_0 : i32, i32
  }
  func.func @transform_5(%arg0: i32) -> (i32, i32) {
    %c0_i32 = arith.constant 0 : i32
    %c0_i32_0 = arith.constant 0 : i32
    %c0_i32_1 = arith.constant 0 : i32
    return %c0_i32, %c0_i32_0 : i32, i32
  }
  func.func @transform_6(%arg0: i32) -> (i32, i32) {
    %c0_i32 = arith.constant 0 : i32
    %c0_i32_0 = arith.constant 0 : i32
    %c0_i32_1 = arith.constant 0 : i32
    return %c0_i32, %c0_i32_0 : i32, i32
  }
  func.func @transform_7(%arg0: i32) -> (i32, i32, i32, i32) {
    %c0_i32 = arith.constant 0 : i32
    %c0_i32_0 = arith.constant 0 : i32
    %c0_i32_1 = arith.constant 0 : i32
    %c0_i32_2 = arith.constant 0 : i32
    return %arg0, %c0_i32, %c0_i32_0, %c0_i32_1 : i32, i32, i32, i32
  }
}

</mosaic_0001>

<llo_original>
// kernel: tpu_custom_call.1
$region0: #{tpu_custom_call.1}
  #allocation0 [shape = 'u32[]', space=smem, size = 0x4, offset = 0x4, fixed_abs, tag = 'smem constant byte address 0x4 - core index']
  #allocation1 [shape = 'u32[144,128]{1,0:T(1,128)}', space=vmem, size = 0x12000, scoped, tag = 'internal scratch']
  #allocation2 [shape = 'bf16[320,128]{1,0:T(8,128)(2,1)}', space=vmem, size = 0x14000, scoped, tag = 'scratch operand']
  %s0 = inlined_call_operand.hbm [shape: f32[2,16,16,128], index: 0, kind: input, shape index: {}]
  %s1 = inlined_call_operand.hbm [shape: bf16[128,128], index: 1, kind: input, shape index: {}]
  %s2 = inlined_call_operand.hbm [shape: bf16[1152,128], index: 2, kind: input, shape index: {}]
  %s3 = inlined_call_operand.hbm [shape: bf16[128,128], index: 3, kind: input, shape index: {}]
  %s4 = inlined_call_operand.vmem [shape: f32[1,128], index: 4, kind: input, shape index: {}]
  %s5 = inlined_call_operand.vmem [shape: f32[1,128], index: 5, kind: input, shape index: {}]
  %s6 = inlined_call_operand.vmem [shape: f32[1,128], index: 6, kind: input, shape index: {}]
  %s7 = inlined_call_operand.hbm [shape: f32[2,16,16,128], index: 7, kind: output, shape index: {}]
  %s8 = sld [smem:[#allocation0]]
  $region77: #{tpu_custom_call.1} parent=0
    _
  %s10 = ssub.s32 1, %s8
  %s11 = scalar_select 0, %s10, %s8
  $region1: #{tpu_custom_call.1} parent=0
    #allocation3 [shape = 'u8[262144]{0}', space=vmem, size = 0x40000, scoped, tag = 'input window, operand 0']
    #allocation4 [shape = 's32[2]{0}', space=sflag, size = 0x8, scoped, tag = 'scoped memory for tpu_custom_call.1']
    #allocation5 [shape = 's32[2]{0}', space=sflag, size = 0x8, scoped, tag = 'scoped memory for tpu_custom_call.1']
    #allocation6 [shape = 'u8[32768]{0}', space=vmem, size = 0x8000, scoped, tag = 'input window, operand 1, single buffered']
    #allocation7 [shape = 's32[1]{0}', space=sflag, size = 0x4, scoped, tag = 'scoped memory for tpu_custom_call.1']
    #allocation8 [shape = 'u8[294912]{0}', space=vmem, size = 0x48000, scoped, tag = 'input window, operand 2, single buffered']
    #allocation9 [shape = 'u8[32768]{0}', space=vmem, size = 0x8000, scoped, tag = 'input window, operand 3, single buffered']
    #allocation10 [shape = 's32[1]{0}', space=sflag, size = 0x4, scoped, tag = 'scoped memory for tpu_custom_call.1']
    #allocation11 [shape = 'u8[262144]{0}', space=vmem, size = 0x40000, scoped, tag = 'output window, operand 0']
    %12 = vsyncpa [#allocation4], 0
    %s13 = scalar_lea.sflag [#allocation4], 1
    %14 = vsyncpa %s13, 0
    %15 = vsyncpa [#allocation7], 0
    %16 = vsyncpa [#allocation10], 0
    %17 = vsyncpa [#allocation5], 0
    %s18 = scalar_lea.sflag [#allocation5], 1
    %19 = vsyncpa %s18, 0
    loop: start=0, step=1, limit=4
    $region2: #{tpu_custom_call.1} parent=1 // loop_pre_header
      _
    $region3: #{tpu_custom_call.1} parent=1 // loop_header
      %s21 = sphi 0, %s25
      %p22 = scmp.ge.s32.totalorder %s21, 4
      %s31 = sphi 0, %s33
      %s34 = sphi 0, %s31
      %s35 = sphi 0, %s34
      %s51 = sphi 0, %s35
      %s55 = sphi 0, %s55
      %s57 = sphi 0, %s55
      %s58 = sphi 0, %s57
      %s72 = sphi 0, %s58
      %s76 = sphi 0, %s76
      %s78 = sphi 0, %s76
      %s79 = sphi 0, %s78
      %s93 = sphi 0, %s79
      %s97 = sphi 0, %s97
      %s99 = sphi 0, %s97
      %s100 = sphi 0, %s99
      %s114 = sphi 0, %s100
      %s118 = sphi 0, %s118
      %s120 = sphi 0, %s118
      %s121 = sphi 0, %s120
      %s135 = sphi 0, %s121
      %s139 = sphi 0, %s139
      %s141 = sphi 0, %s139
      %s142 = sphi 0, %s141
      %s156 = sphi 0, %s142
      %s160 = sphi 0, %s160
      %s162 = sphi 0, %s160
      %s163 = sphi 0, %s162
      %s177 = sphi 0, %s163
      %s183 = sphi 0, %s185
      %s186 = sphi 0, %s183
      %s187 = sphi 0, %s186
      %s203 = sphi 0, %s187
    $region4: #{tpu_custom_call.1} parent=1 // loop_header_branch
      %24 = sbr.rel (%p22) target = $region8
    $region5: #{tpu_custom_call.1} parent=1 // loop_body
      %s26 = ssub.s32 %s21, 1
      %s27 = ssub.s32 %s21, 2
      %s28 = sadd.s32 %s21, 1
      %s29 = ssub.s32 %s21, %s28
      %p30 = scmp.eq.s32.totalorder %s29, 0
      %s32 = sadd.s32 %s31, 1
      %s33 = scalar_select %p30, %s31, %s32
      %p36 = pneg %p30
      %p37 = scmp.eq.s32.totalorder %s21, 1
      %p38 = por %p36, %p37
      %p39 = scmp.ne.s32.totalorder %s31, %s34
      %p40 = scmp.eq.s32.totalorder %s21, 0
      %p41 = por %p39, %p40
      %p42 = scmp.ne.s32.totalorder %s31, %s34
      %p43 = scmp.eq.s32.totalorder %s26, 1
      %p44 = por %p42, %p43
      %p45 = scmp.ne.s32.totalorder %s34, %s35
      %p46 = scmp.eq.s32.totalorder %s26, 0
      %p47 = por %p45, %p46
      %p48 = scmp.ne.s32.totalorder %s34, %s35
      %p49 = scmp.eq.s32.totalorder %s27, 1
      %p50 = por %p48, %p49
      %p52 = scmp.ne.s32.totalorder %s35, %s51
      %p53 = scmp.eq.s32.totalorder %s27, 0
      %p54 = por %p52, %p53
      %s56 = sadd.s32 %s55, 1
      %p59 = scmp.eq.s32.totalorder %s21, 1
      %p60 = scmp.ne.s32.totalorder %s55, %s57
      %p61 = scmp.eq.s32.totalorder %s21, 0
      %p62 = por %p60, %p61
      %p63 = scmp.ne.s32.totalorder %s55, %s57
      %p64 = scmp.eq.s32.totalorder %s26, 1
      %p65 = por %p63, %p64
      %p66 = scmp.ne.s32.totalorder %s57, %s58
      %p67 = scmp.eq.s32.totalorder %s26, 0
      %p68 = por %p66, %p67
      %p69 = scmp.ne.s32.totalorder %s57, %s58
      %p70 = scmp.eq.s32.totalorder %s27, 1
      %p71 = por %p69, %p70
      %p73 = scmp.ne.s32.totalorder %s58, %s72
      %p74 = scmp.eq.s32.totalorder %s27, 0
      %p75 = por %p73, %p74
      %s77 = sadd.s32 %s76, 1
      %p80 = scmp.eq.s32.totalorder %s21, 1
      %p81 = scmp.ne.s32.totalorder %s76, %s78
      %p82 = scmp.eq.s32.totalorder %s21, 0
      %p83 = por %p81, %p82
      %p84 = scmp.ne.s32.totalorder %s76, %s78
      %p85 = scmp.eq.s32.totalorder %s26, 1
      %p86 = por %p84, %p85
      %p87 = scmp.ne.s32.totalorder %s78, %s79
      %p88 = scmp.eq.s32.totalorder %s26, 0
      %p89 = por %p87, %p88
      %p90 = scmp.ne.s32.totalorder %s78, %s79
      %p91 = scmp.eq.s32.totalorder %s27, 1
      %p92 = por %p90, %p91
      %p94 = scmp.ne.s32.totalorder %s79, %s93
      %p95 = scmp.eq.s32.totalorder %s27, 0
      %p96 = por %p94, %p95
      %s98 = sadd.s32 %s97, 1
      %p101 = scmp.eq.s32.totalorder %s21, 1
      %p102 = scmp.ne.s32.totalorder %s97, %s99
      %p103 = scmp.eq.s32.totalorder %s21, 0
      %p104 = por %p102, %p103
      %p105 = scmp.ne.s32.totalorder %s97, %s99
      %p106 = scmp.eq.s32.totalorder %s26, 1
      %p107 = por %p105, %p106
      %p108 = scmp.ne.s32.totalorder %s99, %s100
      %p109 = scmp.eq.s32.totalorder %s26, 0
      %p110 = por %p108, %p109
      %p111 = scmp.ne.s32.totalorder %s99, %s100
      %p112 = scmp.eq.s32.totalorder %s27, 1
      %p113 = por %p111, %p112
      %p115 = scmp.ne.s32.totalorder %s100, %s114
      %p116 = scmp.eq.s32.totalorder %s27, 0
      %p117 = por %p115, %p116
      %s119 = sadd.s32 %s118, 1
      %p122 = scmp.eq.s32.totalorder %s21, 1
      %p123 = scmp.ne.s32.totalorder %s118, %s120
      %p124 = scmp.eq.s32.totalorder %s21, 0
      %p125 = por %p123, %p124
      %p126 = scmp.ne.s32.totalorder %s118, %s120
      %p127 = scmp.eq.s32.totalorder %s26, 1
      %p128 = por %p126, %p127
      %p129 = scmp.ne.s32.totalorder %s120, %s121
      %p130 = scmp.eq.s32.totalorder %s26, 0
      %p131 = por %p129, %p130
      %p132 = scmp.ne.s32.totalorder %s120, %s121
      %p133 = scmp.eq.s32.totalorder %s27, 1
      %p134 = por %p132, %p133
      %p136 = scmp.ne.s32.totalorder %s121, %s135
      %p137 = scmp.eq.s32.totalorder %s27, 0
      %p138 = por %p136, %p137
      %s140 = sadd.s32 %s139, 1
      %p143 = scmp.eq.s32.totalorder %s21, 1
      %p144 = scmp.ne.s32.totalorder %s139, %s141
      %p145 = scmp.eq.s32.totalorder %s21, 0
      %p146 = por %p144, %p145
      %p147 = scmp.ne.s32.totalorder %s139, %s141
      %p148 = scmp.eq.s32.totalorder %s26, 1
      %p149 = por %p147, %p148
      %p150 = scmp.ne.s32.totalorder %s141, %s142
      %p151 = scmp.eq.s32.totalorder %s26, 0
      %p152 = por %p150, %p151
      %p153 = scmp.ne.s32.totalorder %s141, %s142
      %p154 = scmp.eq.s32.totalorder %s27, 1
      %p155 = por %p153, %p154
      %p157 = scmp.ne.s32.totalorder %s142, %s156
      %p158 = scmp.eq.s32.totalorder %s27, 0
      %p159 = por %p157, %p158
      %s161 = sadd.s32 %s160, 1
      %p164 = scmp.eq.s32.totalorder %s21, 1
      %p165 = scmp.ne.s32.totalorder %s160, %s162
      %p166 = scmp.eq.s32.totalorder %s21, 0
      %p167 = por %p165, %p166
      %p168 = scmp.ne.s32.totalorder %s160, %s162
      %p169 = scmp.eq.s32.totalorder %s26, 1
      %p170 = por %p168, %p169
      %p171 = scmp.ne.s32.totalorder %s162, %s163
      %p172 = scmp.eq.s32.totalorder %s26, 0
      %p173 = por %p171, %p172
      %p174 = scmp.ne.s32.totalorder %s162, %s163
      %p175 = scmp.eq.s32.totalorder %s27, 1
      %p176 = por %p174, %p175
      %p178 = scmp.ne.s32.totalorder %s163, %s177
      %p179 = scmp.eq.s32.totalorder %s27, 0
      %p180 = por %p178, %p179
      %s181 = ssub.s32 %s21, %s28
      %p182 = scmp.eq.s32.totalorder %s181, 0
      %s184 = sadd.s32 %s183, 1
      %s185 = scalar_select %p182, %s183, %s184
      %p188 = pneg %p182
      %p189 = scmp.eq.s32.totalorder %s21, 1
      %p190 = por %p188, %p189
      %p191 = scmp.ne.s32.totalorder %s183, %s186
      %p192 = scmp.eq.s32.totalorder %s21, 0
      %p193 = por %p191, %p192
      %p194 = scmp.ne.s32.totalorder %s183, %s186
      %p195 = scmp.eq.s32.totalorder %s26, 1
      %p196 = por %p194, %p195
      %p197 = scmp.ne.s32.totalorder %s186, %s187
      %p198 = scmp.eq.s32.totalorder %s26, 0
      %p199 = por %p197, %p198
      %p200 = scmp.ne.s32.totalorder %s186, %s187
      %p201 = scmp.eq.s32.totalorder %s27, 1
      %p202 = por %p200, %p201
      %p204 = scmp.ne.s32.totalorder %s187, %s203
      %p205 = scmp.eq.s32.totalorder %s27, 0
      %p206 = por %p204, %p205
      %p207 = scmp.le.s32.totalorder 1, %s21
      %p208 = scmp.lt.s32.totalorder %s21, 3
      %p209 = pnand %p207, %p208
      %p210 = pneg %p209
      // Predicated region
      $region9: #{tpu_custom_call.1} parent=5 // pred_check
        _
      $region10: #{tpu_custom_call.1} parent=5 // pred_check_branch
        %212 = sbr.rel (%p209) target = $region12
      $region11: #{tpu_custom_call.1} parent=5 // pred_region
        %s213 = ssub.s32 %s21, 1
        // Predicated region
        $region13: #{tpu_custom_call.1} parent=11 // pred_check
          %p214 = pneg %p68
        $region14: #{tpu_custom_call.1} parent=11 // pred_check_branch
          %216 = sbr.rel (%p214) target = $region16
        $region15: #{tpu_custom_call.1} parent=11 // pred_region
          %s218 = ssub.s32 1024, 1024
          %219 = vsyncadd [#allocation7], %s218
          %s220 = sshll.u32 [#allocation6], 4
          %s221 = int_to_ptr.vmem [resolvable:$true] %s220
          %226 = dma.hbm_to_vmem [thread:$0]  %s1, 1024, %s221, [#allocation7], 64, 64, 4
        $region16: #{tpu_custom_call.1} parent=11 // pred_fallthru
          _
        // Predicated region
        $region17: #{tpu_custom_call.1} parent=11 // pred_check
          %p227 = pneg %p89
        $region18: #{tpu_custom_call.1} parent=11 // pred_check_branch
          %229 = sbr.rel (%p227) target = $region20
        $region19: #{tpu_custom_call.1} parent=11 // pred_region
          %s231 = ssub.s32 9216, 9216
          %232 = vsyncadd [#allocation7], %s231
          %s233 = sshll.u32 [#allocation8], 4
          %s234 = int_to_ptr.vmem [resolvable:$true] %s233
          %239 = dma.hbm_to_vmem [thread:$0]  %s2, 9216, %s234, [#allocation7], 64, 64, 4
        $region20: #{tpu_custom_call.1} parent=11 // pred_fallthru
          _
        // Predicated region
        $region21: #{tpu_custom_call.1} parent=11 // pred_check
          %p240 = pneg %p110
        $region22: #{tpu_custom_call.1} parent=11 // pred_check_branch
          %242 = sbr.rel (%p240) target = $region24
        $region23: #{tpu_custom_call.1} parent=11 // pred_region
          %s244 = ssub.s32 1024, 1024
          %245 = vsyncadd [#allocation10], %s244
          %s246 = sshll.u32 [#allocation9], 4
          %s247 = int_to_ptr.vmem [resolvable:$true] %s246
          %252 = dma.hbm_to_vmem [thread:$0]  %s3, 1024, %s247, [#allocation10], 64, 64, 4
        $region24: #{tpu_custom_call.1} parent=11 // pred_fallthru
          _
        // Predicated region
        $region25: #{tpu_custom_call.1} parent=11 // pred_check
          %p253 = pneg %p131
        $region26: #{tpu_custom_call.1} parent=11 // pred_check_branch
          %255 = sbr.rel (%p253) target = $region28
        $region27: #{tpu_custom_call.1} parent=11 // pred_region
          _
        $region28: #{tpu_custom_call.1} parent=11 // pred_fallthru
          _
        // Predicated region
        $region29: #{tpu_custom_call.1} parent=11 // pred_check
          %p256 = pneg %p152
        $region30: #{tpu_custom_call.1} parent=11 // pred_check_branch
          %258 = sbr.rel (%p256) target = $region32
        $region31: #{tpu_custom_call.1} parent=11 // pred_region
          _
        $region32: #{tpu_custom_call.1} parent=11 // pred_fallthru
          _
        // Predicated region
        $region33: #{tpu_custom_call.1} parent=11 // pred_check
          %p259 = pneg %p173
        $region34: #{tpu_custom_call.1} parent=11 // pred_check_branch
          %261 = sbr.rel (%p259) target = $region36
        $region35: #{tpu_custom_call.1} parent=11 // pred_region
          _
        $region36: #{tpu_custom_call.1} parent=11 // pred_fallthru
          _
      $region12: #{tpu_custom_call.1} parent=5 // pred_fallthru
        _
      %p262 = scmp.lt.s32.totalorder %s21, 2
      // Predicated region
      $region37: #{tpu_custom_call.1} parent=5 // pred_check
        %p263 = pneg %p262
      $region38: #{tpu_custom_call.1} parent=5 // pred_check_branch
        %265 = sbr.rel (%p263) target = $region40
      $region39: #{tpu_custom_call.1} parent=5 // pred_region
        // Predicated region
        $region41: #{tpu_custom_call.1} parent=39 // pred_check
          %p266 = pneg %p41
        $region42: #{tpu_custom_call.1} parent=39 // pred_check_branch
          %268 = sbr.rel (%p266) target = $region44
        $region43: #{tpu_custom_call.1} parent=39 // pred_region
          %s269 = sand.u32 %s31, 1
          %s270 = scalar_lea.sflag [#allocation4], %s269
          %s271 = sand.u32 %s31, 1
          %s272 = smul.addr %s271, 256
          %s273 = scalar_lea.vmem [#allocation3], %s272
          %s275 = ssub.s32 4096, 4096
          %276 = vsyncadd %s270, %s275
          %s277 = smul.addr %s21, 32
          %s278 = smul.addr %s277, 128
          %s279 = scalar_lea.hbm %s0, %s278
          %s280 = sshll.u32 %s273, 4
          %s281 = int_to_ptr.vmem [resolvable:$true] %s280
          %286 = dma.hbm_to_vmem [thread:$0]  %s279, 4096, %s281, %s270, 128, 128, 8
        $region44: #{tpu_custom_call.1} parent=39 // pred_fallthru
          _
      $region40: #{tpu_custom_call.1} parent=5 // pred_fallthru
        _
      %p287 = scmp.le.s32.totalorder 1, %s21
      %p288 = scmp.lt.s32.totalorder %s21, 3
      %p289 = pnand %p287, %p288
      %p290 = pneg %p289
      // Predicated region
      $region45: #{tpu_custom_call.1} parent=5 // pred_check
        _
      $region46: #{tpu_custom_call.1} parent=5 // pred_check_branch
        %292 = sbr.rel (%p289) target = $region48
      $region47: #{tpu_custom_call.1} parent=5 // pred_region
        %s293 = ssub.s32 %s21, 1
        %s294 = sand.u32 %s34, 1
        %s295 = scalar_lea.sflag [#allocation4], %s294
        %s296 = sand.u32 %s34, 1
        %s297 = smul.addr %s296, 256
        %s298 = scalar_lea.vmem [#allocation3], %s297
        // Predicated region
        $region49: #{tpu_custom_call.1} parent=47 // pred_check
          %p299 = pneg %p47
        $region50: #{tpu_custom_call.1} parent=47 // pred_check_branch
          %301 = sbr.rel (%p299) target = $region52
        $region51: #{tpu_custom_call.1} parent=47 // pred_region
          %302 = dma.done %s295, 4096
        $region52: #{tpu_custom_call.1} parent=47 // pred_fallthru
          _
        // Predicated region
        $region53: #{tpu_custom_call.1} parent=47 // pred_check
          %p303 = pneg %p68
        $region54: #{tpu_custom_call.1} parent=47 // pred_check_branch
          %305 = sbr.rel (%p303) target = $region56
        $region55: #{tpu_custom_call.1} parent=47 // pred_region
          %306 = dma.done [#allocation7], 1024
        $region56: #{tpu_custom_call.1} parent=47 // pred_fallthru
          _
        // Predicated region
        $region57: #{tpu_custom_call.1} parent=47 // pred_check
          %p307 = pneg %p89
        $region58: #{tpu_custom_call.1} parent=47 // pred_check_branch
          %309 = sbr.rel (%p307) target = $region60
        $region59: #{tpu_custom_call.1} parent=47 // pred_region
          %310 = dma.done [#allocation7], 9216
        $region60: #{tpu_custom_call.1} parent=47 // pred_fallthru
          _
        // Predicated region
        $region61: #{tpu_custom_call.1} parent=47 // pred_check
          %p311 = pneg %p110
        $region62: #{tpu_custom_call.1} parent=47 // pred_check_branch
          %313 = sbr.rel (%p311) target = $region64
        $region63: #{tpu_custom_call.1} parent=47 // pred_region
          %314 = dma.done [#allocation10], 1024
        $region64: #{tpu_custom_call.1} parent=47 // pred_fallthru
          _
        %s315 = sand.u32 %s34, 1
        %s316 = scalar_lea.sflag [#allocation4], %s315
        %s317 = sand.u32 %s34, 1
        %s318 = smul.addr %s317, 256
        %s319 = scalar_lea.vmem [#allocation3], %s318
        %p320 = pneg %p47
        %p321 = pneg %p44
        %p322 = pneg %p68
        %p323 = pneg %p65
        %p324 = pneg %p89
        %p325 = pneg %p86
        %p326 = pneg %p110
        %p327 = pneg %p107
        %p328 = pneg %p131
        %p329 = pneg %p128
        %p330 = pneg %p152
        %p331 = pneg %p149
        %p332 = pneg %p173
        %p333 = pneg %p170
        %p334 = pneg %p199
        %p335 = pneg %p196
        %s336 = sand.u32 %s186, 1
        %s337 = scalar_lea.sflag [#allocation5], %s336
        %s338 = sand.u32 %s186, 1
        %s339 = smul.addr %s338, 256
        %s340 = scalar_lea.vmem [#allocation11], %s339
        %v342 = vld [vmem:[%s298] sm:$0xff]
        %v343 = vld [vmem:[%s298 + $0x8] sm:$0xff]
        %v344 = vld [vmem:[%s298 + $0x10] sm:$0xff]
        %v345 = vld [vmem:[%s298 + $0x18] sm:$0xff]
        %v346 = vld [vmem:[%s298 + $0x20] sm:$0xff]
        %v347 = vld [vmem:[%s298 + $0x28] sm:$0xff]
        %v348 = vld [vmem:[%s298 + $0x30] sm:$0xff]
        %v349 = vld [vmem:[%s298 + $0x38] sm:$0xff]
        %v350 = vld [vmem:[%s298 + $0x40] sm:$0xff]
        %v351 = vld [vmem:[%s298 + $0x48] sm:$0xff]
        %v352 = vld [vmem:[%s298 + $0x50] sm:$0xff]
        %v353 = vld [vmem:[%s298 + $0x58] sm:$0xff]
        %v354 = vld [vmem:[%s298 + $0x60] sm:$0xff]
        %v355 = vld [vmem:[%s298 + $0x68] sm:$0xff]
        %v356 = vld [vmem:[%s298 + $0x70] sm:$0xff]
        %v357 = vld [vmem:[%s298 + $0x78] sm:$0xff]
        %v358 = vld [vmem:[%s298 + $0x80] sm:$0xff]
        %v359 = vld [vmem:[%s298 + $0x88] sm:$0xff]
        %v360 = vld [vmem:[%s298 + $0x90] sm:$0xff]
        %v361 = vld [vmem:[%s298 + $0x98] sm:$0xff]
        %v362 = vld [vmem:[%s298 + $0xa0] sm:$0xff]
        %v363 = vld [vmem:[%s298 + $0xa8] sm:$0xff]
        %v364 = vld [vmem:[%s298 + $0xb0] sm:$0xff]
        %v365 = vld [vmem:[%s298 + $0xb8] sm:$0xff]
        %v366 = vld [vmem:[%s298 + $0xc0] sm:$0xff]
        %v367 = vld [vmem:[%s298 + $0xc8] sm:$0xff]
        %v368 = vld [vmem:[%s298 + $0xd0] sm:$0xff]
        %v369 = vld [vmem:[%s298 + $0xd8] sm:$0xff]
        %v370 = vld [vmem:[%s298 + $0xe0] sm:$0xff]
        %v371 = vld [vmem:[%s298 + $0xe8] sm:$0xff]
        %v372 = vld [vmem:[%s298 + $0xf0] sm:$0xff]
        %v373 = vld [vmem:[%s298 + $0xf8] sm:$0xff]
        %v374 = vpack.c.bf16 %v343, %v342
        %v375 = vpack.c.bf16 %v345, %v344
        %v376 = vpack.c.bf16 %v347, %v346
        %v377 = vpack.c.bf16 %v349, %v348
        %v378 = vpack.c.bf16 %v351, %v350
        %v379 = vpack.c.bf16 %v353, %v352
        %v380 = vpack.c.bf16 %v355, %v354
        %v381 = vpack.c.bf16 %v357, %v356
        %v382 = vpack.c.bf16 %v359, %v358
        %v383 = vpack.c.bf16 %v361, %v360
        %v384 = vpack.c.bf16 %v363, %v362
        %v385 = vpack.c.bf16 %v365, %v364
        %v386 = vpack.c.bf16 %v367, %v366
        %v387 = vpack.c.bf16 %v369, %v368
        %v388 = vpack.c.bf16 %v371, %v370
        %v389 = vpack.c.bf16 %v373, %v372
        %v390 = vld [vmem:[#allocation6] sm:$0xf]
        %v391 = vld [vmem:[#allocation6 + $0x4] sm:$0xf]
        %v392 = vld [vmem:[#allocation6 + $0x8] sm:$0xf]
        %v393 = vld [vmem:[#allocation6 + $0xc] sm:$0xf]
        %v394 = vld [vmem:[#allocation6 + $0x10] sm:$0xf]
        %v395 = vld [vmem:[#allocation6 + $0x14] sm:$0xf]
        %v396 = vld [vmem:[#allocation6 + $0x18] sm:$0xf]
        %v397 = vld [vmem:[#allocation6 + $0x1c] sm:$0xf]
        %v398 = vld [vmem:[#allocation6 + $0x20] sm:$0xf]
        %v399 = vld [vmem:[#allocation6 + $0x24] sm:$0xf]
        %v400 = vld [vmem:[#allocation6 + $0x28] sm:$0xf]
        %v401 = vld [vmem:[#allocation6 + $0x2c] sm:$0xf]
        %v402 = vld [vmem:[#allocation6 + $0x30] sm:$0xf]
        %v403 = vld [vmem:[#allocation6 + $0x34] sm:$0xf]
        %v404 = vld [vmem:[#allocation6 + $0x38] sm:$0xf]
        %v405 = vld [vmem:[#allocation6 + $0x3c] sm:$0xf]
        %v406 = vld [vmem:[%s4] sm:$0x1]
        %v408 = vlaneseq
        %v409 = vshrl.u32 %v408, 7
        %v410 = vsub.s32 0, %v409
        %v411 = vrot.slane %v406, %v410
        %v429 = vunpack.c.l.b16 %v390
        %v430 = vunpack.c.l.b16 %v391
        %v431 = vunpack.c.l.b16 %v392
        %v432 = vunpack.c.l.b16 %v393
        %v433 = vunpack.c.l.b16 %v394
        %v434 = vunpack.c.l.b16 %v395
        %v435 = vunpack.c.l.b16 %v396
        %v436 = vunpack.c.l.b16 %v397
        %v437 = vunpack.c.l.b16 %v398
        %v438 = vunpack.c.l.b16 %v399
        %v439 = vunpack.c.l.b16 %v400
        %v440 = vunpack.c.l.b16 %v401
        %v441 = vunpack.c.l.b16 %v402
        %v442 = vunpack.c.l.b16 %v403
        %v443 = vunpack.c.l.b16 %v404
        %v444 = vunpack.c.l.b16 %v405
        %v445 = vpack.c.b16 %v430, %v429
        %v446 = vpack.c.b16 %v432, %v431
        %v447 = vpack.c.b16 %v434, %v433
        %v448 = vpack.c.b16 %v436, %v435
        %v449 = vpack.c.b16 %v438, %v437
        %v450 = vpack.c.b16 %v440, %v439
        %v451 = vpack.c.b16 %v442, %v441
        %v452 = vpack.c.b16 %v444, %v443
        %461 = vmatprep.subr.bf16.mxu0 0
        %462 = vmatpush1.bf16.msra.mxu0 %v452
        %463 = vmatprep.subr.bf16.mxu0 0
        %464 = vmatpush1.bf16.msra.mxu0 %v451
        %465 = vmatprep.subr.bf16.mxu0 0
        %466 = vmatpush1.bf16.msra.mxu0 %v450
        %467 = vmatprep.subr.bf16.mxu0 0
        %468 = vmatpush1.bf16.msra.mxu0 %v449
        %469 = vmatprep.subr.bf16.mxu0 0
        %470 = vmatpush1.bf16.msra.mxu0 %v448
        %471 = vmatprep.subr.bf16.mxu0 0
        %472 = vmatpush1.bf16.msra.mxu0 %v447
        %473 = vmatprep.subr.bf16.mxu0 0
        %474 = vmatpush1.bf16.msra.mxu0 %v446
        %475 = vmatprep.subr.bf16.mxu0 0
        %476 = vmatpush1.bf16.msra.mxu0 %v445
        %477 = vmatprep.subr.bf16.mxu0 0
        %478 = vmatpush2.bf16.msra.mxu0 0
        %479 = vmatprep.subr.bf16.mxu0 0
        %480 = vmatpush2.bf16.msra.mxu0 0
        %481 = vmatprep.subr.bf16.mxu0 0
        %482 = vmatpush2.bf16.msra.mxu0 0
        %483 = vmatprep.subr.bf16.mxu0 0
        %484 = vmatpush2.bf16.msra.mxu0 0
        %485 = vmatprep.subr.bf16.mxu0 0
        %486 = vmatpush2.bf16.msra.mxu0 0
        %487 = vmatprep.subr.bf16.mxu0 0
        %488 = vmatpush2.bf16.msra.mxu0 0
        %489 = vmatprep.subr.bf16.mxu0 0
        %490 = vmatpush2.bf16.msra.mxu0 0
        %491 = vmatprep.subr.bf16.mxu0 0
        %492 = vmatpush2.bf16.msra.mxu0 0
        %493 = vmatprep.mubr.bf16.mxu0 0
        %494 = vmatmul.mubr.bf16.gmra.mxu0 %v374
        %v495 = vpop.f32.mrf.mxu0
        %v496 = vadd.f32 %v411, %v495
        %v497 = vpop.f32.mrf.mxu0
        %v498 = vpop.f32.mrf.mxu0
        %v499 = vadd.f32 %v411, %v498
        %v500 = vpop.f32.mrf.mxu0
        %501 = vmatprep.mubr.bf16.mxu0 0
        %502 = vmatmul.mubr.bf16.gmra.mxu0 %v375
        %v503 = vpop.f32.mrf.mxu0
        %v504 = vadd.f32 %v411, %v503
        %v505 = vpop.f32.mrf.mxu0
        %v506 = vpop.f32.mrf.mxu0
        %v507 = vadd.f32 %v411, %v506
        %v508 = vpop.f32.mrf.mxu0
        %509 = vmatprep.mubr.bf16.mxu0 0
        %510 = vmatmul.mubr.bf16.gmra.mxu0 %v376
        %v511 = vpop.f32.mrf.mxu0
        %v512 = vadd.f32 %v411, %v511
        %v513 = vpop.f32.mrf.mxu0
        %v514 = vpop.f32.mrf.mxu0
        %v515 = vadd.f32 %v411, %v514
        %v516 = vpop.f32.mrf.mxu0
        %517 = vmatprep.mubr.bf16.mxu0 0
        %518 = vmatmul.mubr.bf16.gmra.mxu0 %v377
        %v519 = vpop.f32.mrf.mxu0
        %v520 = vadd.f32 %v411, %v519
        %v521 = vpop.f32.mrf.mxu0
        %v522 = vpop.f32.mrf.mxu0
        %v523 = vadd.f32 %v411, %v522
        %v524 = vpop.f32.mrf.mxu0
        %525 = vmatprep.mubr.bf16.mxu0 0
        %526 = vmatmul.mubr.bf16.gmra.mxu0 %v378
        %v527 = vpop.f32.mrf.mxu0
        %v528 = vadd.f32 %v411, %v527
        %v529 = vpop.f32.mrf.mxu0
        %v530 = vpop.f32.mrf.mxu0
        %v531 = vadd.f32 %v411, %v530
        %v532 = vpop.f32.mrf.mxu0
        %533 = vmatprep.mubr.bf16.mxu0 0
        %534 = vmatmul.mubr.bf16.gmra.mxu0 %v379
        %v535 = vpop.f32.mrf.mxu0
        %v536 = vadd.f32 %v411, %v535
        %v537 = vpop.f32.mrf.mxu0
        %v538 = vpop.f32.mrf.mxu0
        %v539 = vadd.f32 %v411, %v538
        %v540 = vpop.f32.mrf.mxu0
        %541 = vmatprep.mubr.bf16.mxu0 0
        %542 = vmatmul.mubr.bf16.gmra.mxu0 %v380
        %v543 = vpop.f32.mrf.mxu0
        %v544 = vadd.f32 %v411, %v543
        %v545 = vpop.f32.mrf.mxu0
        %v546 = vpop.f32.mrf.mxu0
        %v547 = vadd.f32 %v411, %v546
        %v548 = vpop.f32.mrf.mxu0
        %549 = vmatprep.mubr.bf16.mxu0 0
        %550 = vmatmul.mubr.bf16.gmra.mxu0 %v381
        %v551 = vpop.f32.mrf.mxu0
        %v552 = vadd.f32 %v411, %v551
        %v553 = vpop.f32.mrf.mxu0
        %v554 = vpop.f32.mrf.mxu0
        %v555 = vadd.f32 %v411, %v554
        %v556 = vpop.f32.mrf.mxu0
        %557 = vmatprep.mubr.bf16.mxu0 0
        %558 = vmatmul.mubr.bf16.gmra.mxu0 %v382
        %v559 = vpop.f32.mrf.mxu0
        %v560 = vadd.f32 %v411, %v559
        %v561 = vpop.f32.mrf.mxu0
        %v562 = vpop.f32.mrf.mxu0
        %v563 = vadd.f32 %v411, %v562
        %v564 = vpop.f32.mrf.mxu0
        %565 = vmatprep.mubr.bf16.mxu0 0
        %566 = vmatmul.mubr.bf16.gmra.mxu0 %v383
        %v567 = vpop.f32.mrf.mxu0
        %v568 = vadd.f32 %v411, %v567
        %v569 = vpop.f32.mrf.mxu0
        %v570 = vpop.f32.mrf.mxu0
        %v571 = vadd.f32 %v411, %v570
        %v572 = vpop.f32.mrf.mxu0
        %573 = vmatprep.mubr.bf16.mxu0 0
        %574 = vmatmul.mubr.bf16.gmra.mxu0 %v384
        %v575 = vpop.f32.mrf.mxu0
        %v576 = vadd.f32 %v411, %v575
        %v577 = vpop.f32.mrf.mxu0
        %v578 = vpop.f32.mrf.mxu0
        %v579 = vadd.f32 %v411, %v578
        %v580 = vpop.f32.mrf.mxu0
        %581 = vmatprep.mubr.bf16.mxu0 0
        %582 = vmatmul.mubr.bf16.gmra.mxu0 %v385
        %v583 = vpop.f32.mrf.mxu0
        %v584 = vadd.f32 %v411, %v583
        %v585 = vpop.f32.mrf.mxu0
        %v586 = vpop.f32.mrf.mxu0
        %v587 = vadd.f32 %v411, %v586
        %v588 = vpop.f32.mrf.mxu0
        %589 = vmatprep.mubr.bf16.mxu0 0
        %590 = vmatmul.mubr.bf16.gmra.mxu0 %v386
        %v591 = vpop.f32.mrf.mxu0
        %v592 = vadd.f32 %v411, %v591
        %v593 = vpop.f32.mrf.mxu0
        %v594 = vpop.f32.mrf.mxu0
        %v595 = vadd.f32 %v411, %v594
        %v596 = vpop.f32.mrf.mxu0
        %597 = vmatprep.mubr.bf16.mxu0 0
        %598 = vmatmul.mubr.bf16.gmra.mxu0 %v387
        %v599 = vpop.f32.mrf.mxu0
        %v600 = vadd.f32 %v411, %v599
        %v601 = vpop.f32.mrf.mxu0
        %v602 = vpop.f32.mrf.mxu0
        %v603 = vadd.f32 %v411, %v602
        %v604 = vpop.f32.mrf.mxu0
        %605 = vmatprep.mubr.bf16.mxu0 0
        %606 = vmatmul.mubr.bf16.gmra.mxu0 %v388
        %v607 = vpop.f32.mrf.mxu0
        %v608 = vadd.f32 %v411, %v607
        %v609 = vpop.f32.mrf.mxu0
        %v610 = vpop.f32.mrf.mxu0
        %v611 = vadd.f32 %v411, %v610
        %v612 = vpop.f32.mrf.mxu0
        %613 = vmatprep.mubr.bf16.mxu0 0
        %614 = vmatmul.mubr.bf16.gmra.mxu0 %v389
        %v615 = vpop.f32.mrf.mxu0
        %v616 = vadd.f32 %v411, %v615
        %v617 = vpop.f32.mrf.mxu0
        %v618 = vpop.f32.mrf.mxu0
        %v619 = vadd.f32 %v411, %v618
        %v620 = vpop.f32.mrf.mxu0
        %621 = vdwg.mxu0
        %v622 = vmax.f32 %v496, 0.0
        %v623 = vmax.f32 %v499, 0.0
        %v624 = vmax.f32 %v504, 0.0
        %v625 = vmax.f32 %v507, 0.0
        %v626 = vmax.f32 %v512, 0.0
        %v627 = vmax.f32 %v515, 0.0
        %v628 = vmax.f32 %v520, 0.0
        %v629 = vmax.f32 %v523, 0.0
        %v630 = vmax.f32 %v528, 0.0
        %v631 = vmax.f32 %v531, 0.0
        %v632 = vmax.f32 %v536, 0.0
        %v633 = vmax.f32 %v539, 0.0
        %v634 = vmax.f32 %v544, 0.0
        %v635 = vmax.f32 %v547, 0.0
        %v636 = vmax.f32 %v552, 0.0
        %v637 = vmax.f32 %v555, 0.0
        %v638 = vmax.f32 %v560, 0.0
        %v639 = vmax.f32 %v563, 0.0
        %v640 = vmax.f32 %v568, 0.0
        %v641 = vmax.f32 %v571, 0.0
        %v642 = vmax.f32 %v576, 0.0
        %v643 = vmax.f32 %v579, 0.0
        %v644 = vmax.f32 %v584, 0.0
        %v645 = vmax.f32 %v587, 0.0
        %v646 = vmax.f32 %v592, 0.0
        %v647 = vmax.f32 %v595, 0.0
        %v648 = vmax.f32 %v600, 0.0
        %v649 = vmax.f32 %v603, 0.0
        %v650 = vmax.f32 %v608, 0.0
        %v651 = vmax.f32 %v611, 0.0
        %v652 = vmax.f32 %v616, 0.0
        %v653 = vmax.f32 %v619, 0.0
        %654 = vst [vmem:[#allocation2] sm:$0xf] 0
        %655 = vst [vmem:[#allocation2 + $0x4] sm:$0xf] 0
        %656 = vst [vmem:[#allocation2 + $0x8] sm:$0xf] 0
        %657 = vst [vmem:[#allocation2 + $0xc] sm:$0xf] 0
        %658 = vst [vmem:[#allocation2 + $0x90] sm:$0xf] 0
        %659 = vst [vmem:[#allocation2 + $0x94] sm:$0xf] 0
        %660 = vst [vmem:[#allocation2 + $0x98] sm:$0xf] 0
        %661 = vst [vmem:[#allocation2 + $0x9c] sm:$0xf] 0
        %v662 = vpack.c.bf16 %v623, %v622
        %v663 = vpack.c.bf16 %v625, %v624
        %v664 = vpack.c.bf16 %v627, %v626
        %v665 = vpack.c.bf16 %v629, %v628
        %v666 = vpack.c.bf16 %v631, %v630
        %v667 = vpack.c.bf16 %v633, %v632
        %v668 = vpack.c.bf16 %v635, %v634
        %v669 = vpack.c.bf16 %v637, %v636
        %v670 = vpack.c.bf16 %v639, %v638
        %v671 = vpack.c.bf16 %v641, %v640
        %v672 = vpack.c.bf16 %v643, %v642
        %v673 = vpack.c.bf16 %v645, %v644
        %v674 = vpack.c.bf16 %v647, %v646
        %v675 = vpack.c.bf16 %v649, %v648
        %v676 = vpack.c.bf16 %v651, %v650
        %v677 = vpack.c.bf16 %v653, %v652
        %v694 = vunpack.c.l.b16 %v662
        %v695 = vunpack.c.h.b16 %v662
        %v696 = vunpack.c.l.b16 %v663
        %v697 = vunpack.c.h.b16 %v663
        %v698 = vunpack.c.l.b16 %v664
        %v699 = vunpack.c.h.b16 %v664
        %v700 = vunpack.c.l.b16 %v665
        %v701 = vunpack.c.h.b16 %v665
        %v702 = vunpack.c.l.b16 %v666
        %v703 = vunpack.c.h.b16 %v666
        %v704 = vunpack.c.l.b16 %v667
        %v705 = vunpack.c.h.b16 %v667
        %v706 = vunpack.c.l.b16 %v668
        %v707 = vunpack.c.h.b16 %v668
        %v708 = vunpack.c.l.b16 %v669
        %v709 = vunpack.c.h.b16 %v669
        %v710 = vunpack.c.l.b16 %v670
        %v711 = vunpack.c.h.b16 %v670
        %v712 = vunpack.c.l.b16 %v671
        %v713 = vunpack.c.h.b16 %v671
        %v714 = vunpack.c.l.b16 %v672
        %v715 = vunpack.c.h.b16 %v672
        %v716 = vunpack.c.l.b16 %v673
        %v717 = vunpack.c.h.b16 %v673
        %v718 = vunpack.c.l.b16 %v674
        %v719 = vunpack.c.h.b16 %v674
        %v720 = vunpack.c.l.b16 %v675
        %v721 = vunpack.c.h.b16 %v675
        %v722 = vunpack.c.l.b16 %v676
        %v723 = vunpack.c.h.b16 %v676
        %v724 = vunpack.c.l.b16 %v677
        %v725 = vunpack.c.h.b16 %v677
        %v726 = vpack.c.b16 %v694, %v694
        %v727 = vpack.c.b16 %v695, %v695
        %v728 = vpack.c.b16 %v696, %v696
        %v729 = vpack.c.b16 %v697, %v697
        %v730 = vpack.c.b16 %v698, %v698
        %v731 = vpack.c.b16 %v699, %v699
        %v732 = vpack.c.b16 %v700, %v700
        %v733 = vpack.c.b16 %v701, %v701
        %v734 = vpack.c.b16 %v702, %v702
        %v735 = vpack.c.b16 %v703, %v703
        %v736 = vpack.c.b16 %v704, %v704
        %v737 = vpack.c.b16 %v705, %v705
        %v738 = vpack.c.b16 %v706, %v706
        %v739 = vpack.c.b16 %v707, %v707
        %v740 = vpack.c.b16 %v708, %v708
        %v741 = vpack.c.b16 %v709, %v709
        %v742 = vpack.c.b16 %v710, %v710
        %v743 = vpack.c.b16 %v711, %v711
        %v744 = vpack.c.b16 %v712, %v712
        %v745 = vpack.c.b16 %v713, %v713
        %v746 = vpack.c.b16 %v714, %v714
        %v747 = vpack.c.b16 %v715, %v715
        %v748 = vpack.c.b16 %v716, %v716
        %v749 = vpack.c.b16 %v717, %v717
        %v750 = vpack.c.b16 %v718, %v718
        %v751 = vpack.c.b16 %v719, %v719
        %v752 = vpack.c.b16 %v720, %v720
        %v753 = vpack.c.b16 %v721, %v721
        %v754 = vpack.c.b16 %v722, %v722
        %v755 = vpack.c.b16 %v723, %v723
        %v756 = vpack.c.b16 %v724, %v724
        %v757 = vpack.c.b16 %v725, %v725
        %790 = vst [vmem:[#allocation2 + $0x10] sm:$0xf] %v726
        %791 = vst [vmem:[#allocation2 + $0x14] sm:$0xf] %v727
        %792 = vst [vmem:[#allocation2 + $0x18] sm:$0xf] %v728
        %793 = vst [vmem:[#allocation2 + $0x1c] sm:$0xf] %v729
        %794 = vst [vmem:[#allocation2 + $0x20] sm:$0xf] %v730
        %795 = vst [vmem:[#allocation2 + $0x24] sm:$0xf] %v731
        %796 = vst [vmem:[#allocation2 + $0x28] sm:$0xf] %v732
        %797 = vst [vmem:[#allocation2 + $0x2c] sm:$0xf] %v733
        %798 = vst [vmem:[#allocation2 + $0x30] sm:$0xf] %v734
        %799 = vst [vmem:[#allocation2 + $0x34] sm:$0xf] %v735
        %800 = vst [vmem:[#allocation2 + $0x38] sm:$0xf] %v736
        %801 = vst [vmem:[#allocation2 + $0x3c] sm:$0xf] %v737
        %802 = vst [vmem:[#allocation2 + $0x40] sm:$0xf] %v738
        %803 = vst [vmem:[#allocation2 + $0x44] sm:$0xf] %v739
        %804 = vst [vmem:[#allocation2 + $0x48] sm:$0xf] %v740
        %805 = vst [vmem:[#allocation2 + $0x4c] sm:$0xf] %v741
        %806 = vst [vmem:[#allocation2 + $0x50] sm:$0xf] %v742
        %807 = vst [vmem:[#allocation2 + $0x54] sm:$0xf] %v743
        %808 = vst [vmem:[#allocation2 + $0x58] sm:$0xf] %v744
        %809 = vst [vmem:[#allocation2 + $0x5c] sm:$0xf] %v745
        %810 = vst [vmem:[#allocation2 + $0x60] sm:$0xf] %v746
        %811 = vst [vmem:[#allocation2 + $0x64] sm:$0xf] %v747
        %812 = vst [vmem:[#allocation2 + $0x68] sm:$0xf] %v748
        %813 = vst [vmem:[#allocation2 + $0x6c] sm:$0xf] %v749
        %814 = vst [vmem:[#allocation2 + $0x70] sm:$0xf] %v750
        %815 = vst [vmem:[#allocation2 + $0x74] sm:$0xf] %v751
        %816 = vst [vmem:[#allocation2 + $0x78] sm:$0xf] %v752
        %817 = vst [vmem:[#allocation2 + $0x7c] sm:$0xf] %v753
        %818 = vst [vmem:[#allocation2 + $0x80] sm:$0xf] %v754
        %819 = vst [vmem:[#allocation2 + $0x84] sm:$0xf] %v755
        %820 = vst [vmem:[#allocation2 + $0x88] sm:$0xf] %v756
        %821 = vst [vmem:[#allocation2 + $0x8c] sm:$0xf] %v757
        %v822 = vlaneseq
        %v823 = vshrl.u32 %v822, 7
        %v824 = vadd.s32 %v823, 8
        %vm825 = vcmp.ne.s32.totalorder %v823, 0
        %vm826 = vcmp.ne.s32.totalorder %v824, 0
        %v827 = vsel %vm825, 1, 0
        %v828 = vsel %vm826, 1, 0
        %v829 = vcvt.s32.f32 %v827
        %v830 = vcvt.s32.f32 %v828
        %v831 = vpack.c.bf16 %v830, %v829
        %vm832 = vcmp.ne.s32.totalorder %v823, 15
        %vm833 = vcmp.ne.s32.totalorder %v824, 15
        %v834 = vsel %vm832, 1, 0
        %v835 = vsel %vm833, 1, 0
        %v836 = vcvt.s32.f32 %v834
        %v837 = vcvt.s32.f32 %v835
        %v838 = vpack.c.bf16 %v837, %v836
        %v839 = vld [vmem:[#allocation2 + $0x4] sm:$0x8]
        %v840 = vld [vmem:[#allocation2 + $0x8] sm:$0xf]
        %v841 = vld [vmem:[#allocation2 + $0xc] sm:$0xf]
        %v842 = vld [vmem:[#allocation2 + $0x10] sm:$0xf]
        %v843 = vld [vmem:[#allocation2 + $0x14] sm:$0xf]
        %v844 = vld [vmem:[#allocation2 + $0x18] sm:$0xf]
        %v845 = vld [vmem:[#allocation2 + $0x1c] sm:$0xf]
        %v846 = vld [vmem:[#allocation2 + $0x20] sm:$0xf]
        %v847 = vld [vmem:[#allocation2 + $0x24] sm:$0xf]
        %v848 = vld [vmem:[#allocation2 + $0x28] sm:$0xf]
        %v849 = vld [vmem:[#allocation2 + $0x2c] sm:$0xf]
        %v850 = vld [vmem:[#allocation2 + $0x30] sm:$0xf]
        %v851 = vld [vmem:[#allocation2 + $0x34] sm:$0xf]
        %v852 = vld [vmem:[#allocation2 + $0x38] sm:$0xf]
        %v853 = vld [vmem:[#allocation2 + $0x3c] sm:$0xf]
        %v854 = vld [vmem:[#allocation2 + $0x40] sm:$0xf]
        %v855 = vld [vmem:[#allocation2 + $0x44] sm:$0xf]
        %v856 = vld [vmem:[#allocation2 + $0x48] sm:$0xf]
        %v857 = vld [vmem:[#allocation2 + $0x4c] sm:$0xf]
        %v858 = vld [vmem:[#allocation2 + $0x50] sm:$0xf]
        %v859 = vld [vmem:[#allocation2 + $0x54] sm:$0xf]
        %v860 = vld [vmem:[#allocation2 + $0x58] sm:$0xf]
        %v861 = vld [vmem:[#allocation2 + $0x5c] sm:$0xf]
        %v862 = vld [vmem:[#allocation2 + $0x60] sm:$0xf]
        %v863 = vld [vmem:[#allocation2 + $0x64] sm:$0xf]
        %v864 = vld [vmem:[#allocation2 + $0x68] sm:$0xf]
        %v865 = vld [vmem:[#allocation2 + $0x6c] sm:$0xf]
        %v866 = vld [vmem:[#allocation2 + $0x70] sm:$0xf]
        %v867 = vld [vmem:[#allocation2 + $0x74] sm:$0xf]
        %v868 = vld [vmem:[#allocation2 + $0x78] sm:$0xf]
        %v869 = vld [vmem:[#allocation2 + $0x7c] sm:$0xf]
        %v870 = vld [vmem:[#allocation2 + $0x80] sm:$0xf]
        %v871 = vld [vmem:[#allocation2 + $0x84] sm:$0xf]
        %v874 = vunpack.c.l.s4 839922192
        %v875 = vunpack.c.0.s8 %v874
        %v876 = vlaneseq
        %v877 = vshrl.u32 %v876, 7
        %v878 = vsub.s32 %v875, %v877
        %v879 = vrot.slane %v831, %v878
        %v881 = vunpack.c.l.s4 1985246804
        %v882 = vunpack.c.0.s8 %v881
        %v883 = vlaneseq
        %v884 = vshrl.u32 %v883, 7
        %v885 = vsub.s32 %v882, %v884
        %v886 = vrot.slane %v831, %v885
        %vm887 = vsmask.f32 3328
        %vm888 = vsmask.f32 7440
        %vm889 = vmor %vm887, %vm888
        %v891 = vshll.u32 %v879, 16
        %v893 = vrot.slane %v891, 5
        %v894 = vshrl.u32 %v879, 16
        %v896 = vrot.slane %v894, 4
        %v897 = vor.u32 %v896, %v893
        %v898 = vrot.slane %v897, 4
        %v900 = vshll.u32 %v886, 16
        %v902 = vrot.slane %v900, 5
        %v903 = vsel %vm889, %v898, %v902
        %v904 = vshrl.u32 %v886, 16
        %v906 = vrot.slane %v904, 4
        %v907 = vor.u32 %v906, %v902
        %v908 = vrot.slane %v907, 4
        %v909 = vsel %vm889, %v908, %v893
        %v914 = vmul.bf16 %v839, %v893
        %v915 = vmul.bf16 %v840, %v903
        %v916 = vmul.bf16 %v841, %v909
        %v917 = vmul.bf16 %v842, %v903
        %v918 = vmul.bf16 %v843, %v909
        %v919 = vmul.bf16 %v844, %v903
        %v920 = vmul.bf16 %v845, %v909
        %v921 = vmul.bf16 %v846, %v903
        %v922 = vmul.bf16 %v847, %v909
        %v923 = vmul.bf16 %v848, %v903
        %v924 = vmul.bf16 %v849, %v909
        %v925 = vmul.bf16 %v850, %v903
        %v926 = vmul.bf16 %v851, %v909
        %v927 = vmul.bf16 %v852, %v903
        %v928 = vmul.bf16 %v853, %v909
        %v929 = vmul.bf16 %v854, %v903
        %v930 = vmul.bf16 %v855, %v909
        %v931 = vmul.bf16 %v856, %v903
        %v932 = vmul.bf16 %v857, %v909
        %v933 = vmul.bf16 %v858, %v903
        %v934 = vmul.bf16 %v859, %v909
        %v935 = vmul.bf16 %v860, %v903
        %v936 = vmul.bf16 %v861, %v909
        %v937 = vmul.bf16 %v862, %v903
        %v938 = vmul.bf16 %v863, %v909
        %v939 = vmul.bf16 %v864, %v903
        %v940 = vmul.bf16 %v865, %v909
        %v941 = vmul.bf16 %v866, %v903
        %v942 = vmul.bf16 %v867, %v909
        %v943 = vmul.bf16 %v868, %v903
        %v944 = vmul.bf16 %v869, %v909
        %v945 = vmul.bf16 %v870, %v903
        %v946 = vmul.bf16 %v871, %v908
        %v947 = vld [vmem:[#allocation8] sm:$0xf]
        %v948 = vld [vmem:[#allocation8 + $0x4] sm:$0xf]
        %v949 = vld [vmem:[#allocation8 + $0x8] sm:$0xf]
        %v950 = vld [vmem:[#allocation8 + $0xc] sm:$0xf]
        %v951 = vld [vmem:[#allocation8 + $0x10] sm:$0xf]
        %v952 = vld [vmem:[#allocation8 + $0x14] sm:$0xf]
        %v953 = vld [vmem:[#allocation8 + $0x18] sm:$0xf]
        %v954 = vld [vmem:[#allocation8 + $0x1c] sm:$0xf]
        %v955 = vld [vmem:[#allocation8 + $0x20] sm:$0xf]
        %v956 = vld [vmem:[#allocation8 + $0x24] sm:$0xf]
        %v957 = vld [vmem:[#allocation8 + $0x28] sm:$0xf]
        %v958 = vld [vmem:[#allocation8 + $0x2c] sm:$0xf]
        %v959 = vld [vmem:[#allocation8 + $0x30] sm:$0xf]
        %v960 = vld [vmem:[#allocation8 + $0x34] sm:$0xf]
        %v961 = vld [vmem:[#allocation8 + $0x38] sm:$0xf]
        %v962 = vld [vmem:[#allocation8 + $0x3c] sm:$0xf]
        %v963 = vld [vmem:[#allocation8 + $0x40] sm:$0xf]
        %v964 = vld [vmem:[#allocation8 + $0x44] sm:$0xf]
        %v965 = vld [vmem:[#allocation8 + $0x48] sm:$0xf]
        %v966 = vld [vmem:[#allocation8 + $0x4c] sm:$0xf]
        %v967 = vld [vmem:[#allocation8 + $0x50] sm:$0xf]
        %v968 = vld [vmem:[#allocation8 + $0x54] sm:$0xf]
        %v969 = vld [vmem:[#allocation8 + $0x58] sm:$0xf]
        %v970 = vld [vmem:[#allocation8 + $0x5c] sm:$0xf]
        %v971 = vld [vmem:[#allocation8 + $0x60] sm:$0xf]
        %v972 = vld [vmem:[#allocation8 + $0x64] sm:$0xf]
        %v973 = vld [vmem:[#allocation8 + $0x68] sm:$0xf]
        %v974 = vld [vmem:[#allocation8 + $0x6c] sm:$0xf]
        %v975 = vld [vmem:[#allocation8 + $0x70] sm:$0xf]
        %v976 = vld [vmem:[#allocation8 + $0x74] sm:$0xf]
        %v977 = vld [vmem:[#allocation8 + $0x78] sm:$0xf]
        %v978 = vld [vmem:[#allocation8 + $0x7c] sm:$0xf]
        %v1011 = vunpack.c.l.b16 %v840
        %v1012 = vunpack.c.l.b16 %v841
        %v1013 = vunpack.c.l.b16 %v842
        %v1014 = vunpack.c.l.b16 %v843
        %v1015 = vunpack.c.l.b16 %v844
        %v1016 = vunpack.c.l.b16 %v845
        %v1017 = vunpack.c.l.b16 %v846
        %v1018 = vunpack.c.l.b16 %v847
        %v1019 = vunpack.c.l.b16 %v848
        %v1020 = vunpack.c.l.b16 %v849
        %v1021 = vunpack.c.l.b16 %v850
        %v1022 = vunpack.c.l.b16 %v851
        %v1023 = vunpack.c.l.b16 %v852
        %v1024 = vunpack.c.l.b16 %v853
        %v1025 = vunpack.c.l.b16 %v854
        %v1026 = vunpack.c.l.b16 %v855
        %v1027 = vunpack.c.l.b16 %v856
        %v1028 = vunpack.c.l.b16 %v857
        %v1029 = vunpack.c.l.b16 %v858
        %v1030 = vunpack.c.l.b16 %v859
        %v1031 = vunpack.c.l.b16 %v860
        %v1032 = vunpack.c.l.b16 %v861
        %v1033 = vunpack.c.l.b16 %v862
        %v1034 = vunpack.c.l.b16 %v863
        %v1035 = vunpack.c.l.b16 %v864
        %v1036 = vunpack.c.l.b16 %v865
        %v1037 = vunpack.c.l.b16 %v866
        %v1038 = vunpack.c.l.b16 %v867
        %v1039 = vunpack.c.l.b16 %v868
        %v1040 = vunpack.c.l.b16 %v869
        %v1041 = vunpack.c.l.b16 %v870
        %v1042 = vunpack.c.l.b16 %v871
        %v1043 = vpack.c.b16 %v1012, %v1011
        %v1044 = vpack.c.b16 %v1014, %v1013
        %v1045 = vpack.c.b16 %v1016, %v1015
        %v1046 = vpack.c.b16 %v1018, %v1017
        %v1047 = vpack.c.b16 %v1020, %v1019
        %v1048 = vpack.c.b16 %v1022, %v1021
        %v1049 = vpack.c.b16 %v1024, %v1023
        %v1050 = vpack.c.b16 %v1026, %v1025
        %v1051 = vpack.c.b16 %v1028, %v1027
        %v1052 = vpack.c.b16 %v1030, %v1029
        %v1053 = vpack.c.b16 %v1032, %v1031
        %v1054 = vpack.c.b16 %v1034, %v1033
        %v1055 = vpack.c.b16 %v1036, %v1035
        %v1056 = vpack.c.b16 %v1038, %v1037
        %v1057 = vpack.c.b16 %v1040, %v1039
        %v1058 = vpack.c.b16 %v1042, %v1041
        %v1091 = vunpack.c.l.b16 %v963
        %v1092 = vunpack.c.l.b16 %v964
        %v1093 = vunpack.c.l.b16 %v965
        %v1094 = vunpack.c.l.b16 %v966
        %v1095 = vunpack.c.l.b16 %v967
        %v1096 = vunpack.c.l.b16 %v968
        %v1097 = vunpack.c.l.b16 %v969
        %v1098 = vunpack.c.l.b16 %v970
        %v1099 = vunpack.c.l.b16 %v971
        %v1100 = vunpack.c.l.b16 %v972
        %v1101 = vunpack.c.l.b16 %v973
        %v1102 = vunpack.c.l.b16 %v974
        %v1103 = vunpack.c.l.b16 %v975
        %v1104 = vunpack.c.l.b16 %v976
        %v1105 = vunpack.c.l.b16 %v977
        %v1106 = vunpack.c.l.b16 %v978
        %v1107 = vpack.c.b16 %v1092, %v1091
        %v1108 = vpack.c.b16 %v1094, %v1093
        %v1109 = vpack.c.b16 %v1096, %v1095
        %v1110 = vpack.c.b16 %v1098, %v1097
        %v1111 = vpack.c.b16 %v1100, %v1099
        %v1112 = vpack.c.b16 %v1102, %v1101
        %v1113 = vpack.c.b16 %v1104, %v1103
        %v1114 = vpack.c.b16 %v1106, %v1105
        %1123 = vmatprep.subr.bf16.mxu0 0
        %1124 = vmatpush1.bf16.msra.mxu0 %v1114
        %1125 = vmatprep.subr.bf16.mxu0 0
        %1126 = vmatpush1.bf16.msra.mxu0 %v1113
        %1127 = vmatprep.subr.bf16.mxu0 0
        %1128 = vmatpush1.bf16.msra.mxu0 %v1112
        %1129 = vmatprep.subr.bf16.mxu0 0
        %1130 = vmatpush1.bf16.msra.mxu0 %v1111
        %1131 = vmatprep.subr.bf16.mxu0 0
        %1132 = vmatpush1.bf16.msra.mxu0 %v1110
        %1133 = vmatprep.subr.bf16.mxu0 0
        %1134 = vmatpush1.bf16.msra.mxu0 %v1109
        %1135 = vmatprep.subr.bf16.mxu0 0
        %1136 = vmatpush1.bf16.msra.mxu0 %v1108
        %1137 = vmatprep.subr.bf16.mxu0 0
        %1138 = vmatpush1.bf16.msra.mxu0 %v1107
        %1139 = vmatprep.subr.bf16.mxu0 0
        %1140 = vmatpush2.bf16.msra.mxu0 0
        %1141 = vmatprep.subr.bf16.mxu0 0
        %1142 = vmatpush2.bf16.msra.mxu0 0
        %1143 = vmatprep.subr.bf16.mxu0 0
        %1144 = vmatpush2.bf16.msra.mxu0 0
        %1145 = vmatprep.subr.bf16.mxu0 0
        %1146 = vmatpush2.bf16.msra.mxu0 0
        %1147 = vmatprep.subr.bf16.mxu0 0
        %1148 = vmatpush2.bf16.msra.mxu0 0
        %1149 = vmatprep.subr.bf16.mxu0 0
        %1150 = vmatpush2.bf16.msra.mxu0 0
        %1151 = vmatprep.subr.bf16.mxu0 0
        %1152 = vmatpush2.bf16.msra.mxu0 0
        %1153 = vmatprep.subr.bf16.mxu0 0
        %1154 = vmatpush2.bf16.msra.mxu0 0
        %1155 = vmatprep.mubr.bf16.mxu0 0
        %1156 = vmatmul.mubr.bf16.gmra.mxu0 %v1043
        %v1157 = vpop.f32.mrf.mxu0
        %v1158 = vadd.f32 0.0, %v1157
        %v1159 = vpop.f32.mrf.mxu0
        %v1160 = vpop.f32.mrf.mxu0
        %v1161 = vadd.f32 0.0, %v1160
        %v1162 = vpop.f32.mrf.mxu0
        %1163 = vmatprep.mubr.bf16.mxu0 0
        %1164 = vmatmul.mubr.bf16.gmra.mxu0 %v1044
        %v1165 = vpop.f32.mrf.mxu0
        %v1166 = vadd.f32 0.0, %v1165
        %v1167 = vpop.f32.mrf.mxu0
        %v1168 = vpop.f32.mrf.mxu0
        %v1169 = vadd.f32 0.0, %v1168
        %v1170 = vpop.f32.mrf.mxu0
        %1171 = vmatprep.mubr.bf16.mxu0 0
        %1172 = vmatmul.mubr.bf16.gmra.mxu0 %v1045
        %v1173 = vpop.f32.mrf.mxu0
        %v1174 = vadd.f32 0.0, %v1173
        %v1175 = vpop.f32.mrf.mxu0
        %v1176 = vpop.f32.mrf.mxu0
        %v1177 = vadd.f32 0.0, %v1176
        %v1178 = vpop.f32.mrf.mxu0
        %1179 = vmatprep.mubr.bf16.mxu0 0
        %1180 = vmatmul.mubr.bf16.gmra.mxu0 %v1046
        %v1181 = vpop.f32.mrf.mxu0
        %v1182 = vadd.f32 0.0, %v1181
        %v1183 = vpop.f32.mrf.mxu0
        %v1184 = vpop.f32.mrf.mxu0
        %v1185 = vadd.f32 0.0, %v1184
        %v1186 = vpop.f32.mrf.mxu0
        %1187 = vmatprep.mubr.bf16.mxu0 0
        %1188 = vmatmul.mubr.bf16.gmra.mxu0 %v1047
        %v1189 = vpop.f32.mrf.mxu0
        %v1190 = vadd.f32 0.0, %v1189
        %v1191 = vpop.f32.mrf.mxu0
        %v1192 = vpop.f32.mrf.mxu0
        %v1193 = vadd.f32 0.0, %v1192
        %v1194 = vpop.f32.mrf.mxu0
        %1195 = vmatprep.mubr.bf16.mxu0 0
        %1196 = vmatmul.mubr.bf16.gmra.mxu0 %v1048
        %v1197 = vpop.f32.mrf.mxu0
        %v1198 = vadd.f32 0.0, %v1197
        %v1199 = vpop.f32.mrf.mxu0
        %v1200 = vpop.f32.mrf.mxu0
        %v1201 = vadd.f32 0.0, %v1200
        %v1202 = vpop.f32.mrf.mxu0
        %1203 = vmatprep.mubr.bf16.mxu0 0
        %1204 = vmatmul.mubr.bf16.gmra.mxu0 %v1049
        %v1205 = vpop.f32.mrf.mxu0
        %v1206 = vadd.f32 0.0, %v1205
        %v1207 = vpop.f32.mrf.mxu0
        %v1208 = vpop.f32.mrf.mxu0
        %v1209 = vadd.f32 0.0, %v1208
        %v1210 = vpop.f32.mrf.mxu0
        %1211 = vmatprep.mubr.bf16.mxu0 0
        %1212 = vmatmul.mubr.bf16.gmra.mxu0 %v1050
        %v1213 = vpop.f32.mrf.mxu0
        %v1214 = vadd.f32 0.0, %v1213
        %v1215 = vpop.f32.mrf.mxu0
        %v1216 = vpop.f32.mrf.mxu0
        %v1217 = vadd.f32 0.0, %v1216
        %v1218 = vpop.f32.mrf.mxu0
        %1219 = vmatprep.mubr.bf16.mxu0 0
        %1220 = vmatmul.mubr.bf16.gmra.mxu0 %v1051
        %v1221 = vpop.f32.mrf.mxu0
        %v1222 = vadd.f32 0.0, %v1221
        %v1223 = vpop.f32.mrf.mxu0
        %v1224 = vpop.f32.mrf.mxu0
        %v1225 = vadd.f32 0.0, %v1224
        %v1226 = vpop.f32.mrf.mxu0
        %1227 = vmatprep.mubr.bf16.mxu0 0
        %1228 = vmatmul.mubr.bf16.gmra.mxu0 %v1052
        %v1229 = vpop.f32.mrf.mxu0
        %v1230 = vadd.f32 0.0, %v1229
        %v1231 = vpop.f32.mrf.mxu0
        %v1232 = vpop.f32.mrf.mxu0
        %v1233 = vadd.f32 0.0, %v1232
        %v1234 = vpop.f32.mrf.mxu0
        %1235 = vmatprep.mubr.bf16.mxu0 0
        %1236 = vmatmul.mubr.bf16.gmra.mxu0 %v1053
        %v1237 = vpop.f32.mrf.mxu0
        %v1238 = vadd.f32 0.0, %v1237
        %v1239 = vpop.f32.mrf.mxu0
        %v1240 = vpop.f32.mrf.mxu0
        %v1241 = vadd.f32 0.0, %v1240
        %v1242 = vpop.f32.mrf.mxu0
        %1243 = vmatprep.mubr.bf16.mxu0 0
        %1244 = vmatmul.mubr.bf16.gmra.mxu0 %v1054
        %v1245 = vpop.f32.mrf.mxu0
        %v1246 = vadd.f32 0.0, %v1245
        %v1247 = vpop.f32.mrf.mxu0
        %v1248 = vpop.f32.mrf.mxu0
        %v1249 = vadd.f32 0.0, %v1248
        %v1250 = vpop.f32.mrf.mxu0
        %1251 = vmatprep.mubr.bf16.mxu0 0
        %1252 = vmatmul.mubr.bf16.gmra.mxu0 %v1055
        %v1253 = vpop.f32.mrf.mxu0
        %v1254 = vadd.f32 0.0, %v1253
        %v1255 = vpop.f32.mrf.mxu0
        %v1256 = vpop.f32.mrf.mxu0
        %v1257 = vadd.f32 0.0, %v1256
        %v1258 = vpop.f32.mrf.mxu0
        %1259 = vmatprep.mubr.bf16.mxu0 0
        %1260 = vmatmul.mubr.bf16.gmra.mxu0 %v1056
        %v1261 = vpop.f32.mrf.mxu0
        %v1262 = vadd.f32 0.0, %v1261
        %v1263 = vpop.f32.mrf.mxu0
        %v1264 = vpop.f32.mrf.mxu0
        %v1265 = vadd.f32 0.0, %v1264
        %v1266 = vpop.f32.mrf.mxu0
        %1267 = vmatprep.mubr.bf16.mxu0 0
        %1268 = vmatmul.mubr.bf16.gmra.mxu0 %v1057
        %v1269 = vpop.f32.mrf.mxu0
        %v1270 = vadd.f32 0.0, %v1269
        %v1271 = vpop.f32.mrf.mxu0
        %v1272 = vpop.f32.mrf.mxu0
        %v1273 = vadd.f32 0.0, %v1272
        %v1274 = vpop.f32.mrf.mxu0
        %1275 = vmatprep.mubr.bf16.mxu0 0
        %1276 = vmatmul.mubr.bf16.gmra.mxu0 %v1058
        %v1277 = vpop.f32.mrf.mxu0
        %v1278 = vadd.f32 0.0, %v1277
        %v1279 = vpop.f32.mrf.mxu0
        %v1280 = vpop.f32.mrf.mxu0
        %v1281 = vadd.f32 0.0, %v1280
        %v1282 = vpop.f32.mrf.mxu0
        %1283 = vdwg.mxu0
        %v1317 = vunpack.c.l.b16 %v914
        %v1318 = vunpack.c.l.b16 %v915
        %v1319 = vunpack.c.l.b16 %v916
        %v1320 = vunpack.c.l.b16 %v917
        %v1321 = vunpack.c.l.b16 %v918
        %v1322 = vunpack.c.l.b16 %v919
        %v1323 = vunpack.c.l.b16 %v920
        %v1324 = vunpack.c.l.b16 %v921
        %v1325 = vunpack.c.l.b16 %v922
        %v1326 = vunpack.c.l.b16 %v923
        %v1327 = vunpack.c.l.b16 %v924
        %v1328 = vunpack.c.l.b16 %v925
        %v1329 = vunpack.c.l.b16 %v926
        %v1330 = vunpack.c.l.b16 %v927
        %v1331 = vunpack.c.l.b16 %v928
        %v1332 = vunpack.c.l.b16 %v929
        %v1333 = vunpack.c.l.b16 %v930
        %v1334 = vunpack.c.l.b16 %v931
        %v1335 = vunpack.c.l.b16 %v932
        %v1336 = vunpack.c.l.b16 %v933
        %v1337 = vunpack.c.l.b16 %v934
        %v1338 = vunpack.c.l.b16 %v935
        %v1339 = vunpack.c.l.b16 %v936
        %v1340 = vunpack.c.l.b16 %v937
        %v1341 = vunpack.c.l.b16 %v938
        %v1342 = vunpack.c.l.b16 %v939
        %v1343 = vunpack.c.l.b16 %v940
        %v1344 = vunpack.c.l.b16 %v941
        %v1345 = vunpack.c.l.b16 %v942
        %v1346 = vunpack.c.l.b16 %v943
        %v1347 = vunpack.c.l.b16 %v944
        %v1348 = vunpack.c.l.b16 %v945
        %v1349 = vunpack.c.l.b16 %v946
        %v1350 = vpack.c.b16 %v1318, %v1317
        %v1351 = vpack.c.b16 %v1320, %v1319
        %v1352 = vpack.c.b16 %v1322, %v1321
        %v1353 = vpack.c.b16 %v1324, %v1323
        %v1354 = vpack.c.b16 %v1326, %v1325
        %v1355 = vpack.c.b16 %v1328, %v1327
        %v1356 = vpack.c.b16 %v1330, %v1329
        %v1357 = vpack.c.b16 %v1332, %v1331
        %v1358 = vpack.c.b16 %v1334, %v1333
        %v1359 = vpack.c.b16 %v1336, %v1335
        %v1360 = vpack.c.b16 %v1338, %v1337
        %v1361 = vpack.c.b16 %v1340, %v1339
        %v1362 = vpack.c.b16 %v1342, %v1341
        %v1363 = vpack.c.b16 %v1344, %v1343
        %v1364 = vpack.c.b16 %v1346, %v1345
        %v1365 = vpack.c.b16 %v1348, %v1347
        %v1366 = vpack.c.b16 %v1349, %v1349
        %vm1367 = vsmask.f32 4352
        %v1369 = vshrl.u32 %v1350, 16
        %v1371 = vrot.slane %v1369, 3
        %v1372 = vshll.u32 %v1350, 16
        %v1374 = vrot.slane %v1372, 4
        %v1375 = vor.u32 %v1371, %v1374
        %v1377 = vshrl.u32 %v1351, 16
        %v1379 = vrot.slane %v1377, 3
        %v1380 = vshll.u32 %v1351, 16
        %v1382 = vrot.slane %v1380, 4
        %v1383 = vor.u32 %v1379, %v1382
        %v1384 = vsel %vm1367, %v1375, %v1383
        %v1386 = vshrl.u32 %v1352, 16
        %v1388 = vrot.slane %v1386, 3
        %v1389 = vshll.u32 %v1352, 16
        %v1391 = vrot.slane %v1389, 4
        %v1392 = vor.u32 %v1388, %v1391
        %v1393 = vsel %vm1367, %v1383, %v1392
        %v1395 = vshrl.u32 %v1353, 16
        %v1397 = vrot.slane %v1395, 3
        %v1398 = vshll.u32 %v1353, 16
        %v1400 = vrot.slane %v1398, 4
        %v1401 = vor.u32 %v1397, %v1400
        %v1402 = vsel %vm1367, %v1392, %v1401
        %v1404 = vshrl.u32 %v1354, 16
        %v1406 = vrot.slane %v1404, 3
        %v1407 = vshll.u32 %v1354, 16
        %v1409 = vrot.slane %v1407, 4
        %v1410 = vor.u32 %v1406, %v1409
        %v1411 = vsel %vm1367, %v1401, %v1410
        %v1413 = vshrl.u32 %v1355, 16
        %v1415 = vrot.slane %v1413, 3
        %v1416 = vshll.u32 %v1355, 16
        %v1418 = vrot.slane %v1416, 4
        %v1419 = vor.u32 %v1415, %v1418
        %v1420 = vsel %vm1367, %v1410, %v1419
        %v1422 = vshrl.u32 %v1356, 16
        %v1424 = vrot.slane %v1422, 3
        %v1425 = vshll.u32 %v1356, 16
        %v1427 = vrot.slane %v1425, 4
        %v1428 = vor.u32 %v1424, %v1427
        %v1429 = vsel %vm1367, %v1419, %v1428
        %v1431 = vshrl.u32 %v1357, 16
        %v1433 = vrot.slane %v1431, 3
        %v1434 = vshll.u32 %v1357, 16
        %v1436 = vrot.slane %v1434, 4
        %v1437 = vor.u32 %v1433, %v1436
        %v1438 = vsel %vm1367, %v1428, %v1437
        %v1440 = vshrl.u32 %v1358, 16
        %v1442 = vrot.slane %v1440, 3
        %v1443 = vshll.u32 %v1358, 16
        %v1445 = vrot.slane %v1443, 4
        %v1446 = vor.u32 %v1442, %v1445
        %v1447 = vsel %vm1367, %v1437, %v1446
        %v1449 = vshrl.u32 %v1359, 16
        %v1451 = vrot.slane %v1449, 3
        %v1452 = vshll.u32 %v1359, 16
        %v1454 = vrot.slane %v1452, 4
        %v1455 = vor.u32 %v1451, %v1454
        %v1456 = vsel %vm1367, %v1446, %v1455
        %v1458 = vshrl.u32 %v1360, 16
        %v1460 = vrot.slane %v1458, 3
        %v1461 = vshll.u32 %v1360, 16
        %v1463 = vrot.slane %v1461, 4
        %v1464 = vor.u32 %v1460, %v1463
        %v1465 = vsel %vm1367, %v1455, %v1464
        %v1467 = vshrl.u32 %v1361, 16
        %v1469 = vrot.slane %v1467, 3
        %v1470 = vshll.u32 %v1361, 16
        %v1472 = vrot.slane %v1470, 4
        %v1473 = vor.u32 %v1469, %v1472
        %v1474 = vsel %vm1367, %v1464, %v1473
        %v1476 = vshrl.u32 %v1362, 16
        %v1478 = vrot.slane %v1476, 3
        %v1479 = vshll.u32 %v1362, 16
        %v1481 = vrot.slane %v1479, 4
        %v1482 = vor.u32 %v1478, %v1481
        %v1483 = vsel %vm1367, %v1473, %v1482
        %v1485 = vshrl.u32 %v1363, 16
        %v1487 = vrot.slane %v1485, 3
        %v1488 = vshll.u32 %v1363, 16
        %v1490 = vrot.slane %v1488, 4
        %v1491 = vor.u32 %v1487, %v1490
        %v1492 = vsel %vm1367, %v1482, %v1491
        %v1494 = vshrl.u32 %v1364, 16
        %v1496 = vrot.slane %v1494, 3
        %v1497 = vshll.u32 %v1364, 16
        %v1499 = vrot.slane %v1497, 4
        %v1500 = vor.u32 %v1496, %v1499
        %v1501 = vsel %vm1367, %v1491, %v1500
        %v1503 = vshrl.u32 %v1365, 16
        %v1505 = vrot.slane %v1503, 3
        %v1506 = vshll.u32 %v1365, 16
        %v1508 = vrot.slane %v1506, 4
        %v1509 = vor.u32 %v1505, %v1508
        %v1510 = vsel %vm1367, %v1500, %v1509
        %v1512 = vshrl.u32 %v1366, 16
        %v1514 = vrot.slane %v1512, 3
        %v1515 = vshll.u32 %v1366, 16
        %v1517 = vrot.slane %v1515, 4
        %v1518 = vor.u32 %v1514, %v1517
        %v1519 = vsel %vm1367, %v1509, %v1518
        %v1552 = vunpack.c.l.b16 %v947
        %v1553 = vunpack.c.l.b16 %v948
        %v1554 = vunpack.c.l.b16 %v949
        %v1555 = vunpack.c.l.b16 %v950
        %v1556 = vunpack.c.l.b16 %v951
        %v1557 = vunpack.c.l.b16 %v952
        %v1558 = vunpack.c.l.b16 %v953
        %v1559 = vunpack.c.l.b16 %v954
        %v1560 = vunpack.c.l.b16 %v955
        %v1561 = vunpack.c.l.b16 %v956
        %v1562 = vunpack.c.l.b16 %v957
        %v1563 = vunpack.c.l.b16 %v958
        %v1564 = vunpack.c.l.b16 %v959
        %v1565 = vunpack.c.l.b16 %v960
        %v1566 = vunpack.c.l.b16 %v961
        %v1567 = vunpack.c.l.b16 %v962
        %v1568 = vpack.c.b16 %v1553, %v1552
        %v1569 = vpack.c.b16 %v1555, %v1554
        %v1570 = vpack.c.b16 %v1557, %v1556
        %v1571 = vpack.c.b16 %v1559, %v1558
        %v1572 = vpack.c.b16 %v1561, %v1560
        %v1573 = vpack.c.b16 %v1563, %v1562
        %v1574 = vpack.c.b16 %v1565, %v1564
        %v1575 = vpack.c.b16 %v1567, %v1566
        %1584 = vmatprep.subr.bf16.mxu0 0
        %1585 = vmatpush1.bf16.msra.mxu0 %v1575
        %1586 = vmatprep.subr.bf16.mxu0 0
        %1587 = vmatpush1.bf16.msra.mxu0 %v1574
        %1588 = vmatprep.subr.bf16.mxu0 0
        %1589 = vmatpush1.bf16.msra.mxu0 %v1573
        %1590 = vmatprep.subr.bf16.mxu0 0
        %1591 = vmatpush1.bf16.msra.mxu0 %v1572
        %1592 = vmatprep.subr.bf16.mxu0 0
        %1593 = vmatpush1.bf16.msra.mxu0 %v1571
        %1594 = vmatprep.subr.bf16.mxu0 0
        %1595 = vmatpush1.bf16.msra.mxu0 %v1570
        %1596 = vmatprep.subr.bf16.mxu0 0
        %1597 = vmatpush1.bf16.msra.mxu0 %v1569
        %1598 = vmatprep.subr.bf16.mxu0 0
        %1599 = vmatpush1.bf16.msra.mxu0 %v1568
        %1600 = vmatprep.subr.bf16.mxu0 0
        %1601 = vmatpush2.bf16.msra.mxu0 0
        %1602 = vmatprep.subr.bf16.mxu0 0
        %1603 = vmatpush2.bf16.msra.mxu0 0
        %1604 = vmatprep.subr.bf16.mxu0 0
        %1605 = vmatpush2.bf16.msra.mxu0 0
        %1606 = vmatprep.subr.bf16.mxu0 0
        %1607 = vmatpush2.bf16.msra.mxu0 0
        %1608 = vmatprep.subr.bf16.mxu0 0
        %1609 = vmatpush2.bf16.msra.mxu0 0
        %1610 = vmatprep.subr.bf16.mxu0 0
        %1611 = vmatpush2.bf16.msra.mxu0 0
        %1612 = vmatprep.subr.bf16.mxu0 0
        %1613 = vmatpush2.bf16.msra.mxu0 0
        %1614 = vmatprep.subr.bf16.mxu0 0
        %1615 = vmatpush2.bf16.msra.mxu0 0
        %1616 = vmatprep.mubr.bf16.mxu0 0
        %1617 = vmatmul.mubr.bf16.gmra.mxu0 %v1384
        %v1618 = vpop.f32.mrf.mxu0
        %v1619 = vadd.f32 %v1158, %v1618
        %v1620 = vpop.f32.mrf.mxu0
        %v1621 = vpop.f32.mrf.mxu0
        %v1622 = vadd.f32 %v1161, %v1621
        %v1623 = vpop.f32.mrf.mxu0
        %1624 = vmatprep.mubr.bf16.mxu0 0
        %1625 = vmatmul.mubr.bf16.gmra.mxu0 %v1393
        %v1626 = vpop.f32.mrf.mxu0
        %v1627 = vadd.f32 %v1166, %v1626
        %v1628 = vpop.f32.mrf.mxu0
        %v1629 = vpop.f32.mrf.mxu0
        %v1630 = vadd.f32 %v1169, %v1629
        %v1631 = vpop.f32.mrf.mxu0
        %1632 = vmatprep.mubr.bf16.mxu0 0
        %1633 = vmatmul.mubr.bf16.gmra.mxu0 %v1402
        %v1634 = vpop.f32.mrf.mxu0
        %v1635 = vadd.f32 %v1174, %v1634
        %v1636 = vpop.f32.mrf.mxu0
        %v1637 = vpop.f32.mrf.mxu0
        %v1638 = vadd.f32 %v1177, %v1637
        %v1639 = vpop.f32.mrf.mxu0
        %1640 = vmatprep.mubr.bf16.mxu0 0
        %1641 = vmatmul.mubr.bf16.gmra.mxu0 %v1411
        %v1642 = vpop.f32.mrf.mxu0
        %v1643 = vadd.f32 %v1182, %v1642
        %v1644 = vpop.f32.mrf.mxu0
        %v1645 = vpop.f32.mrf.mxu0
        %v1646 = vadd.f32 %v1185, %v1645
        %v1647 = vpop.f32.mrf.mxu0
        %1648 = vmatprep.mubr.bf16.mxu0 0
        %1649 = vmatmul.mubr.bf16.gmra.mxu0 %v1420
        %v1650 = vpop.f32.mrf.mxu0
        %v1651 = vadd.f32 %v1190, %v1650
        %v1652 = vpop.f32.mrf.mxu0
        %v1653 = vpop.f32.mrf.mxu0
        %v1654 = vadd.f32 %v1193, %v1653
        %v1655 = vpop.f32.mrf.mxu0
        %1656 = vmatprep.mubr.bf16.mxu0 0
        %1657 = vmatmul.mubr.bf16.gmra.mxu0 %v1429
        %v1658 = vpop.f32.mrf.mxu0
        %v1659 = vadd.f32 %v1198, %v1658
        %v1660 = vpop.f32.mrf.mxu0
        %v1661 = vpop.f32.mrf.mxu0
        %v1662 = vadd.f32 %v1201, %v1661
        %v1663 = vpop.f32.mrf.mxu0
        %1664 = vmatprep.mubr.bf16.mxu0 0
        %1665 = vmatmul.mubr.bf16.gmra.mxu0 %v1438
        %v1666 = vpop.f32.mrf.mxu0
        %v1667 = vadd.f32 %v1206, %v1666
        %v1668 = vpop.f32.mrf.mxu0
        %v1669 = vpop.f32.mrf.mxu0
        %v1670 = vadd.f32 %v1209, %v1669
        %v1671 = vpop.f32.mrf.mxu0
        %1672 = vmatprep.mubr.bf16.mxu0 0
        %1673 = vmatmul.mubr.bf16.gmra.mxu0 %v1447
        %v1674 = vpop.f32.mrf.mxu0
        %v1675 = vadd.f32 %v1214, %v1674
        %v1676 = vpop.f32.mrf.mxu0
        %v1677 = vpop.f32.mrf.mxu0
        %v1678 = vadd.f32 %v1217, %v1677
        %v1679 = vpop.f32.mrf.mxu0
        %1680 = vmatprep.mubr.bf16.mxu0 0
        %1681 = vmatmul.mubr.bf16.gmra.mxu0 %v1456
        %v1682 = vpop.f32.mrf.mxu0
        %v1683 = vadd.f32 %v1222, %v1682
        %v1684 = vpop.f32.mrf.mxu0
        %v1685 = vpop.f32.mrf.mxu0
        %v1686 = vadd.f32 %v1225, %v1685
        %v1687 = vpop.f32.mrf.mxu0
        %1688 = vmatprep.mubr.bf16.mxu0 0
        %1689 = vmatmul.mubr.bf16.gmra.mxu0 %v1465
        %v1690 = vpop.f32.mrf.mxu0
        %v1691 = vadd.f32 %v1230, %v1690
        %v1692 = vpop.f32.mrf.mxu0
        %v1693 = vpop.f32.mrf.mxu0
        %v1694 = vadd.f32 %v1233, %v1693
        %v1695 = vpop.f32.mrf.mxu0
        %1696 = vmatprep.mubr.bf16.mxu0 0
        %1697 = vmatmul.mubr.bf16.gmra.mxu0 %v1474
        %v1698 = vpop.f32.mrf.mxu0
        %v1699 = vadd.f32 %v1238, %v1698
        %v1700 = vpop.f32.mrf.mxu0
        %v1701 = vpop.f32.mrf.mxu0
        %v1702 = vadd.f32 %v1241, %v1701
        %v1703 = vpop.f32.mrf.mxu0
        %1704 = vmatprep.mubr.bf16.mxu0 0
        %1705 = vmatmul.mubr.bf16.gmra.mxu0 %v1483
        %v1706 = vpop.f32.mrf.mxu0
        %v1707 = vadd.f32 %v1246, %v1706
        %v1708 = vpop.f32.mrf.mxu0
        %v1709 = vpop.f32.mrf.mxu0
        %v1710 = vadd.f32 %v1249, %v1709
        %v1711 = vpop.f32.mrf.mxu0
        %1712 = vmatprep.mubr.bf16.mxu0 0
        %1713 = vmatmul.mubr.bf16.gmra.mxu0 %v1492
        %v1714 = vpop.f32.mrf.mxu0
        %v1715 = vadd.f32 %v1254, %v1714
        %v1716 = vpop.f32.mrf.mxu0
        %v1717 = vpop.f32.mrf.mxu0
        %v1718 = vadd.f32 %v1257, %v1717
        %v1719 = vpop.f32.mrf.mxu0
        %1720 = vmatprep.mubr.bf16.mxu0 0
        %1721 = vmatmul.mubr.bf16.gmra.mxu0 %v1501
        %v1722 = vpop.f32.mrf.mxu0
        %v1723 = vadd.f32 %v1262, %v1722
        %v1724 = vpop.f32.mrf.mxu0
        %v1725 = vpop.f32.mrf.mxu0
        %v1726 = vadd.f32 %v1265, %v1725
        %v1727 = vpop.f32.mrf.mxu0
        %1728 = vmatprep.mubr.bf16.mxu0 0
        %1729 = vmatmul.mubr.bf16.gmra.mxu0 %v1510
        %v1730 = vpop.f32.mrf.mxu0
        %v1731 = vadd.f32 %v1270, %v1730
        %v1732 = vpop.f32.mrf.mxu0
        %v1733 = vpop.f32.mrf.mxu0
        %v1734 = vadd.f32 %v1273, %v1733
        %v1735 = vpop.f32.mrf.mxu0
        %1736 = vmatprep.mubr.bf16.mxu0 0
        %1737 = vmatmul.mubr.bf16.gmra.mxu0 %v1519
        %v1738 = vpop.f32.mrf.mxu0
        %v1739 = vadd.f32 %v1278, %v1738
        %v1740 = vpop.f32.mrf.mxu0
        %v1741 = vpop.f32.mrf.mxu0
        %v1742 = vadd.f32 %v1281, %v1741
        %v1743 = vpop.f32.mrf.mxu0
        %1744 = vdwg.mxu0
        %v1745 = vld [vmem:[#allocation2 + $0x8] sm:$0xf]
        %v1746 = vld [vmem:[#allocation2 + $0xc] sm:$0xf]
        %v1747 = vld [vmem:[#allocation2 + $0x10] sm:$0xf]
        %v1748 = vld [vmem:[#allocation2 + $0x14] sm:$0xf]
        %v1749 = vld [vmem:[#allocation2 + $0x18] sm:$0xf]
        %v1750 = vld [vmem:[#allocation2 + $0x1c] sm:$0xf]
        %v1751 = vld [vmem:[#allocation2 + $0x20] sm:$0xf]
        %v1752 = vld [vmem:[#allocation2 + $0x24] sm:$0xf]
        %v1753 = vld [vmem:[#allocation2 + $0x28] sm:$0xf]
        %v1754 = vld [vmem:[#allocation2 + $0x2c] sm:$0xf]
        %v1755 = vld [vmem:[#allocation2 + $0x30] sm:$0xf]
        %v1756 = vld [vmem:[#allocation2 + $0x34] sm:$0xf]
        %v1757 = vld [vmem:[#allocation2 + $0x38] sm:$0xf]
        %v1758 = vld [vmem:[#allocation2 + $0x3c] sm:$0xf]
        %v1759 = vld [vmem:[#allocation2 + $0x40] sm:$0xf]
        %v1760 = vld [vmem:[#allocation2 + $0x44] sm:$0xf]
        %v1761 = vld [vmem:[#allocation2 + $0x48] sm:$0xf]
        %v1762 = vld [vmem:[#allocation2 + $0x4c] sm:$0xf]
        %v1763 = vld [vmem:[#allocation2 + $0x50] sm:$0xf]
        %v1764 = vld [vmem:[#allocation2 + $0x54] sm:$0xf]
        %v1765 = vld [vmem:[#allocation2 + $0x58] sm:$0xf]
        %v1766 = vld [vmem:[#allocation2 + $0x5c] sm:$0xf]
        %v1767 = vld [vmem:[#allocation2 + $0x60] sm:$0xf]
        %v1768 = vld [vmem:[#allocation2 + $0x64] sm:$0xf]
        %v1769 = vld [vmem:[#allocation2 + $0x68] sm:$0xf]
        %v1770 = vld [vmem:[#allocation2 + $0x6c] sm:$0xf]
        %v1771 = vld [vmem:[#allocation2 + $0x70] sm:$0xf]
        %v1772 = vld [vmem:[#allocation2 + $0x74] sm:$0xf]
        %v1773 = vld [vmem:[#allocation2 + $0x78] sm:$0xf]
        %v1774 = vld [vmem:[#allocation2 + $0x7c] sm:$0xf]
        %v1775 = vld [vmem:[#allocation2 + $0x80] sm:$0xf]
        %v1776 = vld [vmem:[#allocation2 + $0x84] sm:$0xf]
        %v1777 = vld [vmem:[#allocation2 + $0x88] sm:$0x1]
        %v1780 = vunpack.c.l.s4 839922192
        %v1781 = vunpack.c.0.s8 %v1780
        %v1782 = vlaneseq
        %v1783 = vshrl.u32 %v1782, 7
        %v1784 = vsub.s32 %v1781, %v1783
        %v1785 = vrot.slane %v838, %v1784
        %v1787 = vunpack.c.l.s4 1985246804
        %v1788 = vunpack.c.0.s8 %v1787
        %v1789 = vlaneseq
        %v1790 = vshrl.u32 %v1789, 7
        %v1791 = vsub.s32 %v1788, %v1790
        %v1792 = vrot.slane %v838, %v1791
        %vm1793 = vsmask.f32 256
        %vm1794 = vsmask.f32 4368
        %vm1795 = vmor %vm1793, %vm1794
        %v1797 = vshrl.u32 %v1785, 16
        %v1799 = vrot.slane %v1797, 7
        %v1800 = vshll.u32 %v1785, 16
        %v1802 = vor.u32 %v1799, %v1800
        %v1803 = vrot.slane %v1799, 4
        %v1805 = vshrl.u32 %v1792, 16
        %v1807 = vrot.slane %v1805, 7
        %v1808 = vshll.u32 %v1792, 16
        %v1810 = vor.u32 %v1807, %v1808
        %v1811 = vsel %vm1795, %v1803, %v1810
        %v1812 = vrot.slane %v1807, 4
        %v1813 = vsel %vm1795, %v1812, %v1802
        %v1818 = vmul.bf16 %v1745, %v1802
        %v1819 = vmul.bf16 %v1746, %v1811
        %v1820 = vmul.bf16 %v1747, %v1813
        %v1821 = vmul.bf16 %v1748, %v1811
        %v1822 = vmul.bf16 %v1749, %v1813
        %v1823 = vmul.bf16 %v1750, %v1811
        %v1824 = vmul.bf16 %v1751, %v1813
        %v1825 = vmul.bf16 %v1752, %v1811
        %v1826 = vmul.bf16 %v1753, %v1813
        %v1827 = vmul.bf16 %v1754, %v1811
        %v1828 = vmul.bf16 %v1755, %v1813
        %v1829 = vmul.bf16 %v1756, %v1811
        %v1830 = vmul.bf16 %v1757, %v1813
        %v1831 = vmul.bf16 %v1758, %v1811
        %v1832 = vmul.bf16 %v1759, %v1813
        %v1833 = vmul.bf16 %v1760, %v1811
        %v1834 = vmul.bf16 %v1761, %v1813
        %v1835 = vmul.bf16 %v1762, %v1811
        %v1836 = vmul.bf16 %v1763, %v1813
        %v1837 = vmul.bf16 %v1764, %v1811
        %v1838 = vmul.bf16 %v1765, %v1813
        %v1839 = vmul.bf16 %v1766, %v1811
        %v1840 = vmul.bf16 %v1767, %v1813
        %v1841 = vmul.bf16 %v1768, %v1811
        %v1842 = vmul.bf16 %v1769, %v1813
        %v1843 = vmul.bf16 %v1770, %v1811
        %v1844 = vmul.bf16 %v1771, %v1813
        %v1845 = vmul.bf16 %v1772, %v1811
        %v1846 = vmul.bf16 %v1773, %v1813
        %v1847 = vmul.bf16 %v1774, %v1811
        %v1848 = vmul.bf16 %v1775, %v1813
        %v1849 = vmul.bf16 %v1776, %v1811
        %v1850 = vmul.bf16 %v1777, %v1812
        %v1851 = vld [vmem:[#allocation8 + $0x80] sm:$0xf]
        %v1852 = vld [vmem:[#allocation8 + $0x84] sm:$0xf]
        %v1853 = vld [vmem:[#allocation8 + $0x88] sm:$0xf]
        %v1854 = vld [vmem:[#allocation8 + $0x8c] sm:$0xf]
        %v1855 = vld [vmem:[#allocation8 + $0x90] sm:$0xf]
        %v1856 = vld [vmem:[#allocation8 + $0x94] sm:$0xf]
        %v1857 = vld [vmem:[#allocation8 + $0x98] sm:$0xf]
        %v1858 = vld [vmem:[#allocation8 + $0x9c] sm:$0xf]
        %v1859 = vld [vmem:[#allocation8 + $0xa0] sm:$0xf]
        %v1860 = vld [vmem:[#allocation8 + $0xa4] sm:$0xf]
        %v1861 = vld [vmem:[#allocation8 + $0xa8] sm:$0xf]
        %v1862 = vld [vmem:[#allocation8 + $0xac] sm:$0xf]
        %v1863 = vld [vmem:[#allocation8 + $0xb0] sm:$0xf]
        %v1864 = vld [vmem:[#allocation8 + $0xb4] sm:$0xf]
        %v1865 = vld [vmem:[#allocation8 + $0xb8] sm:$0xf]
        %v1866 = vld [vmem:[#allocation8 + $0xbc] sm:$0xf]
        %v1900 = vunpack.c.l.b16 %v1818
        %v1901 = vunpack.c.l.b16 %v1819
        %v1902 = vunpack.c.l.b16 %v1820
        %v1903 = vunpack.c.l.b16 %v1821
        %v1904 = vunpack.c.l.b16 %v1822
        %v1905 = vunpack.c.l.b16 %v1823
        %v1906 = vunpack.c.l.b16 %v1824
        %v1907 = vunpack.c.l.b16 %v1825
        %v1908 = vunpack.c.l.b16 %v1826
        %v1909 = vunpack.c.l.b16 %v1827
        %v1910 = vunpack.c.l.b16 %v1828
        %v1911 = vunpack.c.l.b16 %v1829
        %v1912 = vunpack.c.l.b16 %v1830
        %v1913 = vunpack.c.l.b16 %v1831
        %v1914 = vunpack.c.l.b16 %v1832
        %v1915 = vunpack.c.l.b16 %v1833
        %v1916 = vunpack.c.l.b16 %v1834
        %v1917 = vunpack.c.l.b16 %v1835
        %v1918 = vunpack.c.l.b16 %v1836
        %v1919 = vunpack.c.l.b16 %v1837
        %v1920 = vunpack.c.l.b16 %v1838
        %v1921 = vunpack.c.l.b16 %v1839
        %v1922 = vunpack.c.l.b16 %v1840
        %v1923 = vunpack.c.l.b16 %v1841
        %v1924 = vunpack.c.l.b16 %v1842
        %v1925 = vunpack.c.l.b16 %v1843
        %v1926 = vunpack.c.l.b16 %v1844
        %v1927 = vunpack.c.l.b16 %v1845
        %v1928 = vunpack.c.l.b16 %v1846
        %v1929 = vunpack.c.l.b16 %v1847
        %v1930 = vunpack.c.l.b16 %v1848
        %v1931 = vunpack.c.l.b16 %v1849
        %v1932 = vunpack.c.l.b16 %v1850
        %v1933 = vpack.c.b16 %v1901, %v1900
        %v1934 = vpack.c.b16 %v1903, %v1902
        %v1935 = vpack.c.b16 %v1905, %v1904
        %v1936 = vpack.c.b16 %v1907, %v1906
        %v1937 = vpack.c.b16 %v1909, %v1908
        %v1938 = vpack.c.b16 %v1911, %v1910
        %v1939 = vpack.c.b16 %v1913, %v1912
        %v1940 = vpack.c.b16 %v1915, %v1914
        %v1941 = vpack.c.b16 %v1917, %v1916
        %v1942 = vpack.c.b16 %v1919, %v1918
        %v1943 = vpack.c.b16 %v1921, %v1920
        %v1944 = vpack.c.b16 %v1923, %v1922
        %v1945 = vpack.c.b16 %v1925, %v1924
        %v1946 = vpack.c.b16 %v1927, %v1926
        %v1947 = vpack.c.b16 %v1929, %v1928
        %v1948 = vpack.c.b16 %v1931, %v1930
        %v1949 = vpack.c.b16 %v1932, %v1932
        %vm1950 = vsmask.f32 7424
        %v1952 = vshrl.u32 %v1933, 16
        %v1954 = vshll.u32 %v1933, 16
        %v1956 = vrot.slane %v1954, 1
        %v1957 = vor.u32 %v1952, %v1956
        %v1959 = vshll.u32 %v1934, 16
        %v1961 = vrot.slane %v1959, 1
        %v1962 = vsel %vm1950, %v1957, %v1961
        %v1963 = vshrl.u32 %v1934, 16
        %v1965 = vor.u32 %v1963, %v1961
        %v1967 = vshll.u32 %v1935, 16
        %v1969 = vrot.slane %v1967, 1
        %v1970 = vsel %vm1950, %v1965, %v1969
        %v1971 = vshrl.u32 %v1935, 16
        %v1973 = vor.u32 %v1971, %v1969
        %v1975 = vshll.u32 %v1936, 16
        %v1977 = vrot.slane %v1975, 1
        %v1978 = vsel %vm1950, %v1973, %v1977
        %v1979 = vshrl.u32 %v1936, 16
        %v1981 = vor.u32 %v1979, %v1977
        %v1983 = vshll.u32 %v1937, 16
        %v1985 = vrot.slane %v1983, 1
        %v1986 = vsel %vm1950, %v1981, %v1985
        %v1987 = vshrl.u32 %v1937, 16
        %v1989 = vor.u32 %v1987, %v1985
        %v1991 = vshll.u32 %v1938, 16
        %v1993 = vrot.slane %v1991, 1
        %v1994 = vsel %vm1950, %v1989, %v1993
        %v1995 = vshrl.u32 %v1938, 16
        %v1997 = vor.u32 %v1995, %v1993
        %v1999 = vshll.u32 %v1939, 16
        %v2001 = vrot.slane %v1999, 1
        %v2002 = vsel %vm1950, %v1997, %v2001
        %v2003 = vshrl.u32 %v1939, 16
        %v2005 = vor.u32 %v2003, %v2001
        %v2007 = vshll.u32 %v1940, 16
        %v2009 = vrot.slane %v2007, 1
        %v2010 = vsel %vm1950, %v2005, %v2009
        %v2011 = vshrl.u32 %v1940, 16
        %v2013 = vor.u32 %v2011, %v2009
        %v2015 = vshll.u32 %v1941, 16
        %v2017 = vrot.slane %v2015, 1
        %v2018 = vsel %vm1950, %v2013, %v2017
        %v2019 = vshrl.u32 %v1941, 16
        %v2021 = vor.u32 %v2019, %v2017
        %v2023 = vshll.u32 %v1942, 16
        %v2025 = vrot.slane %v2023, 1
        %v2026 = vsel %vm1950, %v2021, %v2025
        %v2027 = vshrl.u32 %v1942, 16
        %v2029 = vor.u32 %v2027, %v2025
        %v2031 = vshll.u32 %v1943, 16
        %v2033 = vrot.slane %v2031, 1
        %v2034 = vsel %vm1950, %v2029, %v2033
        %v2035 = vshrl.u32 %v1943, 16
        %v2037 = vor.u32 %v2035, %v2033
        %v2039 = vshll.u32 %v1944, 16
        %v2041 = vrot.slane %v2039, 1
        %v2042 = vsel %vm1950, %v2037, %v2041
        %v2043 = vshrl.u32 %v1944, 16
        %v2045 = vor.u32 %v2043, %v2041
        %v2047 = vshll.u32 %v1945, 16
        %v2049 = vrot.slane %v2047, 1
        %v2050 = vsel %vm1950, %v2045, %v2049
        %v2051 = vshrl.u32 %v1945, 16
        %v2053 = vor.u32 %v2051, %v2049
        %v2055 = vshll.u32 %v1946, 16
        %v2057 = vrot.slane %v2055, 1
        %v2058 = vsel %vm1950, %v2053, %v2057
        %v2059 = vshrl.u32 %v1946, 16
        %v2061 = vor.u32 %v2059, %v2057
        %v2063 = vshll.u32 %v1947, 16
        %v2065 = vrot.slane %v2063, 1
        %v2066 = vsel %vm1950, %v2061, %v2065
        %v2067 = vshrl.u32 %v1947, 16
        %v2069 = vor.u32 %v2067, %v2065
        %v2071 = vshll.u32 %v1948, 16
        %v2073 = vrot.slane %v2071, 1
        %v2074 = vsel %vm1950, %v2069, %v2073
        %v2075 = vshrl.u32 %v1948, 16
        %v2077 = vor.u32 %v2075, %v2073
        %v2079 = vshll.u32 %v1949, 16
        %v2081 = vrot.slane %v2079, 1
        %v2082 = vsel %vm1950, %v2077, %v2081
        %v2115 = vunpack.c.l.b16 %v1851
        %v2116 = vunpack.c.l.b16 %v1852
        %v2117 = vunpack.c.l.b16 %v1853
        %v2118 = vunpack.c.l.b16 %v1854
        %v2119 = vunpack.c.l.b16 %v1855
        %v2120 = vunpack.c.l.b16 %v1856
        %v2121 = vunpack.c.l.b16 %v1857
        %v2122 = vunpack.c.l.b16 %v1858
        %v2123 = vunpack.c.l.b16 %v1859
        %v2124 = vunpack.c.l.b16 %v1860
        %v2125 = vunpack.c.l.b16 %v1861
        %v2126 = vunpack.c.l.b16 %v1862
        %v2127 = vunpack.c.l.b16 %v1863
        %v2128 = vunpack.c.l.b16 %v1864
        %v2129 = vunpack.c.l.b16 %v1865
        %v2130 = vunpack.c.l.b16 %v1866
        %v2131 = vpack.c.b16 %v2116, %v2115
        %v2132 = vpack.c.b16 %v2118, %v2117
        %v2133 = vpack.c.b16 %v2120, %v2119
        %v2134 = vpack.c.b16 %v2122, %v2121
        %v2135 = vpack.c.b16 %v2124, %v2123
        %v2136 = vpack.c.b16 %v2126, %v2125
        %v2137 = vpack.c.b16 %v2128, %v2127
        %v2138 = vpack.c.b16 %v2130, %v2129
        %2147 = vmatprep.subr.bf16.mxu0 0
        %2148 = vmatpush1.bf16.msra.mxu0 %v2138
        %2149 = vmatprep.subr.bf16.mxu0 0
        %2150 = vmatpush1.bf16.msra.mxu0 %v2137
        %2151 = vmatprep.subr.bf16.mxu0 0
        %2152 = vmatpush1.bf16.msra.mxu0 %v2136
        %2153 = vmatprep.subr.bf16.mxu0 0
        %2154 = vmatpush1.bf16.msra.mxu0 %v2135
        %2155 = vmatprep.subr.bf16.mxu0 0
        %2156 = vmatpush1.bf16.msra.mxu0 %v2134
        %2157 = vmatprep.subr.bf16.mxu0 0
        %2158 = vmatpush1.bf16.msra.mxu0 %v2133
        %2159 = vmatprep.subr.bf16.mxu0 0
        %2160 = vmatpush1.bf16.msra.mxu0 %v2132
        %2161 = vmatprep.subr.bf16.mxu0 0
        %2162 = vmatpush1.bf16.msra.mxu0 %v2131
        %2163 = vmatprep.subr.bf16.mxu0 0
        %2164 = vmatpush2.bf16.msra.mxu0 0
        %2165 = vmatprep.subr.bf16.mxu0 0
        %2166 = vmatpush2.bf16.msra.mxu0 0
        %2167 = vmatprep.subr.bf16.mxu0 0
        %2168 = vmatpush2.bf16.msra.mxu0 0
        %2169 = vmatprep.subr.bf16.mxu0 0
        %2170 = vmatpush2.bf16.msra.mxu0 0
        %2171 = vmatprep.subr.bf16.mxu0 0
        %2172 = vmatpush2.bf16.msra.mxu0 0
        %2173 = vmatprep.subr.bf16.mxu0 0
        %2174 = vmatpush2.bf16.msra.mxu0 0
        %2175 = vmatprep.subr.bf16.mxu0 0
        %2176 = vmatpush2.bf16.msra.mxu0 0
        %2177 = vmatprep.subr.bf16.mxu0 0
        %2178 = vmatpush2.bf16.msra.mxu0 0
        %2179 = vmatprep.mubr.bf16.mxu0 0
        %2180 = vmatmul.mubr.bf16.gmra.mxu0 %v1962
        %v2181 = vpop.f32.mrf.mxu0
        %v2182 = vadd.f32 0.0, %v2181
        %v2183 = vpop.f32.mrf.mxu0
        %v2184 = vpop.f32.mrf.mxu0
        %v2185 = vadd.f32 0.0, %v2184
        %v2186 = vpop.f32.mrf.mxu0
        %2187 = vmatprep.mubr.bf16.mxu0 0
        %2188 = vmatmul.mubr.bf16.gmra.mxu0 %v1970
        %v2189 = vpop.f32.mrf.mxu0
        %v2190 = vadd.f32 0.0, %v2189
        %v2191 = vpop.f32.mrf.mxu0
        %v2192 = vpop.f32.mrf.mxu0
        %v2193 = vadd.f32 0.0, %v2192
        %v2194 = vpop.f32.mrf.mxu0
        %2195 = vmatprep.mubr.bf16.mxu0 0
        %2196 = vmatmul.mubr.bf16.gmra.mxu0 %v1978
        %v2197 = vpop.f32.mrf.mxu0
        %v2198 = vadd.f32 0.0, %v2197
        %v2199 = vpop.f32.mrf.mxu0
        %v2200 = vpop.f32.mrf.mxu0
        %v2201 = vadd.f32 0.0, %v2200
        %v2202 = vpop.f32.mrf.mxu0
        %2203 = vmatprep.mubr.bf16.mxu0 0
        %2204 = vmatmul.mubr.bf16.gmra.mxu0 %v1986
        %v2205 = vpop.f32.mrf.mxu0
        %v2206 = vadd.f32 0.0, %v2205
        %v2207 = vpop.f32.mrf.mxu0
        %v2208 = vpop.f32.mrf.mxu0
        %v2209 = vadd.f32 0.0, %v2208
        %v2210 = vpop.f32.mrf.mxu0
        %2211 = vmatprep.mubr.bf16.mxu0 0
        %2212 = vmatmul.mubr.bf16.gmra.mxu0 %v1994
        %v2213 = vpop.f32.mrf.mxu0
        %v2214 = vadd.f32 0.0, %v2213
        %v2215 = vpop.f32.mrf.mxu0
        %v2216 = vpop.f32.mrf.mxu0
        %v2217 = vadd.f32 0.0, %v2216
        %v2218 = vpop.f32.mrf.mxu0
        %2219 = vmatprep.mubr.bf16.mxu0 0
        %2220 = vmatmul.mubr.bf16.gmra.mxu0 %v2002
        %v2221 = vpop.f32.mrf.mxu0
        %v2222 = vadd.f32 0.0, %v2221
        %v2223 = vpop.f32.mrf.mxu0
        %v2224 = vpop.f32.mrf.mxu0
        %v2225 = vadd.f32 0.0, %v2224
        %v2226 = vpop.f32.mrf.mxu0
        %2227 = vmatprep.mubr.bf16.mxu0 0
        %2228 = vmatmul.mubr.bf16.gmra.mxu0 %v2010
        %v2229 = vpop.f32.mrf.mxu0
        %v2230 = vadd.f32 0.0, %v2229
        %v2231 = vpop.f32.mrf.mxu0
        %v2232 = vpop.f32.mrf.mxu0
        %v2233 = vadd.f32 0.0, %v2232
        %v2234 = vpop.f32.mrf.mxu0
        %2235 = vmatprep.mubr.bf16.mxu0 0
        %2236 = vmatmul.mubr.bf16.gmra.mxu0 %v2018
        %v2237 = vpop.f32.mrf.mxu0
        %v2238 = vadd.f32 0.0, %v2237
        %v2239 = vpop.f32.mrf.mxu0
        %v2240 = vpop.f32.mrf.mxu0
        %v2241 = vadd.f32 0.0, %v2240
        %v2242 = vpop.f32.mrf.mxu0
        %2243 = vmatprep.mubr.bf16.mxu0 0
        %2244 = vmatmul.mubr.bf16.gmra.mxu0 %v2026
        %v2245 = vpop.f32.mrf.mxu0
        %v2246 = vadd.f32 0.0, %v2245
        %v2247 = vpop.f32.mrf.mxu0
        %v2248 = vpop.f32.mrf.mxu0
        %v2249 = vadd.f32 0.0, %v2248
        %v2250 = vpop.f32.mrf.mxu0
        %2251 = vmatprep.mubr.bf16.mxu0 0
        %2252 = vmatmul.mubr.bf16.gmra.mxu0 %v2034
        %v2253 = vpop.f32.mrf.mxu0
        %v2254 = vadd.f32 0.0, %v2253
        %v2255 = vpop.f32.mrf.mxu0
        %v2256 = vpop.f32.mrf.mxu0
        %v2257 = vadd.f32 0.0, %v2256
        %v2258 = vpop.f32.mrf.mxu0
        %2259 = vmatprep.mubr.bf16.mxu0 0
        %2260 = vmatmul.mubr.bf16.gmra.mxu0 %v2042
        %v2261 = vpop.f32.mrf.mxu0
        %v2262 = vadd.f32 0.0, %v2261
        %v2263 = vpop.f32.mrf.mxu0
        %v2264 = vpop.f32.mrf.mxu0
        %v2265 = vadd.f32 0.0, %v2264
        %v2266 = vpop.f32.mrf.mxu0
        %2267 = vmatprep.mubr.bf16.mxu0 0
        %2268 = vmatmul.mubr.bf16.gmra.mxu0 %v2050
        %v2269 = vpop.f32.mrf.mxu0
        %v2270 = vadd.f32 0.0, %v2269
        %v2271 = vpop.f32.mrf.mxu0
        %v2272 = vpop.f32.mrf.mxu0
        %v2273 = vadd.f32 0.0, %v2272
        %v2274 = vpop.f32.mrf.mxu0
        %2275 = vmatprep.mubr.bf16.mxu0 0
        %2276 = vmatmul.mubr.bf16.gmra.mxu0 %v2058
        %v2277 = vpop.f32.mrf.mxu0
        %v2278 = vadd.f32 0.0, %v2277
        %v2279 = vpop.f32.mrf.mxu0
        %v2280 = vpop.f32.mrf.mxu0
        %v2281 = vadd.f32 0.0, %v2280
        %v2282 = vpop.f32.mrf.mxu0
        %2283 = vmatprep.mubr.bf16.mxu0 0
        %2284 = vmatmul.mubr.bf16.gmra.mxu0 %v2066
        %v2285 = vpop.f32.mrf.mxu0
        %v2286 = vadd.f32 0.0, %v2285
        %v2287 = vpop.f32.mrf.mxu0
        %v2288 = vpop.f32.mrf.mxu0
        %v2289 = vadd.f32 0.0, %v2288
        %v2290 = vpop.f32.mrf.mxu0
        %2291 = vmatprep.mubr.bf16.mxu0 0
        %2292 = vmatmul.mubr.bf16.gmra.mxu0 %v2074
        %v2293 = vpop.f32.mrf.mxu0
        %v2294 = vadd.f32 0.0, %v2293
        %v2295 = vpop.f32.mrf.mxu0
        %v2296 = vpop.f32.mrf.mxu0
        %v2297 = vadd.f32 0.0, %v2296
        %v2298 = vpop.f32.mrf.mxu0
        %2299 = vmatprep.mubr.bf16.mxu0 0
        %2300 = vmatmul.mubr.bf16.gmra.mxu0 %v2082
        %v2301 = vpop.f32.mrf.mxu0
        %v2302 = vadd.f32 0.0, %v2301
        %v2303 = vpop.f32.mrf.mxu0
        %v2304 = vpop.f32.mrf.mxu0
        %v2305 = vadd.f32 0.0, %v2304
        %v2306 = vpop.f32.mrf.mxu0
        %2307 = vdwg.mxu0
        %v2308 = vadd.f32 %v1619, %v2182
        %v2309 = vadd.f32 %v1622, %v2185
        %v2310 = vadd.f32 %v1627, %v2190
        %v2311 = vadd.f32 %v1630, %v2193
        %v2312 = vadd.f32 %v1635, %v2198
        %v2313 = vadd.f32 %v1638, %v2201
        %v2314 = vadd.f32 %v1643, %v2206
        %v2315 = vadd.f32 %v1646, %v2209
        %v2316 = vadd.f32 %v1651, %v2214
        %v2317 = vadd.f32 %v1654, %v2217
        %v2318 = vadd.f32 %v1659, %v2222
        %v2319 = vadd.f32 %v1662, %v2225
        %v2320 = vadd.f32 %v1667, %v2230
        %v2321 = vadd.f32 %v1670, %v2233
        %v2322 = vadd.f32 %v1675, %v2238
        %v2323 = vadd.f32 %v1678, %v2241
        %v2324 = vadd.f32 %v1683, %v2246
        %v2325 = vadd.f32 %v1686, %v2249
        %v2326 = vadd.f32 %v1691, %v2254
        %v2327 = vadd.f32 %v1694, %v2257
        %v2328 = vadd.f32 %v1699, %v2262
        %v2329 = vadd.f32 %v1702, %v2265
        %v2330 = vadd.f32 %v1707, %v2270
        %v2331 = vadd.f32 %v1710, %v2273
        %v2332 = vadd.f32 %v1715, %v2278
        %v2333 = vadd.f32 %v1718, %v2281
        %v2334 = vadd.f32 %v1723, %v2286
        %v2335 = vadd.f32 %v1726, %v2289
        %v2336 = vadd.f32 %v1731, %v2294
        %v2337 = vadd.f32 %v1734, %v2297
        %v2338 = vadd.f32 %v1739, %v2302
        %v2339 = vadd.f32 %v1742, %v2305
        %v2340 = vld [vmem:[#allocation2 + $0xc] sm:$0x8]
        %v2341 = vld [vmem:[#allocation2 + $0x10] sm:$0xf]
        %v2342 = vld [vmem:[#allocation2 + $0x14] sm:$0xf]
        %v2343 = vld [vmem:[#allocation2 + $0x18] sm:$0xf]
        %v2344 = vld [vmem:[#allocation2 + $0x1c] sm:$0xf]
        %v2345 = vld [vmem:[#allocation2 + $0x20] sm:$0xf]
        %v2346 = vld [vmem:[#allocation2 + $0x24] sm:$0xf]
        %v2347 = vld [vmem:[#allocation2 + $0x28] sm:$0xf]
        %v2348 = vld [vmem:[#allocation2 + $0x2c] sm:$0xf]
        %v2349 = vld [vmem:[#allocation2 + $0x30] sm:$0xf]
        %v2350 = vld [vmem:[#allocation2 + $0x34] sm:$0xf]
        %v2351 = vld [vmem:[#allocation2 + $0x38] sm:$0xf]
        %v2352 = vld [vmem:[#allocation2 + $0x3c] sm:$0xf]
        %v2353 = vld [vmem:[#allocation2 + $0x40] sm:$0xf]
        %v2354 = vld [vmem:[#allocation2 + $0x44] sm:$0xf]
        %v2355 = vld [vmem:[#allocation2 + $0x48] sm:$0xf]
        %v2356 = vld [vmem:[#allocation2 + $0x4c] sm:$0xf]
        %v2357 = vld [vmem:[#allocation2 + $0x50] sm:$0xf]
        %v2358 = vld [vmem:[#allocation2 + $0x54] sm:$0xf]
        %v2359 = vld [vmem:[#allocation2 + $0x58] sm:$0xf]
        %v2360 = vld [vmem:[#allocation2 + $0x5c] sm:$0xf]
        %v2361 = vld [vmem:[#allocation2 + $0x60] sm:$0xf]
        %v2362 = vld [vmem:[#allocation2 + $0x64] sm:$0xf]
        %v2363 = vld [vmem:[#allocation2 + $0x68] sm:$0xf]
        %v2364 = vld [vmem:[#allocation2 + $0x6c] sm:$0xf]
        %v2365 = vld [vmem:[#allocation2 + $0x70] sm:$0xf]
        %v2366 = vld [vmem:[#allocation2 + $0x74] sm:$0xf]
        %v2367 = vld [vmem:[#allocation2 + $0x78] sm:$0xf]
        %v2368 = vld [vmem:[#allocation2 + $0x7c] sm:$0xf]
        %v2369 = vld [vmem:[#allocation2 + $0x80] sm:$0xf]
        %v2370 = vld [vmem:[#allocation2 + $0x84] sm:$0xf]
        %v2371 = vld [vmem:[#allocation2 + $0x88] sm:$0xf]
        %v2372 = vld [vmem:[#allocation2 + $0x8c] sm:$0xf]
        %v2373 = vmul.bf16 %v2340, %v893
        %v2374 = vmul.bf16 %v2341, %v903
        %v2375 = vmul.bf16 %v2342, %v909
        %v2376 = vmul.bf16 %v2343, %v903
        %v2377 = vmul.bf16 %v2344, %v909
        %v2378 = vmul.bf16 %v2345, %v903
        %v2379 = vmul.bf16 %v2346, %v909
        %v2380 = vmul.bf16 %v2347, %v903
        %v2381 = vmul.bf16 %v2348, %v909
        %v2382 = vmul.bf16 %v2349, %v903
        %v2383 = vmul.bf16 %v2350, %v909
        %v2384 = vmul.bf16 %v2351, %v903
        %v2385 = vmul.bf16 %v2352, %v909
        %v2386 = vmul.bf16 %v2353, %v903
        %v2387 = vmul.bf16 %v2354, %v909
        %v2388 = vmul.bf16 %v2355, %v903
        %v2389 = vmul.bf16 %v2356, %v909
        %v2390 = vmul.bf16 %v2357, %v903
        %v2391 = vmul.bf16 %v2358, %v909
        %v2392 = vmul.bf16 %v2359, %v903
        %v2393 = vmul.bf16 %v2360, %v909
        %v2394 = vmul.bf16 %v2361, %v903
        %v2395 = vmul.bf16 %v2362, %v909
        %v2396 = vmul.bf16 %v2363, %v903
        %v2397 = vmul.bf16 %v2364, %v909
        %v2398 = vmul.bf16 %v2365, %v903
        %v2399 = vmul.bf16 %v2366, %v909
        %v2400 = vmul.bf16 %v2367, %v903
        %v2401 = vmul.bf16 %v2368, %v909
        %v2402 = vmul.bf16 %v2369, %v903
        %v2403 = vmul.bf16 %v2370, %v909
        %v2404 = vmul.bf16 %v2371, %v903
        %v2405 = vmul.bf16 %v2372, %v908
        %v2406 = vld [vmem:[#allocation8 + $0xc0] sm:$0xf]
        %v2407 = vld [vmem:[#allocation8 + $0xc4] sm:$0xf]
        %v2408 = vld [vmem:[#allocation8 + $0xc8] sm:$0xf]
        %v2409 = vld [vmem:[#allocation8 + $0xcc] sm:$0xf]
        %v2410 = vld [vmem:[#allocation8 + $0xd0] sm:$0xf]
        %v2411 = vld [vmem:[#allocation8 + $0xd4] sm:$0xf]
        %v2412 = vld [vmem:[#allocation8 + $0xd8] sm:$0xf]
        %v2413 = vld [vmem:[#allocation8 + $0xdc] sm:$0xf]
        %v2414 = vld [vmem:[#allocation8 + $0xe0] sm:$0xf]
        %v2415 = vld [vmem:[#allocation8 + $0xe4] sm:$0xf]
        %v2416 = vld [vmem:[#allocation8 + $0xe8] sm:$0xf]
        %v2417 = vld [vmem:[#allocation8 + $0xec] sm:$0xf]
        %v2418 = vld [vmem:[#allocation8 + $0xf0] sm:$0xf]
        %v2419 = vld [vmem:[#allocation8 + $0xf4] sm:$0xf]
        %v2420 = vld [vmem:[#allocation8 + $0xf8] sm:$0xf]
        %v2421 = vld [vmem:[#allocation8 + $0xfc] sm:$0xf]
        %v2455 = vunpack.c.l.b16 %v2373
        %v2456 = vunpack.c.l.b16 %v2374
        %v2457 = vunpack.c.l.b16 %v2375
        %v2458 = vunpack.c.l.b16 %v2376
        %v2459 = vunpack.c.l.b16 %v2377
        %v2460 = vunpack.c.l.b16 %v2378
        %v2461 = vunpack.c.l.b16 %v2379
        %v2462 = vunpack.c.l.b16 %v2380
        %v2463 = vunpack.c.l.b16 %v2381
        %v2464 = vunpack.c.l.b16 %v2382
        %v2465 = vunpack.c.l.b16 %v2383
        %v2466 = vunpack.c.l.b16 %v2384
        %v2467 = vunpack.c.l.b16 %v2385
        %v2468 = vunpack.c.l.b16 %v2386
        %v2469 = vunpack.c.l.b16 %v2387
        %v2470 = vunpack.c.l.b16 %v2388
        %v2471 = vunpack.c.l.b16 %v2389
        %v2472 = vunpack.c.l.b16 %v2390
        %v2473 = vunpack.c.l.b16 %v2391
        %v2474 = vunpack.c.l.b16 %v2392
        %v2475 = vunpack.c.l.b16 %v2393
        %v2476 = vunpack.c.l.b16 %v2394
        %v2477 = vunpack.c.l.b16 %v2395
        %v2478 = vunpack.c.l.b16 %v2396
        %v2479 = vunpack.c.l.b16 %v2397
        %v2480 = vunpack.c.l.b16 %v2398
        %v2481 = vunpack.c.l.b16 %v2399
        %v2482 = vunpack.c.l.b16 %v2400
        %v2483 = vunpack.c.l.b16 %v2401
        %v2484 = vunpack.c.l.b16 %v2402
        %v2485 = vunpack.c.l.b16 %v2403
        %v2486 = vunpack.c.l.b16 %v2404
        %v2487 = vunpack.c.l.b16 %v2405
        %v2488 = vpack.c.b16 %v2456, %v2455
        %v2489 = vpack.c.b16 %v2458, %v2457
        %v2490 = vpack.c.b16 %v2460, %v2459
        %v2491 = vpack.c.b16 %v2462, %v2461
        %v2492 = vpack.c.b16 %v2464, %v2463
        %v2493 = vpack.c.b16 %v2466, %v2465
        %v2494 = vpack.c.b16 %v2468, %v2467
        %v2495 = vpack.c.b16 %v2470, %v2469
        %v2496 = vpack.c.b16 %v2472, %v2471
        %v2497 = vpack.c.b16 %v2474, %v2473
        %v2498 = vpack.c.b16 %v2476, %v2475
        %v2499 = vpack.c.b16 %v2478, %v2477
        %v2500 = vpack.c.b16 %v2480, %v2479
        %v2501 = vpack.c.b16 %v2482, %v2481
        %v2502 = vpack.c.b16 %v2484, %v2483
        %v2503 = vpack.c.b16 %v2486, %v2485
        %v2504 = vpack.c.b16 %v2487, %v2487
        %v2506 = vshrl.u32 %v2488, 16
        %v2508 = vrot.slane %v2506, 3
        %v2509 = vshll.u32 %v2488, 16
        %v2511 = vrot.slane %v2509, 4
        %v2512 = vor.u32 %v2508, %v2511
        %v2514 = vshrl.u32 %v2489, 16
        %v2516 = vrot.slane %v2514, 3
        %v2517 = vshll.u32 %v2489, 16
        %v2519 = vrot.slane %v2517, 4
        %v2520 = vor.u32 %v2516, %v2519
        %v2521 = vsel %vm1367, %v2512, %v2520
        %v2523 = vshrl.u32 %v2490, 16
        %v2525 = vrot.slane %v2523, 3
        %v2526 = vshll.u32 %v2490, 16
        %v2528 = vrot.slane %v2526, 4
        %v2529 = vor.u32 %v2525, %v2528
        %v2530 = vsel %vm1367, %v2520, %v2529
        %v2532 = vshrl.u32 %v2491, 16
        %v2534 = vrot.slane %v2532, 3
        %v2535 = vshll.u32 %v2491, 16
        %v2537 = vrot.slane %v2535, 4
        %v2538 = vor.u32 %v2534, %v2537
        %v2539 = vsel %vm1367, %v2529, %v2538
        %v2541 = vshrl.u32 %v2492, 16
        %v2543 = vrot.slane %v2541, 3
        %v2544 = vshll.u32 %v2492, 16
        %v2546 = vrot.slane %v2544, 4
        %v2547 = vor.u32 %v2543, %v2546
        %v2548 = vsel %vm1367, %v2538, %v2547
        %v2550 = vshrl.u32 %v2493, 16
        %v2552 = vrot.slane %v2550, 3
        %v2553 = vshll.u32 %v2493, 16
        %v2555 = vrot.slane %v2553, 4
        %v2556 = vor.u32 %v2552, %v2555
        %v2557 = vsel %vm1367, %v2547, %v2556
        %v2559 = vshrl.u32 %v2494, 16
        %v2561 = vrot.slane %v2559, 3
        %v2562 = vshll.u32 %v2494, 16
        %v2564 = vrot.slane %v2562, 4
        %v2565 = vor.u32 %v2561, %v2564
        %v2566 = vsel %vm1367, %v2556, %v2565
        %v2568 = vshrl.u32 %v2495, 16
        %v2570 = vrot.slane %v2568, 3
        %v2571 = vshll.u32 %v2495, 16
        %v2573 = vrot.slane %v2571, 4
        %v2574 = vor.u32 %v2570, %v2573
        %v2575 = vsel %vm1367, %v2565, %v2574
        %v2577 = vshrl.u32 %v2496, 16
        %v2579 = vrot.slane %v2577, 3
        %v2580 = vshll.u32 %v2496, 16
        %v2582 = vrot.slane %v2580, 4
        %v2583 = vor.u32 %v2579, %v2582
        %v2584 = vsel %vm1367, %v2574, %v2583
        %v2586 = vshrl.u32 %v2497, 16
        %v2588 = vrot.slane %v2586, 3
        %v2589 = vshll.u32 %v2497, 16
        %v2591 = vrot.slane %v2589, 4
        %v2592 = vor.u32 %v2588, %v2591
        %v2593 = vsel %vm1367, %v2583, %v2592
        %v2595 = vshrl.u32 %v2498, 16
        %v2597 = vrot.slane %v2595, 3
        %v2598 = vshll.u32 %v2498, 16
        %v2600 = vrot.slane %v2598, 4
        %v2601 = vor.u32 %v2597, %v2600
        %v2602 = vsel %vm1367, %v2592, %v2601
        %v2604 = vshrl.u32 %v2499, 16
        %v2606 = vrot.slane %v2604, 3
        %v2607 = vshll.u32 %v2499, 16
        %v2609 = vrot.slane %v2607, 4
        %v2610 = vor.u32 %v2606, %v2609
        %v2611 = vsel %vm1367, %v2601, %v2610
        %v2613 = vshrl.u32 %v2500, 16
        %v2615 = vrot.slane %v2613, 3
        %v2616 = vshll.u32 %v2500, 16
        %v2618 = vrot.slane %v2616, 4
        %v2619 = vor.u32 %v2615, %v2618
        %v2620 = vsel %vm1367, %v2610, %v2619
        %v2622 = vshrl.u32 %v2501, 16
        %v2624 = vrot.slane %v2622, 3
        %v2625 = vshll.u32 %v2501, 16
        %v2627 = vrot.slane %v2625, 4
        %v2628 = vor.u32 %v2624, %v2627
        %v2629 = vsel %vm1367, %v2619, %v2628
        %v2631 = vshrl.u32 %v2502, 16
        %v2633 = vrot.slane %v2631, 3
        %v2634 = vshll.u32 %v2502, 16
        %v2636 = vrot.slane %v2634, 4
        %v2637 = vor.u32 %v2633, %v2636
        %v2638 = vsel %vm1367, %v2628, %v2637
        %v2640 = vshrl.u32 %v2503, 16
        %v2642 = vrot.slane %v2640, 3
        %v2643 = vshll.u32 %v2503, 16
        %v2645 = vrot.slane %v2643, 4
        %v2646 = vor.u32 %v2642, %v2645
        %v2647 = vsel %vm1367, %v2637, %v2646
        %v2649 = vshrl.u32 %v2504, 16
        %v2651 = vrot.slane %v2649, 3
        %v2652 = vshll.u32 %v2504, 16
        %v2654 = vrot.slane %v2652, 4
        %v2655 = vor.u32 %v2651, %v2654
        %v2656 = vsel %vm1367, %v2646, %v2655
        %v2689 = vunpack.c.l.b16 %v2406
        %v2690 = vunpack.c.l.b16 %v2407
        %v2691 = vunpack.c.l.b16 %v2408
        %v2692 = vunpack.c.l.b16 %v2409
        %v2693 = vunpack.c.l.b16 %v2410
        %v2694 = vunpack.c.l.b16 %v2411
        %v2695 = vunpack.c.l.b16 %v2412
        %v2696 = vunpack.c.l.b16 %v2413
        %v2697 = vunpack.c.l.b16 %v2414
        %v2698 = vunpack.c.l.b16 %v2415
        %v2699 = vunpack.c.l.b16 %v2416
        %v2700 = vunpack.c.l.b16 %v2417
        %v2701 = vunpack.c.l.b16 %v2418
        %v2702 = vunpack.c.l.b16 %v2419
        %v2703 = vunpack.c.l.b16 %v2420
        %v2704 = vunpack.c.l.b16 %v2421
        %v2705 = vpack.c.b16 %v2690, %v2689
        %v2706 = vpack.c.b16 %v2692, %v2691
        %v2707 = vpack.c.b16 %v2694, %v2693
        %v2708 = vpack.c.b16 %v2696, %v2695
        %v2709 = vpack.c.b16 %v2698, %v2697
        %v2710 = vpack.c.b16 %v2700, %v2699
        %v2711 = vpack.c.b16 %v2702, %v2701
        %v2712 = vpack.c.b16 %v2704, %v2703
        %2721 = vmatprep.subr.bf16.mxu0 0
        %2722 = vmatpush1.bf16.msra.mxu0 %v2712
        %2723 = vmatprep.subr.bf16.mxu0 0
        %2724 = vmatpush1.bf16.msra.mxu0 %v2711
        %2725 = vmatprep.subr.bf16.mxu0 0
        %2726 = vmatpush1.bf16.msra.mxu0 %v2710
        %2727 = vmatprep.subr.bf16.mxu0 0
        %2728 = vmatpush1.bf16.msra.mxu0 %v2709
        %2729 = vmatprep.subr.bf16.mxu0 0
        %2730 = vmatpush1.bf16.msra.mxu0 %v2708
        %2731 = vmatprep.subr.bf16.mxu0 0
        %2732 = vmatpush1.bf16.msra.mxu0 %v2707
        %2733 = vmatprep.subr.bf16.mxu0 0
        %2734 = vmatpush1.bf16.msra.mxu0 %v2706
        %2735 = vmatprep.subr.bf16.mxu0 0
        %2736 = vmatpush1.bf16.msra.mxu0 %v2705
        %2737 = vmatprep.subr.bf16.mxu0 0
        %2738 = vmatpush2.bf16.msra.mxu0 0
        %2739 = vmatprep.subr.bf16.mxu0 0
        %2740 = vmatpush2.bf16.msra.mxu0 0
        %2741 = vmatprep.subr.bf16.mxu0 0
        %2742 = vmatpush2.bf16.msra.mxu0 0
        %2743 = vmatprep.subr.bf16.mxu0 0
        %2744 = vmatpush2.bf16.msra.mxu0 0
        %2745 = vmatprep.subr.bf16.mxu0 0
        %2746 = vmatpush2.bf16.msra.mxu0 0
        %2747 = vmatprep.subr.bf16.mxu0 0
        %2748 = vmatpush2.bf16.msra.mxu0 0
        %2749 = vmatprep.subr.bf16.mxu0 0
        %2750 = vmatpush2.bf16.msra.mxu0 0
        %2751 = vmatprep.subr.bf16.mxu0 0
        %2752 = vmatpush2.bf16.msra.mxu0 0
        %2753 = vmatprep.mubr.bf16.mxu0 0
        %2754 = vmatmul.mubr.bf16.gmra.mxu0 %v2521
        %v2755 = vpop.f32.mrf.mxu0
        %v2756 = vadd.f32 0.0, %v2755
        %v2757 = vpop.f32.mrf.mxu0
        %v2758 = vpop.f32.mrf.mxu0
        %v2759 = vadd.f32 0.0, %v2758
        %v2760 = vpop.f32.mrf.mxu0
        %2761 = vmatprep.mubr.bf16.mxu0 0
        %2762 = vmatmul.mubr.bf16.gmra.mxu0 %v2530
        %v2763 = vpop.f32.mrf.mxu0
        %v2764 = vadd.f32 0.0, %v2763
        %v2765 = vpop.f32.mrf.mxu0
        %v2766 = vpop.f32.mrf.mxu0
        %v2767 = vadd.f32 0.0, %v2766
        %v2768 = vpop.f32.mrf.mxu0
        %2769 = vmatprep.mubr.bf16.mxu0 0
        %2770 = vmatmul.mubr.bf16.gmra.mxu0 %v2539
        %v2771 = vpop.f32.mrf.mxu0
        %v2772 = vadd.f32 0.0, %v2771
        %v2773 = vpop.f32.mrf.mxu0
        %v2774 = vpop.f32.mrf.mxu0
        %v2775 = vadd.f32 0.0, %v2774
        %v2776 = vpop.f32.mrf.mxu0
        %2777 = vmatprep.mubr.bf16.mxu0 0
        %2778 = vmatmul.mubr.bf16.gmra.mxu0 %v2548
        %v2779 = vpop.f32.mrf.mxu0
        %v2780 = vadd.f32 0.0, %v2779
        %v2781 = vpop.f32.mrf.mxu0
        %v2782 = vpop.f32.mrf.mxu0
        %v2783 = vadd.f32 0.0, %v2782
        %v2784 = vpop.f32.mrf.mxu0
        %2785 = vmatprep.mubr.bf16.mxu0 0
        %2786 = vmatmul.mubr.bf16.gmra.mxu0 %v2557
        %v2787 = vpop.f32.mrf.mxu0
        %v2788 = vadd.f32 0.0, %v2787
        %v2789 = vpop.f32.mrf.mxu0
        %v2790 = vpop.f32.mrf.mxu0
        %v2791 = vadd.f32 0.0, %v2790
        %v2792 = vpop.f32.mrf.mxu0
        %2793 = vmatprep.mubr.bf16.mxu0 0
        %2794 = vmatmul.mubr.bf16.gmra.mxu0 %v2566
        %v2795 = vpop.f32.mrf.mxu0
        %v2796 = vadd.f32 0.0, %v2795
        %v2797 = vpop.f32.mrf.mxu0
        %v2798 = vpop.f32.mrf.mxu0
        %v2799 = vadd.f32 0.0, %v2798
        %v2800 = vpop.f32.mrf.mxu0
        %2801 = vmatprep.mubr.bf16.mxu0 0
        %2802 = vmatmul.mubr.bf16.gmra.mxu0 %v2575
        %v2803 = vpop.f32.mrf.mxu0
        %v2804 = vadd.f32 0.0, %v2803
        %v2805 = vpop.f32.mrf.mxu0
        %v2806 = vpop.f32.mrf.mxu0
        %v2807 = vadd.f32 0.0, %v2806
        %v2808 = vpop.f32.mrf.mxu0
        %2809 = vmatprep.mubr.bf16.mxu0 0
        %2810 = vmatmul.mubr.bf16.gmra.mxu0 %v2584
        %v2811 = vpop.f32.mrf.mxu0
        %v2812 = vadd.f32 0.0, %v2811
        %v2813 = vpop.f32.mrf.mxu0
        %v2814 = vpop.f32.mrf.mxu0
        %v2815 = vadd.f32 0.0, %v2814
        %v2816 = vpop.f32.mrf.mxu0
        %2817 = vmatprep.mubr.bf16.mxu0 0
        %2818 = vmatmul.mubr.bf16.gmra.mxu0 %v2593
        %v2819 = vpop.f32.mrf.mxu0
        %v2820 = vadd.f32 0.0, %v2819
        %v2821 = vpop.f32.mrf.mxu0
        %v2822 = vpop.f32.mrf.mxu0
        %v2823 = vadd.f32 0.0, %v2822
        %v2824 = vpop.f32.mrf.mxu0
        %2825 = vmatprep.mubr.bf16.mxu0 0
        %2826 = vmatmul.mubr.bf16.gmra.mxu0 %v2602
        %v2827 = vpop.f32.mrf.mxu0
        %v2828 = vadd.f32 0.0, %v2827
        %v2829 = vpop.f32.mrf.mxu0
        %v2830 = vpop.f32.mrf.mxu0
        %v2831 = vadd.f32 0.0, %v2830
        %v2832 = vpop.f32.mrf.mxu0
        %2833 = vmatprep.mubr.bf16.mxu0 0
        %2834 = vmatmul.mubr.bf16.gmra.mxu0 %v2611
        %v2835 = vpop.f32.mrf.mxu0
        %v2836 = vadd.f32 0.0, %v2835
        %v2837 = vpop.f32.mrf.mxu0
        %v2838 = vpop.f32.mrf.mxu0
        %v2839 = vadd.f32 0.0, %v2838
        %v2840 = vpop.f32.mrf.mxu0
        %2841 = vmatprep.mubr.bf16.mxu0 0
        %2842 = vmatmul.mubr.bf16.gmra.mxu0 %v2620
        %v2843 = vpop.f32.mrf.mxu0
        %v2844 = vadd.f32 0.0, %v2843
        %v2845 = vpop.f32.mrf.mxu0
        %v2846 = vpop.f32.mrf.mxu0
        %v2847 = vadd.f32 0.0, %v2846
        %v2848 = vpop.f32.mrf.mxu0
        %2849 = vmatprep.mubr.bf16.mxu0 0
        %2850 = vmatmul.mubr.bf16.gmra.mxu0 %v2629
        %v2851 = vpop.f32.mrf.mxu0
        %v2852 = vadd.f32 0.0, %v2851
        %v2853 = vpop.f32.mrf.mxu0
        %v2854 = vpop.f32.mrf.mxu0
        %v2855 = vadd.f32 0.0, %v2854
        %v2856 = vpop.f32.mrf.mxu0
        %2857 = vmatprep.mubr.bf16.mxu0 0
        %2858 = vmatmul.mubr.bf16.gmra.mxu0 %v2638
        %v2859 = vpop.f32.mrf.mxu0
        %v2860 = vadd.f32 0.0, %v2859
        %v2861 = vpop.f32.mrf.mxu0
        %v2862 = vpop.f32.mrf.mxu0
        %v2863 = vadd.f32 0.0, %v2862
        %v2864 = vpop.f32.mrf.mxu0
        %2865 = vmatprep.mubr.bf16.mxu0 0
        %2866 = vmatmul.mubr.bf16.gmra.mxu0 %v2647
        %v2867 = vpop.f32.mrf.mxu0
        %v2868 = vadd.f32 0.0, %v2867
        %v2869 = vpop.f32.mrf.mxu0
        %v2870 = vpop.f32.mrf.mxu0
        %v2871 = vadd.f32 0.0, %v2870
        %v2872 = vpop.f32.mrf.mxu0
        %2873 = vmatprep.mubr.bf16.mxu0 0
        %2874 = vmatmul.mubr.bf16.gmra.mxu0 %v2656
        %v2875 = vpop.f32.mrf.mxu0
        %v2876 = vadd.f32 0.0, %v2875
        %v2877 = vpop.f32.mrf.mxu0
        %v2878 = vpop.f32.mrf.mxu0
        %v2879 = vadd.f32 0.0, %v2878
        %v2880 = vpop.f32.mrf.mxu0
        %2881 = vdwg.mxu0
        %v2882 = vadd.f32 %v2308, %v2756
        %v2883 = vadd.f32 %v2309, %v2759
        %v2884 = vadd.f32 %v2310, %v2764
        %v2885 = vadd.f32 %v2311, %v2767
        %v2886 = vadd.f32 %v2312, %v2772
        %v2887 = vadd.f32 %v2313, %v2775
        %v2888 = vadd.f32 %v2314, %v2780
        %v2889 = vadd.f32 %v2315, %v2783
        %v2890 = vadd.f32 %v2316, %v2788
        %v2891 = vadd.f32 %v2317, %v2791
        %v2892 = vadd.f32 %v2318, %v2796
        %v2893 = vadd.f32 %v2319, %v2799
        %v2894 = vadd.f32 %v2320, %v2804
        %v2895 = vadd.f32 %v2321, %v2807
        %v2896 = vadd.f32 %v2322, %v2812
        %v2897 = vadd.f32 %v2323, %v2815
        %v2898 = vadd.f32 %v2324, %v2820
        %v2899 = vadd.f32 %v2325, %v2823
        %v2900 = vadd.f32 %v2326, %v2828
        %v2901 = vadd.f32 %v2327, %v2831
        %v2902 = vadd.f32 %v2328, %v2836
        %v2903 = vadd.f32 %v2329, %v2839
        %v2904 = vadd.f32 %v2330, %v2844
        %v2905 = vadd.f32 %v2331, %v2847
        %v2906 = vadd.f32 %v2332, %v2852
        %v2907 = vadd.f32 %v2333, %v2855
        %v2908 = vadd.f32 %v2334, %v2860
        %v2909 = vadd.f32 %v2335, %v2863
        %v2910 = vadd.f32 %v2336, %v2868
        %v2911 = vadd.f32 %v2337, %v2871
        %v2912 = vadd.f32 %v2338, %v2876
        %v2913 = vadd.f32 %v2339, %v2879
        %v2914 = vld [vmem:[#allocation8 + $0x100] sm:$0xf]
        %v2915 = vld [vmem:[#allocation8 + $0x104] sm:$0xf]
        %v2916 = vld [vmem:[#allocation8 + $0x108] sm:$0xf]
        %v2917 = vld [vmem:[#allocation8 + $0x10c] sm:$0xf]
        %v2918 = vld [vmem:[#allocation8 + $0x110] sm:$0xf]
        %v2919 = vld [vmem:[#allocation8 + $0x114] sm:$0xf]
        %v2920 = vld [vmem:[#allocation8 + $0x118] sm:$0xf]
        %v2921 = vld [vmem:[#allocation8 + $0x11c] sm:$0xf]
        %v2922 = vld [vmem:[#allocation8 + $0x120] sm:$0xf]
        %v2923 = vld [vmem:[#allocation8 + $0x124] sm:$0xf]
        %v2924 = vld [vmem:[#allocation8 + $0x128] sm:$0xf]
        %v2925 = vld [vmem:[#allocation8 + $0x12c] sm:$0xf]
        %v2926 = vld [vmem:[#allocation8 + $0x130] sm:$0xf]
        %v2927 = vld [vmem:[#allocation8 + $0x134] sm:$0xf]
        %v2928 = vld [vmem:[#allocation8 + $0x138] sm:$0xf]
        %v2929 = vld [vmem:[#allocation8 + $0x13c] sm:$0xf]
        %v2962 = vunpack.c.l.b16 %v2341
        %v2963 = vunpack.c.l.b16 %v2342
        %v2964 = vunpack.c.l.b16 %v2343
        %v2965 = vunpack.c.l.b16 %v2344
        %v2966 = vunpack.c.l.b16 %v2345
        %v2967 = vunpack.c.l.b16 %v2346
        %v2968 = vunpack.c.l.b16 %v2347
        %v2969 = vunpack.c.l.b16 %v2348
        %v2970 = vunpack.c.l.b16 %v2349
        %v2971 = vunpack.c.l.b16 %v2350
        %v2972 = vunpack.c.l.b16 %v2351
        %v2973 = vunpack.c.l.b16 %v2352
        %v2974 = vunpack.c.l.b16 %v2353
        %v2975 = vunpack.c.l.b16 %v2354
        %v2976 = vunpack.c.l.b16 %v2355
        %v2977 = vunpack.c.l.b16 %v2356
        %v2978 = vunpack.c.l.b16 %v2357
        %v2979 = vunpack.c.l.b16 %v2358
        %v2980 = vunpack.c.l.b16 %v2359
        %v2981 = vunpack.c.l.b16 %v2360
        %v2982 = vunpack.c.l.b16 %v2361
        %v2983 = vunpack.c.l.b16 %v2362
        %v2984 = vunpack.c.l.b16 %v2363
        %v2985 = vunpack.c.l.b16 %v2364
        %v2986 = vunpack.c.l.b16 %v2365
        %v2987 = vunpack.c.l.b16 %v2366
        %v2988 = vunpack.c.l.b16 %v2367
        %v2989 = vunpack.c.l.b16 %v2368
        %v2990 = vunpack.c.l.b16 %v2369
        %v2991 = vunpack.c.l.b16 %v2370
        %v2992 = vunpack.c.l.b16 %v2371
        %v2993 = vunpack.c.l.b16 %v2372
        %v2994 = vpack.c.b16 %v2963, %v2962
        %v2995 = vpack.c.b16 %v2965, %v2964
        %v2996 = vpack.c.b16 %v2967, %v2966
        %v2997 = vpack.c.b16 %v2969, %v2968
        %v2998 = vpack.c.b16 %v2971, %v2970
        %v2999 = vpack.c.b16 %v2973, %v2972
        %v3000 = vpack.c.b16 %v2975, %v2974
        %v3001 = vpack.c.b16 %v2977, %v2976
        %v3002 = vpack.c.b16 %v2979, %v2978
        %v3003 = vpack.c.b16 %v2981, %v2980
        %v3004 = vpack.c.b16 %v2983, %v2982
        %v3005 = vpack.c.b16 %v2985, %v2984
        %v3006 = vpack.c.b16 %v2987, %v2986
        %v3007 = vpack.c.b16 %v2989, %v2988
        %v3008 = vpack.c.b16 %v2991, %v2990
        %v3009 = vpack.c.b16 %v2993, %v2992
        %v3042 = vunpack.c.l.b16 %v2914
        %v3043 = vunpack.c.l.b16 %v2915
        %v3044 = vunpack.c.l.b16 %v2916
        %v3045 = vunpack.c.l.b16 %v2917
        %v3046 = vunpack.c.l.b16 %v2918
        %v3047 = vunpack.c.l.b16 %v2919
        %v3048 = vunpack.c.l.b16 %v2920
        %v3049 = vunpack.c.l.b16 %v2921
        %v3050 = vunpack.c.l.b16 %v2922
        %v3051 = vunpack.c.l.b16 %v2923
        %v3052 = vunpack.c.l.b16 %v2924
        %v3053 = vunpack.c.l.b16 %v2925
        %v3054 = vunpack.c.l.b16 %v2926
        %v3055 = vunpack.c.l.b16 %v2927
        %v3056 = vunpack.c.l.b16 %v2928
        %v3057 = vunpack.c.l.b16 %v2929
        %v3058 = vpack.c.b16 %v3043, %v3042
        %v3059 = vpack.c.b16 %v3045, %v3044
        %v3060 = vpack.c.b16 %v3047, %v3046
        %v3061 = vpack.c.b16 %v3049, %v3048
        %v3062 = vpack.c.b16 %v3051, %v3050
        %v3063 = vpack.c.b16 %v3053, %v3052
        %v3064 = vpack.c.b16 %v3055, %v3054
        %v3065 = vpack.c.b16 %v3057, %v3056
        %3074 = vmatprep.subr.bf16.mxu0 0
        %3075 = vmatpush1.bf16.msra.mxu0 %v3065
        %3076 = vmatprep.subr.bf16.mxu0 0
        %3077 = vmatpush1.bf16.msra.mxu0 %v3064
        %3078 = vmatprep.subr.bf16.mxu0 0
        %3079 = vmatpush1.bf16.msra.mxu0 %v3063
        %3080 = vmatprep.subr.bf16.mxu0 0
        %3081 = vmatpush1.bf16.msra.mxu0 %v3062
        %3082 = vmatprep.subr.bf16.mxu0 0
        %3083 = vmatpush1.bf16.msra.mxu0 %v3061
        %3084 = vmatprep.subr.bf16.mxu0 0
        %3085 = vmatpush1.bf16.msra.mxu0 %v3060
        %3086 = vmatprep.subr.bf16.mxu0 0
        %3087 = vmatpush1.bf16.msra.mxu0 %v3059
        %3088 = vmatprep.subr.bf16.mxu0 0
        %3089 = vmatpush1.bf16.msra.mxu0 %v3058
        %3090 = vmatprep.subr.bf16.mxu0 0
        %3091 = vmatpush2.bf16.msra.mxu0 0
        %3092 = vmatprep.subr.bf16.mxu0 0
        %3093 = vmatpush2.bf16.msra.mxu0 0
        %3094 = vmatprep.subr.bf16.mxu0 0
        %3095 = vmatpush2.bf16.msra.mxu0 0
        %3096 = vmatprep.subr.bf16.mxu0 0
        %3097 = vmatpush2.bf16.msra.mxu0 0
        %3098 = vmatprep.subr.bf16.mxu0 0
        %3099 = vmatpush2.bf16.msra.mxu0 0
        %3100 = vmatprep.subr.bf16.mxu0 0
        %3101 = vmatpush2.bf16.msra.mxu0 0
        %3102 = vmatprep.subr.bf16.mxu0 0
        %3103 = vmatpush2.bf16.msra.mxu0 0
        %3104 = vmatprep.subr.bf16.mxu0 0
        %3105 = vmatpush2.bf16.msra.mxu0 0
        %3106 = vmatprep.mubr.bf16.mxu0 0
        %3107 = vmatmul.mubr.bf16.gmra.mxu0 %v2994
        %v3108 = vpop.f32.mrf.mxu0
        %v3109 = vadd.f32 0.0, %v3108
        %v3110 = vpop.f32.mrf.mxu0
        %v3111 = vpop.f32.mrf.mxu0
        %v3112 = vadd.f32 0.0, %v3111
        %v3113 = vpop.f32.mrf.mxu0
        %3114 = vmatprep.mubr.bf16.mxu0 0
        %3115 = vmatmul.mubr.bf16.gmra.mxu0 %v2995
        %v3116 = vpop.f32.mrf.mxu0
        %v3117 = vadd.f32 0.0, %v3116
        %v3118 = vpop.f32.mrf.mxu0
        %v3119 = vpop.f32.mrf.mxu0
        %v3120 = vadd.f32 0.0, %v3119
        %v3121 = vpop.f32.mrf.mxu0
        %3122 = vmatprep.mubr.bf16.mxu0 0
        %3123 = vmatmul.mubr.bf16.gmra.mxu0 %v2996
        %v3124 = vpop.f32.mrf.mxu0
        %v3125 = vadd.f32 0.0, %v3124
        %v3126 = vpop.f32.mrf.mxu0
        %v3127 = vpop.f32.mrf.mxu0
        %v3128 = vadd.f32 0.0, %v3127
        %v3129 = vpop.f32.mrf.mxu0
        %3130 = vmatprep.mubr.bf16.mxu0 0
        %3131 = vmatmul.mubr.bf16.gmra.mxu0 %v2997
        %v3132 = vpop.f32.mrf.mxu0
        %v3133 = vadd.f32 0.0, %v3132
        %v3134 = vpop.f32.mrf.mxu0
        %v3135 = vpop.f32.mrf.mxu0
        %v3136 = vadd.f32 0.0, %v3135
        %v3137 = vpop.f32.mrf.mxu0
        %3138 = vmatprep.mubr.bf16.mxu0 0
        %3139 = vmatmul.mubr.bf16.gmra.mxu0 %v2998
        %v3140 = vpop.f32.mrf.mxu0
        %v3141 = vadd.f32 0.0, %v3140
        %v3142 = vpop.f32.mrf.mxu0
        %v3143 = vpop.f32.mrf.mxu0
        %v3144 = vadd.f32 0.0, %v3143
        %v3145 = vpop.f32.mrf.mxu0
        %3146 = vmatprep.mubr.bf16.mxu0 0
        %3147 = vmatmul.mubr.bf16.gmra.mxu0 %v2999
        %v3148 = vpop.f32.mrf.mxu0
        %v3149 = vadd.f32 0.0, %v3148
        %v3150 = vpop.f32.mrf.mxu0
        %v3151 = vpop.f32.mrf.mxu0
        %v3152 = vadd.f32 0.0, %v3151
        %v3153 = vpop.f32.mrf.mxu0
        %3154 = vmatprep.mubr.bf16.mxu0 0
        %3155 = vmatmul.mubr.bf16.gmra.mxu0 %v3000
        %v3156 = vpop.f32.mrf.mxu0
        %v3157 = vadd.f32 0.0, %v3156
        %v3158 = vpop.f32.mrf.mxu0
        %v3159 = vpop.f32.mrf.mxu0
        %v3160 = vadd.f32 0.0, %v3159
        %v3161 = vpop.f32.mrf.mxu0
        %3162 = vmatprep.mubr.bf16.mxu0 0
        %3163 = vmatmul.mubr.bf16.gmra.mxu0 %v3001
        %v3164 = vpop.f32.mrf.mxu0
        %v3165 = vadd.f32 0.0, %v3164
        %v3166 = vpop.f32.mrf.mxu0
        %v3167 = vpop.f32.mrf.mxu0
        %v3168 = vadd.f32 0.0, %v3167
        %v3169 = vpop.f32.mrf.mxu0
        %3170 = vmatprep.mubr.bf16.mxu0 0
        %3171 = vmatmul.mubr.bf16.gmra.mxu0 %v3002
        %v3172 = vpop.f32.mrf.mxu0
        %v3173 = vadd.f32 0.0, %v3172
        %v3174 = vpop.f32.mrf.mxu0
        %v3175 = vpop.f32.mrf.mxu0
        %v3176 = vadd.f32 0.0, %v3175
        %v3177 = vpop.f32.mrf.mxu0
        %3178 = vmatprep.mubr.bf16.mxu0 0
        %3179 = vmatmul.mubr.bf16.gmra.mxu0 %v3003
        %v3180 = vpop.f32.mrf.mxu0
        %v3181 = vadd.f32 0.0, %v3180
        %v3182 = vpop.f32.mrf.mxu0
        %v3183 = vpop.f32.mrf.mxu0
        %v3184 = vadd.f32 0.0, %v3183
        %v3185 = vpop.f32.mrf.mxu0
        %3186 = vmatprep.mubr.bf16.mxu0 0
        %3187 = vmatmul.mubr.bf16.gmra.mxu0 %v3004
        %v3188 = vpop.f32.mrf.mxu0
        %v3189 = vadd.f32 0.0, %v3188
        %v3190 = vpop.f32.mrf.mxu0
        %v3191 = vpop.f32.mrf.mxu0
        %v3192 = vadd.f32 0.0, %v3191
        %v3193 = vpop.f32.mrf.mxu0
        %3194 = vmatprep.mubr.bf16.mxu0 0
        %3195 = vmatmul.mubr.bf16.gmra.mxu0 %v3005
        %v3196 = vpop.f32.mrf.mxu0
        %v3197 = vadd.f32 0.0, %v3196
        %v3198 = vpop.f32.mrf.mxu0
        %v3199 = vpop.f32.mrf.mxu0
        %v3200 = vadd.f32 0.0, %v3199
        %v3201 = vpop.f32.mrf.mxu0
        %3202 = vmatprep.mubr.bf16.mxu0 0
        %3203 = vmatmul.mubr.bf16.gmra.mxu0 %v3006
        %v3204 = vpop.f32.mrf.mxu0
        %v3205 = vadd.f32 0.0, %v3204
        %v3206 = vpop.f32.mrf.mxu0
        %v3207 = vpop.f32.mrf.mxu0
        %v3208 = vadd.f32 0.0, %v3207
        %v3209 = vpop.f32.mrf.mxu0
        %3210 = vmatprep.mubr.bf16.mxu0 0
        %3211 = vmatmul.mubr.bf16.gmra.mxu0 %v3007
        %v3212 = vpop.f32.mrf.mxu0
        %v3213 = vadd.f32 0.0, %v3212
        %v3214 = vpop.f32.mrf.mxu0
        %v3215 = vpop.f32.mrf.mxu0
        %v3216 = vadd.f32 0.0, %v3215
        %v3217 = vpop.f32.mrf.mxu0
        %3218 = vmatprep.mubr.bf16.mxu0 0
        %3219 = vmatmul.mubr.bf16.gmra.mxu0 %v3008
        %v3220 = vpop.f32.mrf.mxu0
        %v3221 = vadd.f32 0.0, %v3220
        %v3222 = vpop.f32.mrf.mxu0
        %v3223 = vpop.f32.mrf.mxu0
        %v3224 = vadd.f32 0.0, %v3223
        %v3225 = vpop.f32.mrf.mxu0
        %3226 = vmatprep.mubr.bf16.mxu0 0
        %3227 = vmatmul.mubr.bf16.gmra.mxu0 %v3009
        %v3228 = vpop.f32.mrf.mxu0
        %v3229 = vadd.f32 0.0, %v3228
        %v3230 = vpop.f32.mrf.mxu0
        %v3231 = vpop.f32.mrf.mxu0
        %v3232 = vadd.f32 0.0, %v3231
        %v3233 = vpop.f32.mrf.mxu0
        %3234 = vdwg.mxu0
        %v3235 = vadd.f32 %v2882, %v3109
        %v3236 = vadd.f32 %v2883, %v3112
        %v3237 = vadd.f32 %v2884, %v3117
        %v3238 = vadd.f32 %v2885, %v3120
        %v3239 = vadd.f32 %v2886, %v3125
        %v3240 = vadd.f32 %v2887, %v3128
        %v3241 = vadd.f32 %v2888, %v3133
        %v3242 = vadd.f32 %v2889, %v3136
        %v3243 = vadd.f32 %v2890, %v3141
        %v3244 = vadd.f32 %v2891, %v3144
        %v3245 = vadd.f32 %v2892, %v3149
        %v3246 = vadd.f32 %v2893, %v3152
        %v3247 = vadd.f32 %v2894, %v3157
        %v3248 = vadd.f32 %v2895, %v3160
        %v3249 = vadd.f32 %v2896, %v3165
        %v3250 = vadd.f32 %v2897, %v3168
        %v3251 = vadd.f32 %v2898, %v3173
        %v3252 = vadd.f32 %v2899, %v3176
        %v3253 = vadd.f32 %v2900, %v3181
        %v3254 = vadd.f32 %v2901, %v3184
        %v3255 = vadd.f32 %v2902, %v3189
        %v3256 = vadd.f32 %v2903, %v3192
        %v3257 = vadd.f32 %v2904, %v3197
        %v3258 = vadd.f32 %v2905, %v3200
        %v3259 = vadd.f32 %v2906, %v3205
        %v3260 = vadd.f32 %v2907, %v3208
        %v3261 = vadd.f32 %v2908, %v3213
        %v3262 = vadd.f32 %v2909, %v3216
        %v3263 = vadd.f32 %v2910, %v3221
        %v3264 = vadd.f32 %v2911, %v3224
        %v3265 = vadd.f32 %v2912, %v3229
        %v3266 = vadd.f32 %v2913, %v3232
        %v3267 = vld [vmem:[#allocation2 + $0x10] sm:$0xf]
        %v3268 = vld [vmem:[#allocation2 + $0x14] sm:$0xf]
        %v3269 = vld [vmem:[#allocation2 + $0x18] sm:$0xf]
        %v3270 = vld [vmem:[#allocation2 + $0x1c] sm:$0xf]
        %v3271 = vld [vmem:[#allocation2 + $0x20] sm:$0xf]
        %v3272 = vld [vmem:[#allocation2 + $0x24] sm:$0xf]
        %v3273 = vld [vmem:[#allocation2 + $0x28] sm:$0xf]
        %v3274 = vld [vmem:[#allocation2 + $0x2c] sm:$0xf]
        %v3275 = vld [vmem:[#allocation2 + $0x30] sm:$0xf]
        %v3276 = vld [vmem:[#allocation2 + $0x34] sm:$0xf]
        %v3277 = vld [vmem:[#allocation2 + $0x38] sm:$0xf]
        %v3278 = vld [vmem:[#allocation2 + $0x3c] sm:$0xf]
        %v3279 = vld [vmem:[#allocation2 + $0x40] sm:$0xf]
        %v3280 = vld [vmem:[#allocation2 + $0x44] sm:$0xf]
        %v3281 = vld [vmem:[#allocation2 + $0x48] sm:$0xf]
        %v3282 = vld [vmem:[#allocation2 + $0x4c] sm:$0xf]
        %v3283 = vld [vmem:[#allocation2 + $0x50] sm:$0xf]
        %v3284 = vld [vmem:[#allocation2 + $0x54] sm:$0xf]
        %v3285 = vld [vmem:[#allocation2 + $0x58] sm:$0xf]
        %v3286 = vld [vmem:[#allocation2 + $0x5c] sm:$0xf]
        %v3287 = vld [vmem:[#allocation2 + $0x60] sm:$0xf]
        %v3288 = vld [vmem:[#allocation2 + $0x64] sm:$0xf]
        %v3289 = vld [vmem:[#allocation2 + $0x68] sm:$0xf]
        %v3290 = vld [vmem:[#allocation2 + $0x6c] sm:$0xf]
        %v3291 = vld [vmem:[#allocation2 + $0x70] sm:$0xf]
        %v3292 = vld [vmem:[#allocation2 + $0x74] sm:$0xf]
        %v3293 = vld [vmem:[#allocation2 + $0x78] sm:$0xf]
        %v3294 = vld [vmem:[#allocation2 + $0x7c] sm:$0xf]
        %v3295 = vld [vmem:[#allocation2 + $0x80] sm:$0xf]
        %v3296 = vld [vmem:[#allocation2 + $0x84] sm:$0xf]
        %v3297 = vld [vmem:[#allocation2 + $0x88] sm:$0xf]
        %v3298 = vld [vmem:[#allocation2 + $0x8c] sm:$0xf]
        %v3299 = vld [vmem:[#allocation2 + $0x90] sm:$0x1]
        %v3300 = vmul.bf16 %v3267, %v1802
        %v3301 = vmul.bf16 %v3268, %v1811
        %v3302 = vmul.bf16 %v3269, %v1813
        %v3303 = vmul.bf16 %v3270, %v1811
        %v3304 = vmul.bf16 %v3271, %v1813
        %v3305 = vmul.bf16 %v3272, %v1811
        %v3306 = vmul.bf16 %v3273, %v1813
        %v3307 = vmul.bf16 %v3274, %v1811
        %v3308 = vmul.bf16 %v3275, %v1813
        %v3309 = vmul.bf16 %v3276, %v1811
        %v3310 = vmul.bf16 %v3277, %v1813
        %v3311 = vmul.bf16 %v3278, %v1811
        %v3312 = vmul.bf16 %v3279, %v1813
        %v3313 = vmul.bf16 %v3280, %v1811
        %v3314 = vmul.bf16 %v3281, %v1813
        %v3315 = vmul.bf16 %v3282, %v1811
        %v3316 = vmul.bf16 %v3283, %v1813
        %v3317 = vmul.bf16 %v3284, %v1811
        %v3318 = vmul.bf16 %v3285, %v1813
        %v3319 = vmul.bf16 %v3286, %v1811
        %v3320 = vmul.bf16 %v3287, %v1813
        %v3321 = vmul.bf16 %v3288, %v1811
        %v3322 = vmul.bf16 %v3289, %v1813
        %v3323 = vmul.bf16 %v3290, %v1811
        %v3324 = vmul.bf16 %v3291, %v1813
        %v3325 = vmul.bf16 %v3292, %v1811
        %v3326 = vmul.bf16 %v3293, %v1813
        %v3327 = vmul.bf16 %v3294, %v1811
        %v3328 = vmul.bf16 %v3295, %v1813
        %v3329 = vmul.bf16 %v3296, %v1811
        %v3330 = vmul.bf16 %v3297, %v1813
        %v3331 = vmul.bf16 %v3298, %v1811
        %v3332 = vmul.bf16 %v3299, %v1812
        %v3333 = vld [vmem:[#allocation8 + $0x140] sm:$0xf]
        %v3334 = vld [vmem:[#allocation8 + $0x144] sm:$0xf]
        %v3335 = vld [vmem:[#allocation8 + $0x148] sm:$0xf]
        %v3336 = vld [vmem:[#allocation8 + $0x14c] sm:$0xf]
        %v3337 = vld [vmem:[#allocation8 + $0x150] sm:$0xf]
        %v3338 = vld [vmem:[#allocation8 + $0x154] sm:$0xf]
        %v3339 = vld [vmem:[#allocation8 + $0x158] sm:$0xf]
        %v3340 = vld [vmem:[#allocation8 + $0x15c] sm:$0xf]
        %v3341 = vld [vmem:[#allocation8 + $0x160] sm:$0xf]
        %v3342 = vld [vmem:[#allocation8 + $0x164] sm:$0xf]
        %v3343 = vld [vmem:[#allocation8 + $0x168] sm:$0xf]
        %v3344 = vld [vmem:[#allocation8 + $0x16c] sm:$0xf]
        %v3345 = vld [vmem:[#allocation8 + $0x170] sm:$0xf]
        %v3346 = vld [vmem:[#allocation8 + $0x174] sm:$0xf]
        %v3347 = vld [vmem:[#allocation8 + $0x178] sm:$0xf]
        %v3348 = vld [vmem:[#allocation8 + $0x17c] sm:$0xf]
        %v3382 = vunpack.c.l.b16 %v3300
        %v3383 = vunpack.c.l.b16 %v3301
        %v3384 = vunpack.c.l.b16 %v3302
        %v3385 = vunpack.c.l.b16 %v3303
        %v3386 = vunpack.c.l.b16 %v3304
        %v3387 = vunpack.c.l.b16 %v3305
        %v3388 = vunpack.c.l.b16 %v3306
        %v3389 = vunpack.c.l.b16 %v3307
        %v3390 = vunpack.c.l.b16 %v3308
        %v3391 = vunpack.c.l.b16 %v3309
        %v3392 = vunpack.c.l.b16 %v3310
        %v3393 = vunpack.c.l.b16 %v3311
        %v3394 = vunpack.c.l.b16 %v3312
        %v3395 = vunpack.c.l.b16 %v3313
        %v3396 = vunpack.c.l.b16 %v3314
        %v3397 = vunpack.c.l.b16 %v3315
        %v3398 = vunpack.c.l.b16 %v3316
        %v3399 = vunpack.c.l.b16 %v3317
        %v3400 = vunpack.c.l.b16 %v3318
        %v3401 = vunpack.c.l.b16 %v3319
        %v3402 = vunpack.c.l.b16 %v3320
        %v3403 = vunpack.c.l.b16 %v3321
        %v3404 = vunpack.c.l.b16 %v3322
        %v3405 = vunpack.c.l.b16 %v3323
        %v3406 = vunpack.c.l.b16 %v3324
        %v3407 = vunpack.c.l.b16 %v3325
        %v3408 = vunpack.c.l.b16 %v3326
        %v3409 = vunpack.c.l.b16 %v3327
        %v3410 = vunpack.c.l.b16 %v3328
        %v3411 = vunpack.c.l.b16 %v3329
        %v3412 = vunpack.c.l.b16 %v3330
        %v3413 = vunpack.c.l.b16 %v3331
        %v3414 = vunpack.c.l.b16 %v3332
        %v3415 = vpack.c.b16 %v3383, %v3382
        %v3416 = vpack.c.b16 %v3385, %v3384
        %v3417 = vpack.c.b16 %v3387, %v3386
        %v3418 = vpack.c.b16 %v3389, %v3388
        %v3419 = vpack.c.b16 %v3391, %v3390
        %v3420 = vpack.c.b16 %v3393, %v3392
        %v3421 = vpack.c.b16 %v3395, %v3394
        %v3422 = vpack.c.b16 %v3397, %v3396
        %v3423 = vpack.c.b16 %v3399, %v3398
        %v3424 = vpack.c.b16 %v3401, %v3400
        %v3425 = vpack.c.b16 %v3403, %v3402
        %v3426 = vpack.c.b16 %v3405, %v3404
        %v3427 = vpack.c.b16 %v3407, %v3406
        %v3428 = vpack.c.b16 %v3409, %v3408
        %v3429 = vpack.c.b16 %v3411, %v3410
        %v3430 = vpack.c.b16 %v3413, %v3412
        %v3431 = vpack.c.b16 %v3414, %v3414
        %v3433 = vshrl.u32 %v3415, 16
        %v3435 = vshll.u32 %v3415, 16
        %v3437 = vrot.slane %v3435, 1
        %v3438 = vor.u32 %v3433, %v3437
        %v3440 = vshll.u32 %v3416, 16
        %v3442 = vrot.slane %v3440, 1
        %v3443 = vsel %vm1950, %v3438, %v3442
        %v3444 = vshrl.u32 %v3416, 16
        %v3446 = vor.u32 %v3444, %v3442
        %v3448 = vshll.u32 %v3417, 16
        %v3450 = vrot.slane %v3448, 1
        %v3451 = vsel %vm1950, %v3446, %v3450
        %v3452 = vshrl.u32 %v3417, 16
        %v3454 = vor.u32 %v3452, %v3450
        %v3456 = vshll.u32 %v3418, 16
        %v3458 = vrot.slane %v3456, 1
        %v3459 = vsel %vm1950, %v3454, %v3458
        %v3460 = vshrl.u32 %v3418, 16
        %v3462 = vor.u32 %v3460, %v3458
        %v3464 = vshll.u32 %v3419, 16
        %v3466 = vrot.slane %v3464, 1
        %v3467 = vsel %vm1950, %v3462, %v3466
        %v3468 = vshrl.u32 %v3419, 16
        %v3470 = vor.u32 %v3468, %v3466
        %v3472 = vshll.u32 %v3420, 16
        %v3474 = vrot.slane %v3472, 1
        %v3475 = vsel %vm1950, %v3470, %v3474
        %v3476 = vshrl.u32 %v3420, 16
        %v3478 = vor.u32 %v3476, %v3474
        %v3480 = vshll.u32 %v3421, 16
        %v3482 = vrot.slane %v3480, 1
        %v3483 = vsel %vm1950, %v3478, %v3482
        %v3484 = vshrl.u32 %v3421, 16
        %v3486 = vor.u32 %v3484, %v3482
        %v3488 = vshll.u32 %v3422, 16
        %v3490 = vrot.slane %v3488, 1
        %v3491 = vsel %vm1950, %v3486, %v3490
        %v3492 = vshrl.u32 %v3422, 16
        %v3494 = vor.u32 %v3492, %v3490
        %v3496 = vshll.u32 %v3423, 16
        %v3498 = vrot.slane %v3496, 1
        %v3499 = vsel %vm1950, %v3494, %v3498
        %v3500 = vshrl.u32 %v3423, 16
        %v3502 = vor.u32 %v3500, %v3498
        %v3504 = vshll.u32 %v3424, 16
        %v3506 = vrot.slane %v3504, 1
        %v3507 = vsel %vm1950, %v3502, %v3506
        %v3508 = vshrl.u32 %v3424, 16
        %v3510 = vor.u32 %v3508, %v3506
        %v3512 = vshll.u32 %v3425, 16
        %v3514 = vrot.slane %v3512, 1
        %v3515 = vsel %vm1950, %v3510, %v3514
        %v3516 = vshrl.u32 %v3425, 16
        %v3518 = vor.u32 %v3516, %v3514
        %v3520 = vshll.u32 %v3426, 16
        %v3522 = vrot.slane %v3520, 1
        %v3523 = vsel %vm1950, %v3518, %v3522
        %v3524 = vshrl.u32 %v3426, 16
        %v3526 = vor.u32 %v3524, %v3522
        %v3528 = vshll.u32 %v3427, 16
        %v3530 = vrot.slane %v3528, 1
        %v3531 = vsel %vm1950, %v3526, %v3530
        %v3532 = vshrl.u32 %v3427, 16
        %v3534 = vor.u32 %v3532, %v3530
        %v3536 = vshll.u32 %v3428, 16
        %v3538 = vrot.slane %v3536, 1
        %v3539 = vsel %vm1950, %v3534, %v3538
        %v3540 = vshrl.u32 %v3428, 16
        %v3542 = vor.u32 %v3540, %v3538
        %v3544 = vshll.u32 %v3429, 16
        %v3546 = vrot.slane %v3544, 1
        %v3547 = vsel %vm1950, %v3542, %v3546
        %v3548 = vshrl.u32 %v3429, 16
        %v3550 = vor.u32 %v3548, %v3546
        %v3552 = vshll.u32 %v3430, 16
        %v3554 = vrot.slane %v3552, 1
        %v3555 = vsel %vm1950, %v3550, %v3554
        %v3556 = vshrl.u32 %v3430, 16
        %v3558 = vor.u32 %v3556, %v3554
        %v3560 = vshll.u32 %v3431, 16
        %v3562 = vrot.slane %v3560, 1
        %v3563 = vsel %vm1950, %v3558, %v3562
        %v3596 = vunpack.c.l.b16 %v3333
        %v3597 = vunpack.c.l.b16 %v3334
        %v3598 = vunpack.c.l.b16 %v3335
        %v3599 = vunpack.c.l.b16 %v3336
        %v3600 = vunpack.c.l.b16 %v3337
        %v3601 = vunpack.c.l.b16 %v3338
        %v3602 = vunpack.c.l.b16 %v3339
        %v3603 = vunpack.c.l.b16 %v3340
        %v3604 = vunpack.c.l.b16 %v3341
        %v3605 = vunpack.c.l.b16 %v3342
        %v3606 = vunpack.c.l.b16 %v3343
        %v3607 = vunpack.c.l.b16 %v3344
        %v3608 = vunpack.c.l.b16 %v3345
        %v3609 = vunpack.c.l.b16 %v3346
        %v3610 = vunpack.c.l.b16 %v3347
        %v3611 = vunpack.c.l.b16 %v3348
        %v3612 = vpack.c.b16 %v3597, %v3596
        %v3613 = vpack.c.b16 %v3599, %v3598
        %v3614 = vpack.c.b16 %v3601, %v3600
        %v3615 = vpack.c.b16 %v3603, %v3602
        %v3616 = vpack.c.b16 %v3605, %v3604
        %v3617 = vpack.c.b16 %v3607, %v3606
        %v3618 = vpack.c.b16 %v3609, %v3608
        %v3619 = vpack.c.b16 %v3611, %v3610
        %3628 = vmatprep.subr.bf16.mxu0 0
        %3629 = vmatpush1.bf16.msra.mxu0 %v3619
        %3630 = vmatprep.subr.bf16.mxu0 0
        %3631 = vmatpush1.bf16.msra.mxu0 %v3618
        %3632 = vmatprep.subr.bf16.mxu0 0
        %3633 = vmatpush1.bf16.msra.mxu0 %v3617
        %3634 = vmatprep.subr.bf16.mxu0 0
        %3635 = vmatpush1.bf16.msra.mxu0 %v3616
        %3636 = vmatprep.subr.bf16.mxu0 0
        %3637 = vmatpush1.bf16.msra.mxu0 %v3615
        %3638 = vmatprep.subr.bf16.mxu0 0
        %3639 = vmatpush1.bf16.msra.mxu0 %v3614
        %3640 = vmatprep.subr.bf16.mxu0 0
        %3641 = vmatpush1.bf16.msra.mxu0 %v3613
        %3642 = vmatprep.subr.bf16.mxu0 0
        %3643 = vmatpush1.bf16.msra.mxu0 %v3612
        %3644 = vmatprep.subr.bf16.mxu0 0
        %3645 = vmatpush2.bf16.msra.mxu0 0
        %3646 = vmatprep.subr.bf16.mxu0 0
        %3647 = vmatpush2.bf16.msra.mxu0 0
        %3648 = vmatprep.subr.bf16.mxu0 0
        %3649 = vmatpush2.bf16.msra.mxu0 0
        %3650 = vmatprep.subr.bf16.mxu0 0
        %3651 = vmatpush2.bf16.msra.mxu0 0
        %3652 = vmatprep.subr.bf16.mxu0 0
        %3653 = vmatpush2.bf16.msra.mxu0 0
        %3654 = vmatprep.subr.bf16.mxu0 0
        %3655 = vmatpush2.bf16.msra.mxu0 0
        %3656 = vmatprep.subr.bf16.mxu0 0
        %3657 = vmatpush2.bf16.msra.mxu0 0
        %3658 = vmatprep.subr.bf16.mxu0 0
        %3659 = vmatpush2.bf16.msra.mxu0 0
        %3660 = vmatprep.mubr.bf16.mxu0 0
        %3661 = vmatmul.mubr.bf16.gmra.mxu0 %v3443
        %v3662 = vpop.f32.mrf.mxu0
        %v3663 = vadd.f32 0.0, %v3662
        %v3664 = vpop.f32.mrf.mxu0
        %v3665 = vpop.f32.mrf.mxu0
        %v3666 = vadd.f32 0.0, %v3665
        %v3667 = vpop.f32.mrf.mxu0
        %3668 = vmatprep.mubr.bf16.mxu0 0
        %3669 = vmatmul.mubr.bf16.gmra.mxu0 %v3451
        %v3670 = vpop.f32.mrf.mxu0
        %v3671 = vadd.f32 0.0, %v3670
        %v3672 = vpop.f32.mrf.mxu0
        %v3673 = vpop.f32.mrf.mxu0
        %v3674 = vadd.f32 0.0, %v3673
        %v3675 = vpop.f32.mrf.mxu0
        %3676 = vmatprep.mubr.bf16.mxu0 0
        %3677 = vmatmul.mubr.bf16.gmra.mxu0 %v3459
        %v3678 = vpop.f32.mrf.mxu0
        %v3679 = vadd.f32 0.0, %v3678
        %v3680 = vpop.f32.mrf.mxu0
        %v3681 = vpop.f32.mrf.mxu0
        %v3682 = vadd.f32 0.0, %v3681
        %v3683 = vpop.f32.mrf.mxu0
        %3684 = vmatprep.mubr.bf16.mxu0 0
        %3685 = vmatmul.mubr.bf16.gmra.mxu0 %v3467
        %v3686 = vpop.f32.mrf.mxu0
        %v3687 = vadd.f32 0.0, %v3686
        %v3688 = vpop.f32.mrf.mxu0
        %v3689 = vpop.f32.mrf.mxu0
        %v3690 = vadd.f32 0.0, %v3689
        %v3691 = vpop.f32.mrf.mxu0
        %3692 = vmatprep.mubr.bf16.mxu0 0
        %3693 = vmatmul.mubr.bf16.gmra.mxu0 %v3475
        %v3694 = vpop.f32.mrf.mxu0
        %v3695 = vadd.f32 0.0, %v3694
        %v3696 = vpop.f32.mrf.mxu0
        %v3697 = vpop.f32.mrf.mxu0
        %v3698 = vadd.f32 0.0, %v3697
        %v3699 = vpop.f32.mrf.mxu0
        %3700 = vmatprep.mubr.bf16.mxu0 0
        %3701 = vmatmul.mubr.bf16.gmra.mxu0 %v3483
        %v3702 = vpop.f32.mrf.mxu0
        %v3703 = vadd.f32 0.0, %v3702
        %v3704 = vpop.f32.mrf.mxu0
        %v3705 = vpop.f32.mrf.mxu0
        %v3706 = vadd.f32 0.0, %v3705
        %v3707 = vpop.f32.mrf.mxu0
        %3708 = vmatprep.mubr.bf16.mxu0 0
        %3709 = vmatmul.mubr.bf16.gmra.mxu0 %v3491
        %v3710 = vpop.f32.mrf.mxu0
        %v3711 = vadd.f32 0.0, %v3710
        %v3712 = vpop.f32.mrf.mxu0
        %v3713 = vpop.f32.mrf.mxu0
        %v3714 = vadd.f32 0.0, %v3713
        %v3715 = vpop.f32.mrf.mxu0
        %3716 = vmatprep.mubr.bf16.mxu0 0
        %3717 = vmatmul.mubr.bf16.gmra.mxu0 %v3499
        %v3718 = vpop.f32.mrf.mxu0
        %v3719 = vadd.f32 0.0, %v3718
        %v3720 = vpop.f32.mrf.mxu0
        %v3721 = vpop.f32.mrf.mxu0
        %v3722 = vadd.f32 0.0, %v3721
        %v3723 = vpop.f32.mrf.mxu0
        %3724 = vmatprep.mubr.bf16.mxu0 0
        %3725 = vmatmul.mubr.bf16.gmra.mxu0 %v3507
        %v3726 = vpop.f32.mrf.mxu0
        %v3727 = vadd.f32 0.0, %v3726
        %v3728 = vpop.f32.mrf.mxu0
        %v3729 = vpop.f32.mrf.mxu0
        %v3730 = vadd.f32 0.0, %v3729
        %v3731 = vpop.f32.mrf.mxu0
        %3732 = vmatprep.mubr.bf16.mxu0 0
        %3733 = vmatmul.mubr.bf16.gmra.mxu0 %v3515
        %v3734 = vpop.f32.mrf.mxu0
        %v3735 = vadd.f32 0.0, %v3734
        %v3736 = vpop.f32.mrf.mxu0
        %v3737 = vpop.f32.mrf.mxu0
        %v3738 = vadd.f32 0.0, %v3737
        %v3739 = vpop.f32.mrf.mxu0
        %3740 = vmatprep.mubr.bf16.mxu0 0
        %3741 = vmatmul.mubr.bf16.gmra.mxu0 %v3523
        %v3742 = vpop.f32.mrf.mxu0
        %v3743 = vadd.f32 0.0, %v3742
        %v3744 = vpop.f32.mrf.mxu0
        %v3745 = vpop.f32.mrf.mxu0
        %v3746 = vadd.f32 0.0, %v3745
        %v3747 = vpop.f32.mrf.mxu0
        %3748 = vmatprep.mubr.bf16.mxu0 0
        %3749 = vmatmul.mubr.bf16.gmra.mxu0 %v3531
        %v3750 = vpop.f32.mrf.mxu0
        %v3751 = vadd.f32 0.0, %v3750
        %v3752 = vpop.f32.mrf.mxu0
        %v3753 = vpop.f32.mrf.mxu0
        %v3754 = vadd.f32 0.0, %v3753
        %v3755 = vpop.f32.mrf.mxu0
        %3756 = vmatprep.mubr.bf16.mxu0 0
        %3757 = vmatmul.mubr.bf16.gmra.mxu0 %v3539
        %v3758 = vpop.f32.mrf.mxu0
        %v3759 = vadd.f32 0.0, %v3758
        %v3760 = vpop.f32.mrf.mxu0
        %v3761 = vpop.f32.mrf.mxu0
        %v3762 = vadd.f32 0.0, %v3761
        %v3763 = vpop.f32.mrf.mxu0
        %3764 = vmatprep.mubr.bf16.mxu0 0
        %3765 = vmatmul.mubr.bf16.gmra.mxu0 %v3547
        %v3766 = vpop.f32.mrf.mxu0
        %v3767 = vadd.f32 0.0, %v3766
        %v3768 = vpop.f32.mrf.mxu0
        %v3769 = vpop.f32.mrf.mxu0
        %v3770 = vadd.f32 0.0, %v3769
        %v3771 = vpop.f32.mrf.mxu0
        %3772 = vmatprep.mubr.bf16.mxu0 0
        %3773 = vmatmul.mubr.bf16.gmra.mxu0 %v3555
        %v3774 = vpop.f32.mrf.mxu0
        %v3775 = vadd.f32 0.0, %v3774
        %v3776 = vpop.f32.mrf.mxu0
        %v3777 = vpop.f32.mrf.mxu0
        %v3778 = vadd.f32 0.0, %v3777
        %v3779 = vpop.f32.mrf.mxu0
        %3780 = vmatprep.mubr.bf16.mxu0 0
        %3781 = vmatmul.mubr.bf16.gmra.mxu0 %v3563
        %v3782 = vpop.f32.mrf.mxu0
        %v3783 = vadd.f32 0.0, %v3782
        %v3784 = vpop.f32.mrf.mxu0
        %v3785 = vpop.f32.mrf.mxu0
        %v3786 = vadd.f32 0.0, %v3785
        %v3787 = vpop.f32.mrf.mxu0
        %3788 = vdwg.mxu0
        %v3789 = vadd.f32 %v3235, %v3663
        %v3790 = vadd.f32 %v3236, %v3666
        %v3791 = vadd.f32 %v3237, %v3671
        %v3792 = vadd.f32 %v3238, %v3674
        %v3793 = vadd.f32 %v3239, %v3679
        %v3794 = vadd.f32 %v3240, %v3682
        %v3795 = vadd.f32 %v3241, %v3687
        %v3796 = vadd.f32 %v3242, %v3690
        %v3797 = vadd.f32 %v3243, %v3695
        %v3798 = vadd.f32 %v3244, %v3698
        %v3799 = vadd.f32 %v3245, %v3703
        %v3800 = vadd.f32 %v3246, %v3706
        %v3801 = vadd.f32 %v3247, %v3711
        %v3802 = vadd.f32 %v3248, %v3714
        %v3803 = vadd.f32 %v3249, %v3719
        %v3804 = vadd.f32 %v3250, %v3722
        %v3805 = vadd.f32 %v3251, %v3727
        %v3806 = vadd.f32 %v3252, %v3730
        %v3807 = vadd.f32 %v3253, %v3735
        %v3808 = vadd.f32 %v3254, %v3738
        %v3809 = vadd.f32 %v3255, %v3743
        %v3810 = vadd.f32 %v3256, %v3746
        %v3811 = vadd.f32 %v3257, %v3751
        %v3812 = vadd.f32 %v3258, %v3754
        %v3813 = vadd.f32 %v3259, %v3759
        %v3814 = vadd.f32 %v3260, %v3762
        %v3815 = vadd.f32 %v3261, %v3767
        %v3816 = vadd.f32 %v3262, %v3770
        %v3817 = vadd.f32 %v3263, %v3775
        %v3818 = vadd.f32 %v3264, %v3778
        %v3819 = vadd.f32 %v3265, %v3783
        %v3820 = vadd.f32 %v3266, %v3786
        %v3821 = vld [vmem:[#allocation2 + $0x14] sm:$0x8]
        %v3822 = vld [vmem:[#allocation2 + $0x18] sm:$0xf]
        %v3823 = vld [vmem:[#allocation2 + $0x1c] sm:$0xf]
        %v3824 = vld [vmem:[#allocation2 + $0x20] sm:$0xf]
        %v3825 = vld [vmem:[#allocation2 + $0x24] sm:$0xf]
        %v3826 = vld [vmem:[#allocation2 + $0x28] sm:$0xf]
        %v3827 = vld [vmem:[#allocation2 + $0x2c] sm:$0xf]
        %v3828 = vld [vmem:[#allocation2 + $0x30] sm:$0xf]
        %v3829 = vld [vmem:[#allocation2 + $0x34] sm:$0xf]
        %v3830 = vld [vmem:[#allocation2 + $0x38] sm:$0xf]
        %v3831 = vld [vmem:[#allocation2 + $0x3c] sm:$0xf]
        %v3832 = vld [vmem:[#allocation2 + $0x40] sm:$0xf]
        %v3833 = vld [vmem:[#allocation2 + $0x44] sm:$0xf]
        %v3834 = vld [vmem:[#allocation2 + $0x48] sm:$0xf]
        %v3835 = vld [vmem:[#allocation2 + $0x4c] sm:$0xf]
        %v3836 = vld [vmem:[#allocation2 + $0x50] sm:$0xf]
        %v3837 = vld [vmem:[#allocation2 + $0x54] sm:$0xf]
        %v3838 = vld [vmem:[#allocation2 + $0x58] sm:$0xf]
        %v3839 = vld [vmem:[#allocation2 + $0x5c] sm:$0xf]
        %v3840 = vld [vmem:[#allocation2 + $0x60] sm:$0xf]
        %v3841 = vld [vmem:[#allocation2 + $0x64] sm:$0xf]
        %v3842 = vld [vmem:[#allocation2 + $0x68] sm:$0xf]
        %v3843 = vld [vmem:[#allocation2 + $0x6c] sm:$0xf]
        %v3844 = vld [vmem:[#allocation2 + $0x70] sm:$0xf]
        %v3845 = vld [vmem:[#allocation2 + $0x74] sm:$0xf]
        %v3846 = vld [vmem:[#allocation2 + $0x78] sm:$0xf]
        %v3847 = vld [vmem:[#allocation2 + $0x7c] sm:$0xf]
        %v3848 = vld [vmem:[#allocation2 + $0x80] sm:$0xf]
        %v3849 = vld [vmem:[#allocation2 + $0x84] sm:$0xf]
        %v3850 = vld [vmem:[#allocation2 + $0x88] sm:$0xf]
        %v3851 = vld [vmem:[#allocation2 + $0x8c] sm:$0xf]
        %v3852 = vld [vmem:[#allocation2 + $0x90] sm:$0xf]
        %v3853 = vld [vmem:[#allocation2 + $0x94] sm:$0xf]
        %v3854 = vmul.bf16 %v3821, %v893
        %v3855 = vmul.bf16 %v3822, %v903
        %v3856 = vmul.bf16 %v3823, %v909
        %v3857 = vmul.bf16 %v3824, %v903
        %v3858 = vmul.bf16 %v3825, %v909
        %v3859 = vmul.bf16 %v3826, %v903
        %v3860 = vmul.bf16 %v3827, %v909
        %v3861 = vmul.bf16 %v3828, %v903
        %v3862 = vmul.bf16 %v3829, %v909
        %v3863 = vmul.bf16 %v3830, %v903
        %v3864 = vmul.bf16 %v3831, %v909
        %v3865 = vmul.bf16 %v3832, %v903
        %v3866 = vmul.bf16 %v3833, %v909
        %v3867 = vmul.bf16 %v3834, %v903
        %v3868 = vmul.bf16 %v3835, %v909
        %v3869 = vmul.bf16 %v3836, %v903
        %v3870 = vmul.bf16 %v3837, %v909
        %v3871 = vmul.bf16 %v3838, %v903
        %v3872 = vmul.bf16 %v3839, %v909
        %v3873 = vmul.bf16 %v3840, %v903
        %v3874 = vmul.bf16 %v3841, %v909
        %v3875 = vmul.bf16 %v3842, %v903
        %v3876 = vmul.bf16 %v3843, %v909
        %v3877 = vmul.bf16 %v3844, %v903
        %v3878 = vmul.bf16 %v3845, %v909
        %v3879 = vmul.bf16 %v3846, %v903
        %v3880 = vmul.bf16 %v3847, %v909
        %v3881 = vmul.bf16 %v3848, %v903
        %v3882 = vmul.bf16 %v3849, %v909
        %v3883 = vmul.bf16 %v3850, %v903
        %v3884 = vmul.bf16 %v3851, %v909
        %v3885 = vmul.bf16 %v3852, %v903
        %v3886 = vmul.bf16 %v3853, %v908
        %v3887 = vld [vmem:[#allocation8 + $0x180] sm:$0xf]
        %v3888 = vld [vmem:[#allocation8 + $0x184] sm:$0xf]
        %v3889 = vld [vmem:[#allocation8 + $0x188] sm:$0xf]
        %v3890 = vld [vmem:[#allocation8 + $0x18c] sm:$0xf]
        %v3891 = vld [vmem:[#allocation8 + $0x190] sm:$0xf]
        %v3892 = vld [vmem:[#allocation8 + $0x194] sm:$0xf]
        %v3893 = vld [vmem:[#allocation8 + $0x198] sm:$0xf]
        %v3894 = vld [vmem:[#allocation8 + $0x19c] sm:$0xf]
        %v3895 = vld [vmem:[#allocation8 + $0x1a0] sm:$0xf]
        %v3896 = vld [vmem:[#allocation8 + $0x1a4] sm:$0xf]
        %v3897 = vld [vmem:[#allocation8 + $0x1a8] sm:$0xf]
        %v3898 = vld [vmem:[#allocation8 + $0x1ac] sm:$0xf]
        %v3899 = vld [vmem:[#allocation8 + $0x1b0] sm:$0xf]
        %v3900 = vld [vmem:[#allocation8 + $0x1b4] sm:$0xf]
        %v3901 = vld [vmem:[#allocation8 + $0x1b8] sm:$0xf]
        %v3902 = vld [vmem:[#allocation8 + $0x1bc] sm:$0xf]
        %v3936 = vunpack.c.l.b16 %v3854
        %v3937 = vunpack.c.l.b16 %v3855
        %v3938 = vunpack.c.l.b16 %v3856
        %v3939 = vunpack.c.l.b16 %v3857
        %v3940 = vunpack.c.l.b16 %v3858
        %v3941 = vunpack.c.l.b16 %v3859
        %v3942 = vunpack.c.l.b16 %v3860
        %v3943 = vunpack.c.l.b16 %v3861
        %v3944 = vunpack.c.l.b16 %v3862
        %v3945 = vunpack.c.l.b16 %v3863
        %v3946 = vunpack.c.l.b16 %v3864
        %v3947 = vunpack.c.l.b16 %v3865
        %v3948 = vunpack.c.l.b16 %v3866
        %v3949 = vunpack.c.l.b16 %v3867
        %v3950 = vunpack.c.l.b16 %v3868
        %v3951 = vunpack.c.l.b16 %v3869
        %v3952 = vunpack.c.l.b16 %v3870
        %v3953 = vunpack.c.l.b16 %v3871
        %v3954 = vunpack.c.l.b16 %v3872
        %v3955 = vunpack.c.l.b16 %v3873
        %v3956 = vunpack.c.l.b16 %v3874
        %v3957 = vunpack.c.l.b16 %v3875
        %v3958 = vunpack.c.l.b16 %v3876
        %v3959 = vunpack.c.l.b16 %v3877
        %v3960 = vunpack.c.l.b16 %v3878
        %v3961 = vunpack.c.l.b16 %v3879
        %v3962 = vunpack.c.l.b16 %v3880
        %v3963 = vunpack.c.l.b16 %v3881
        %v3964 = vunpack.c.l.b16 %v3882
        %v3965 = vunpack.c.l.b16 %v3883
        %v3966 = vunpack.c.l.b16 %v3884
        %v3967 = vunpack.c.l.b16 %v3885
        %v3968 = vunpack.c.l.b16 %v3886
        %v3969 = vpack.c.b16 %v3937, %v3936
        %v3970 = vpack.c.b16 %v3939, %v3938
        %v3971 = vpack.c.b16 %v3941, %v3940
        %v3972 = vpack.c.b16 %v3943, %v3942
        %v3973 = vpack.c.b16 %v3945, %v3944
        %v3974 = vpack.c.b16 %v3947, %v3946
        %v3975 = vpack.c.b16 %v3949, %v3948
        %v3976 = vpack.c.b16 %v3951, %v3950
        %v3977 = vpack.c.b16 %v3953, %v3952
        %v3978 = vpack.c.b16 %v3955, %v3954
        %v3979 = vpack.c.b16 %v3957, %v3956
        %v3980 = vpack.c.b16 %v3959, %v3958
        %v3981 = vpack.c.b16 %v3961, %v3960
        %v3982 = vpack.c.b16 %v3963, %v3962
        %v3983 = vpack.c.b16 %v3965, %v3964
        %v3984 = vpack.c.b16 %v3967, %v3966
        %v3985 = vpack.c.b16 %v3968, %v3968
        %v3987 = vshrl.u32 %v3969, 16
        %v3989 = vrot.slane %v3987, 3
        %v3990 = vshll.u32 %v3969, 16
        %v3992 = vrot.slane %v3990, 4
        %v3993 = vor.u32 %v3989, %v3992
        %v3995 = vshrl.u32 %v3970, 16
        %v3997 = vrot.slane %v3995, 3
        %v3998 = vshll.u32 %v3970, 16
        %v4000 = vrot.slane %v3998, 4
        %v4001 = vor.u32 %v3997, %v4000
        %v4002 = vsel %vm1367, %v3993, %v4001
        %v4004 = vshrl.u32 %v3971, 16
        %v4006 = vrot.slane %v4004, 3
        %v4007 = vshll.u32 %v3971, 16
        %v4009 = vrot.slane %v4007, 4
        %v4010 = vor.u32 %v4006, %v4009
        %v4011 = vsel %vm1367, %v4001, %v4010
        %v4013 = vshrl.u32 %v3972, 16
        %v4015 = vrot.slane %v4013, 3
        %v4016 = vshll.u32 %v3972, 16
        %v4018 = vrot.slane %v4016, 4
        %v4019 = vor.u32 %v4015, %v4018
        %v4020 = vsel %vm1367, %v4010, %v4019
        %v4022 = vshrl.u32 %v3973, 16
        %v4024 = vrot.slane %v4022, 3
        %v4025 = vshll.u32 %v3973, 16
        %v4027 = vrot.slane %v4025, 4
        %v4028 = vor.u32 %v4024, %v4027
        %v4029 = vsel %vm1367, %v4019, %v4028
        %v4031 = vshrl.u32 %v3974, 16
        %v4033 = vrot.slane %v4031, 3
        %v4034 = vshll.u32 %v3974, 16
        %v4036 = vrot.slane %v4034, 4
        %v4037 = vor.u32 %v4033, %v4036
        %v4038 = vsel %vm1367, %v4028, %v4037
        %v4040 = vshrl.u32 %v3975, 16
        %v4042 = vrot.slane %v4040, 3
        %v4043 = vshll.u32 %v3975, 16
        %v4045 = vrot.slane %v4043, 4
        %v4046 = vor.u32 %v4042, %v4045
        %v4047 = vsel %vm1367, %v4037, %v4046
        %v4049 = vshrl.u32 %v3976, 16
        %v4051 = vrot.slane %v4049, 3
        %v4052 = vshll.u32 %v3976, 16
        %v4054 = vrot.slane %v4052, 4
        %v4055 = vor.u32 %v4051, %v4054
        %v4056 = vsel %vm1367, %v4046, %v4055
        %v4058 = vshrl.u32 %v3977, 16
        %v4060 = vrot.slane %v4058, 3
        %v4061 = vshll.u32 %v3977, 16
        %v4063 = vrot.slane %v4061, 4
        %v4064 = vor.u32 %v4060, %v4063
        %v4065 = vsel %vm1367, %v4055, %v4064
        %v4067 = vshrl.u32 %v3978, 16
        %v4069 = vrot.slane %v4067, 3
        %v4070 = vshll.u32 %v3978, 16
        %v4072 = vrot.slane %v4070, 4
        %v4073 = vor.u32 %v4069, %v4072
        %v4074 = vsel %vm1367, %v4064, %v4073
        %v4076 = vshrl.u32 %v3979, 16
        %v4078 = vrot.slane %v4076, 3
        %v4079 = vshll.u32 %v3979, 16
        %v4081 = vrot.slane %v4079, 4
        %v4082 = vor.u32 %v4078, %v4081
        %v4083 = vsel %vm1367, %v4073, %v4082
        %v4085 = vshrl.u32 %v3980, 16
        %v4087 = vrot.slane %v4085, 3
        %v4088 = vshll.u32 %v3980, 16
        %v4090 = vrot.slane %v4088, 4
        %v4091 = vor.u32 %v4087, %v4090
        %v4092 = vsel %vm1367, %v4082, %v4091
        %v4094 = vshrl.u32 %v3981, 16
        %v4096 = vrot.slane %v4094, 3
        %v4097 = vshll.u32 %v3981, 16
        %v4099 = vrot.slane %v4097, 4
        %v4100 = vor.u32 %v4096, %v4099
        %v4101 = vsel %vm1367, %v4091, %v4100
        %v4103 = vshrl.u32 %v3982, 16
        %v4105 = vrot.slane %v4103, 3
        %v4106 = vshll.u32 %v3982, 16
        %v4108 = vrot.slane %v4106, 4
        %v4109 = vor.u32 %v4105, %v4108
        %v4110 = vsel %vm1367, %v4100, %v4109
        %v4112 = vshrl.u32 %v3983, 16
        %v4114 = vrot.slane %v4112, 3
        %v4115 = vshll.u32 %v3983, 16
        %v4117 = vrot.slane %v4115, 4
        %v4118 = vor.u32 %v4114, %v4117
        %v4119 = vsel %vm1367, %v4109, %v4118
        %v4121 = vshrl.u32 %v3984, 16
        %v4123 = vrot.slane %v4121, 3
        %v4124 = vshll.u32 %v3984, 16
        %v4126 = vrot.slane %v4124, 4
        %v4127 = vor.u32 %v4123, %v4126
        %v4128 = vsel %vm1367, %v4118, %v4127
        %v4130 = vshrl.u32 %v3985, 16
        %v4132 = vrot.slane %v4130, 3
        %v4133 = vshll.u32 %v3985, 16
        %v4135 = vrot.slane %v4133, 4
        %v4136 = vor.u32 %v4132, %v4135
        %v4137 = vsel %vm1367, %v4127, %v4136
        %v4170 = vunpack.c.l.b16 %v3887
        %v4171 = vunpack.c.l.b16 %v3888
        %v4172 = vunpack.c.l.b16 %v3889
        %v4173 = vunpack.c.l.b16 %v3890
        %v4174 = vunpack.c.l.b16 %v3891
        %v4175 = vunpack.c.l.b16 %v3892
        %v4176 = vunpack.c.l.b16 %v3893
        %v4177 = vunpack.c.l.b16 %v3894
        %v4178 = vunpack.c.l.b16 %v3895
        %v4179 = vunpack.c.l.b16 %v3896
        %v4180 = vunpack.c.l.b16 %v3897
        %v4181 = vunpack.c.l.b16 %v3898
        %v4182 = vunpack.c.l.b16 %v3899
        %v4183 = vunpack.c.l.b16 %v3900
        %v4184 = vunpack.c.l.b16 %v3901
        %v4185 = vunpack.c.l.b16 %v3902
        %v4186 = vpack.c.b16 %v4171, %v4170
        %v4187 = vpack.c.b16 %v4173, %v4172
        %v4188 = vpack.c.b16 %v4175, %v4174
        %v4189 = vpack.c.b16 %v4177, %v4176
        %v4190 = vpack.c.b16 %v4179, %v4178
        %v4191 = vpack.c.b16 %v4181, %v4180
        %v4192 = vpack.c.b16 %v4183, %v4182
        %v4193 = vpack.c.b16 %v4185, %v4184
        %4202 = vmatprep.subr.bf16.mxu0 0
        %4203 = vmatpush1.bf16.msra.mxu0 %v4193
        %4204 = vmatprep.subr.bf16.mxu0 0
        %4205 = vmatpush1.bf16.msra.mxu0 %v4192
        %4206 = vmatprep.subr.bf16.mxu0 0
        %4207 = vmatpush1.bf16.msra.mxu0 %v4191
        %4208 = vmatprep.subr.bf16.mxu0 0
        %4209 = vmatpush1.bf16.msra.mxu0 %v4190
        %4210 = vmatprep.subr.bf16.mxu0 0
        %4211 = vmatpush1.bf16.msra.mxu0 %v4189
        %4212 = vmatprep.subr.bf16.mxu0 0
        %4213 = vmatpush1.bf16.msra.mxu0 %v4188
        %4214 = vmatprep.subr.bf16.mxu0 0
        %4215 = vmatpush1.bf16.msra.mxu0 %v4187
        %4216 = vmatprep.subr.bf16.mxu0 0
        %4217 = vmatpush1.bf16.msra.mxu0 %v4186
        %4218 = vmatprep.subr.bf16.mxu0 0
        %4219 = vmatpush2.bf16.msra.mxu0 0
        %4220 = vmatprep.subr.bf16.mxu0 0
        %4221 = vmatpush2.bf16.msra.mxu0 0
        %4222 = vmatprep.subr.bf16.mxu0 0
        %4223 = vmatpush2.bf16.msra.mxu0 0
        %4224 = vmatprep.subr.bf16.mxu0 0
        %4225 = vmatpush2.bf16.msra.mxu0 0
        %4226 = vmatprep.subr.bf16.mxu0 0
        %4227 = vmatpush2.bf16.msra.mxu0 0
        %4228 = vmatprep.subr.bf16.mxu0 0
        %4229 = vmatpush2.bf16.msra.mxu0 0
        %4230 = vmatprep.subr.bf16.mxu0 0
        %4231 = vmatpush2.bf16.msra.mxu0 0
        %4232 = vmatprep.subr.bf16.mxu0 0
        %4233 = vmatpush2.bf16.msra.mxu0 0
        %4234 = vmatprep.mubr.bf16.mxu0 0
        %4235 = vmatmul.mubr.bf16.gmra.mxu0 %v4002
        %v4236 = vpop.f32.mrf.mxu0
        %v4237 = vadd.f32 0.0, %v4236
        %v4238 = vpop.f32.mrf.mxu0
        %v4239 = vpop.f32.mrf.mxu0
        %v4240 = vadd.f32 0.0, %v4239
        %v4241 = vpop.f32.mrf.mxu0
        %4242 = vmatprep.mubr.bf16.mxu0 0
        %4243 = vmatmul.mubr.bf16.gmra.mxu0 %v4011
        %v4244 = vpop.f32.mrf.mxu0
        %v4245 = vadd.f32 0.0, %v4244
        %v4246 = vpop.f32.mrf.mxu0
        %v4247 = vpop.f32.mrf.mxu0
        %v4248 = vadd.f32 0.0, %v4247
        %v4249 = vpop.f32.mrf.mxu0
        %4250 = vmatprep.mubr.bf16.mxu0 0
        %4251 = vmatmul.mubr.bf16.gmra.mxu0 %v4020
        %v4252 = vpop.f32.mrf.mxu0
        %v4253 = vadd.f32 0.0, %v4252
        %v4254 = vpop.f32.mrf.mxu0
        %v4255 = vpop.f32.mrf.mxu0
        %v4256 = vadd.f32 0.0, %v4255
        %v4257 = vpop.f32.mrf.mxu0
        %4258 = vmatprep.mubr.bf16.mxu0 0
        %4259 = vmatmul.mubr.bf16.gmra.mxu0 %v4029
        %v4260 = vpop.f32.mrf.mxu0
        %v4261 = vadd.f32 0.0, %v4260
        %v4262 = vpop.f32.mrf.mxu0
        %v4263 = vpop.f32.mrf.mxu0
        %v4264 = vadd.f32 0.0, %v4263
        %v4265 = vpop.f32.mrf.mxu0
        %4266 = vmatprep.mubr.bf16.mxu0 0
        %4267 = vmatmul.mubr.bf16.gmra.mxu0 %v4038
        %v4268 = vpop.f32.mrf.mxu0
        %v4269 = vadd.f32 0.0, %v4268
        %v4270 = vpop.f32.mrf.mxu0
        %v4271 = vpop.f32.mrf.mxu0
        %v4272 = vadd.f32 0.0, %v4271
        %v4273 = vpop.f32.mrf.mxu0
        %4274 = vmatprep.mubr.bf16.mxu0 0
        %4275 = vmatmul.mubr.bf16.gmra.mxu0 %v4047
        %v4276 = vpop.f32.mrf.mxu0
        %v4277 = vadd.f32 0.0, %v4276
        %v4278 = vpop.f32.mrf.mxu0
        %v4279 = vpop.f32.mrf.mxu0
        %v4280 = vadd.f32 0.0, %v4279
        %v4281 = vpop.f32.mrf.mxu0
        %4282 = vmatprep.mubr.bf16.mxu0 0
        %4283 = vmatmul.mubr.bf16.gmra.mxu0 %v4056
        %v4284 = vpop.f32.mrf.mxu0
        %v4285 = vadd.f32 0.0, %v4284
        %v4286 = vpop.f32.mrf.mxu0
        %v4287 = vpop.f32.mrf.mxu0
        %v4288 = vadd.f32 0.0, %v4287
        %v4289 = vpop.f32.mrf.mxu0
        %4290 = vmatprep.mubr.bf16.mxu0 0
        %4291 = vmatmul.mubr.bf16.gmra.mxu0 %v4065
        %v4292 = vpop.f32.mrf.mxu0
        %v4293 = vadd.f32 0.0, %v4292
        %v4294 = vpop.f32.mrf.mxu0
        %v4295 = vpop.f32.mrf.mxu0
        %v4296 = vadd.f32 0.0, %v4295
        %v4297 = vpop.f32.mrf.mxu0
        %4298 = vmatprep.mubr.bf16.mxu0 0
        %4299 = vmatmul.mubr.bf16.gmra.mxu0 %v4074
        %v4300 = vpop.f32.mrf.mxu0
        %v4301 = vadd.f32 0.0, %v4300
        %v4302 = vpop.f32.mrf.mxu0
        %v4303 = vpop.f32.mrf.mxu0
        %v4304 = vadd.f32 0.0, %v4303
        %v4305 = vpop.f32.mrf.mxu0
        %4306 = vmatprep.mubr.bf16.mxu0 0
        %4307 = vmatmul.mubr.bf16.gmra.mxu0 %v4083
        %v4308 = vpop.f32.mrf.mxu0
        %v4309 = vadd.f32 0.0, %v4308
        %v4310 = vpop.f32.mrf.mxu0
        %v4311 = vpop.f32.mrf.mxu0
        %v4312 = vadd.f32 0.0, %v4311
        %v4313 = vpop.f32.mrf.mxu0
        %4314 = vmatprep.mubr.bf16.mxu0 0
        %4315 = vmatmul.mubr.bf16.gmra.mxu0 %v4092
        %v4316 = vpop.f32.mrf.mxu0
        %v4317 = vadd.f32 0.0, %v4316
        %v4318 = vpop.f32.mrf.mxu0
        %v4319 = vpop.f32.mrf.mxu0
        %v4320 = vadd.f32 0.0, %v4319
        %v4321 = vpop.f32.mrf.mxu0
        %4322 = vmatprep.mubr.bf16.mxu0 0
        %4323 = vmatmul.mubr.bf16.gmra.mxu0 %v4101
        %v4324 = vpop.f32.mrf.mxu0
        %v4325 = vadd.f32 0.0, %v4324
        %v4326 = vpop.f32.mrf.mxu0
        %v4327 = vpop.f32.mrf.mxu0
        %v4328 = vadd.f32 0.0, %v4327
        %v4329 = vpop.f32.mrf.mxu0
        %4330 = vmatprep.mubr.bf16.mxu0 0
        %4331 = vmatmul.mubr.bf16.gmra.mxu0 %v4110
        %v4332 = vpop.f32.mrf.mxu0
        %v4333 = vadd.f32 0.0, %v4332
        %v4334 = vpop.f32.mrf.mxu0
        %v4335 = vpop.f32.mrf.mxu0
        %v4336 = vadd.f32 0.0, %v4335
        %v4337 = vpop.f32.mrf.mxu0
        %4338 = vmatprep.mubr.bf16.mxu0 0
        %4339 = vmatmul.mubr.bf16.gmra.mxu0 %v4119
        %v4340 = vpop.f32.mrf.mxu0
        %v4341 = vadd.f32 0.0, %v4340
        %v4342 = vpop.f32.mrf.mxu0
        %v4343 = vpop.f32.mrf.mxu0
        %v4344 = vadd.f32 0.0, %v4343
        %v4345 = vpop.f32.mrf.mxu0
        %4346 = vmatprep.mubr.bf16.mxu0 0
        %4347 = vmatmul.mubr.bf16.gmra.mxu0 %v4128
        %v4348 = vpop.f32.mrf.mxu0
        %v4349 = vadd.f32 0.0, %v4348
        %v4350 = vpop.f32.mrf.mxu0
        %v4351 = vpop.f32.mrf.mxu0
        %v4352 = vadd.f32 0.0, %v4351
        %v4353 = vpop.f32.mrf.mxu0
        %4354 = vmatprep.mubr.bf16.mxu0 0
        %4355 = vmatmul.mubr.bf16.gmra.mxu0 %v4137
        %v4356 = vpop.f32.mrf.mxu0
        %v4357 = vadd.f32 0.0, %v4356
        %v4358 = vpop.f32.mrf.mxu0
        %v4359 = vpop.f32.mrf.mxu0
        %v4360 = vadd.f32 0.0, %v4359
        %v4361 = vpop.f32.mrf.mxu0
        %4362 = vdwg.mxu0
        %v4363 = vadd.f32 %v3789, %v4237
        %v4364 = vadd.f32 %v3790, %v4240
        %v4365 = vadd.f32 %v3791, %v4245
        %v4366 = vadd.f32 %v3792, %v4248
        %v4367 = vadd.f32 %v3793, %v4253
        %v4368 = vadd.f32 %v3794, %v4256
        %v4369 = vadd.f32 %v3795, %v4261
        %v4370 = vadd.f32 %v3796, %v4264
        %v4371 = vadd.f32 %v3797, %v4269
        %v4372 = vadd.f32 %v3798, %v4272
        %v4373 = vadd.f32 %v3799, %v4277
        %v4374 = vadd.f32 %v3800, %v4280
        %v4375 = vadd.f32 %v3801, %v4285
        %v4376 = vadd.f32 %v3802, %v4288
        %v4377 = vadd.f32 %v3803, %v4293
        %v4378 = vadd.f32 %v3804, %v4296
        %v4379 = vadd.f32 %v3805, %v4301
        %v4380 = vadd.f32 %v3806, %v4304
        %v4381 = vadd.f32 %v3807, %v4309
        %v4382 = vadd.f32 %v3808, %v4312
        %v4383 = vadd.f32 %v3809, %v4317
        %v4384 = vadd.f32 %v3810, %v4320
        %v4385 = vadd.f32 %v3811, %v4325
        %v4386 = vadd.f32 %v3812, %v4328
        %v4387 = vadd.f32 %v3813, %v4333
        %v4388 = vadd.f32 %v3814, %v4336
        %v4389 = vadd.f32 %v3815, %v4341
        %v4390 = vadd.f32 %v3816, %v4344
        %v4391 = vadd.f32 %v3817, %v4349
        %v4392 = vadd.f32 %v3818, %v4352
        %v4393 = vadd.f32 %v3819, %v4357
        %v4394 = vadd.f32 %v3820, %v4360
        %v4395 = vld [vmem:[#allocation8 + $0x1c0] sm:$0xf]
        %v4396 = vld [vmem:[#allocation8 + $0x1c4] sm:$0xf]
        %v4397 = vld [vmem:[#allocation8 + $0x1c8] sm:$0xf]
        %v4398 = vld [vmem:[#allocation8 + $0x1cc] sm:$0xf]
        %v4399 = vld [vmem:[#allocation8 + $0x1d0] sm:$0xf]
        %v4400 = vld [vmem:[#allocation8 + $0x1d4] sm:$0xf]
        %v4401 = vld [vmem:[#allocation8 + $0x1d8] sm:$0xf]
        %v4402 = vld [vmem:[#allocation8 + $0x1dc] sm:$0xf]
        %v4403 = vld [vmem:[#allocation8 + $0x1e0] sm:$0xf]
        %v4404 = vld [vmem:[#allocation8 + $0x1e4] sm:$0xf]
        %v4405 = vld [vmem:[#allocation8 + $0x1e8] sm:$0xf]
        %v4406 = vld [vmem:[#allocation8 + $0x1ec] sm:$0xf]
        %v4407 = vld [vmem:[#allocation8 + $0x1f0] sm:$0xf]
        %v4408 = vld [vmem:[#allocation8 + $0x1f4] sm:$0xf]
        %v4409 = vld [vmem:[#allocation8 + $0x1f8] sm:$0xf]
        %v4410 = vld [vmem:[#allocation8 + $0x1fc] sm:$0xf]
        %v4443 = vunpack.c.l.b16 %v3822
        %v4444 = vunpack.c.l.b16 %v3823
        %v4445 = vunpack.c.l.b16 %v3824
        %v4446 = vunpack.c.l.b16 %v3825
        %v4447 = vunpack.c.l.b16 %v3826
        %v4448 = vunpack.c.l.b16 %v3827
        %v4449 = vunpack.c.l.b16 %v3828
        %v4450 = vunpack.c.l.b16 %v3829
        %v4451 = vunpack.c.l.b16 %v3830
        %v4452 = vunpack.c.l.b16 %v3831
        %v4453 = vunpack.c.l.b16 %v3832
        %v4454 = vunpack.c.l.b16 %v3833
        %v4455 = vunpack.c.l.b16 %v3834
        %v4456 = vunpack.c.l.b16 %v3835
        %v4457 = vunpack.c.l.b16 %v3836
        %v4458 = vunpack.c.l.b16 %v3837
        %v4459 = vunpack.c.l.b16 %v3838
        %v4460 = vunpack.c.l.b16 %v3839
        %v4461 = vunpack.c.l.b16 %v3840
        %v4462 = vunpack.c.l.b16 %v3841
        %v4463 = vunpack.c.l.b16 %v3842
        %v4464 = vunpack.c.l.b16 %v3843
        %v4465 = vunpack.c.l.b16 %v3844
        %v4466 = vunpack.c.l.b16 %v3845
        %v4467 = vunpack.c.l.b16 %v3846
        %v4468 = vunpack.c.l.b16 %v3847
        %v4469 = vunpack.c.l.b16 %v3848
        %v4470 = vunpack.c.l.b16 %v3849
        %v4471 = vunpack.c.l.b16 %v3850
        %v4472 = vunpack.c.l.b16 %v3851
        %v4473 = vunpack.c.l.b16 %v3852
        %v4474 = vunpack.c.l.b16 %v3853
        %v4475 = vpack.c.b16 %v4444, %v4443
        %v4476 = vpack.c.b16 %v4446, %v4445
        %v4477 = vpack.c.b16 %v4448, %v4447
        %v4478 = vpack.c.b16 %v4450, %v4449
        %v4479 = vpack.c.b16 %v4452, %v4451
        %v4480 = vpack.c.b16 %v4454, %v4453
        %v4481 = vpack.c.b16 %v4456, %v4455
        %v4482 = vpack.c.b16 %v4458, %v4457
        %v4483 = vpack.c.b16 %v4460, %v4459
        %v4484 = vpack.c.b16 %v4462, %v4461
        %v4485 = vpack.c.b16 %v4464, %v4463
        %v4486 = vpack.c.b16 %v4466, %v4465
        %v4487 = vpack.c.b16 %v4468, %v4467
        %v4488 = vpack.c.b16 %v4470, %v4469
        %v4489 = vpack.c.b16 %v4472, %v4471
        %v4490 = vpack.c.b16 %v4474, %v4473
        %v4523 = vunpack.c.l.b16 %v4395
        %v4524 = vunpack.c.l.b16 %v4396
        %v4525 = vunpack.c.l.b16 %v4397
        %v4526 = vunpack.c.l.b16 %v4398
        %v4527 = vunpack.c.l.b16 %v4399
        %v4528 = vunpack.c.l.b16 %v4400
        %v4529 = vunpack.c.l.b16 %v4401
        %v4530 = vunpack.c.l.b16 %v4402
        %v4531 = vunpack.c.l.b16 %v4403
        %v4532 = vunpack.c.l.b16 %v4404
        %v4533 = vunpack.c.l.b16 %v4405
        %v4534 = vunpack.c.l.b16 %v4406
        %v4535 = vunpack.c.l.b16 %v4407
        %v4536 = vunpack.c.l.b16 %v4408
        %v4537 = vunpack.c.l.b16 %v4409
        %v4538 = vunpack.c.l.b16 %v4410
        %v4539 = vpack.c.b16 %v4524, %v4523
        %v4540 = vpack.c.b16 %v4526, %v4525
        %v4541 = vpack.c.b16 %v4528, %v4527
        %v4542 = vpack.c.b16 %v4530, %v4529
        %v4543 = vpack.c.b16 %v4532, %v4531
        %v4544 = vpack.c.b16 %v4534, %v4533
        %v4545 = vpack.c.b16 %v4536, %v4535
        %v4546 = vpack.c.b16 %v4538, %v4537
        %4555 = vmatprep.subr.bf16.mxu0 0
        %4556 = vmatpush1.bf16.msra.mxu0 %v4546
        %4557 = vmatprep.subr.bf16.mxu0 0
        %4558 = vmatpush1.bf16.msra.mxu0 %v4545
        %4559 = vmatprep.subr.bf16.mxu0 0
        %4560 = vmatpush1.bf16.msra.mxu0 %v4544
        %4561 = vmatprep.subr.bf16.mxu0 0
        %4562 = vmatpush1.bf16.msra.mxu0 %v4543
        %4563 = vmatprep.subr.bf16.mxu0 0
        %4564 = vmatpush1.bf16.msra.mxu0 %v4542
        %4565 = vmatprep.subr.bf16.mxu0 0
        %4566 = vmatpush1.bf16.msra.mxu0 %v4541
        %4567 = vmatprep.subr.bf16.mxu0 0
        %4568 = vmatpush1.bf16.msra.mxu0 %v4540
        %4569 = vmatprep.subr.bf16.mxu0 0
        %4570 = vmatpush1.bf16.msra.mxu0 %v4539
        %4571 = vmatprep.subr.bf16.mxu0 0
        %4572 = vmatpush2.bf16.msra.mxu0 0
        %4573 = vmatprep.subr.bf16.mxu0 0
        %4574 = vmatpush2.bf16.msra.mxu0 0
        %4575 = vmatprep.subr.bf16.mxu0 0
        %4576 = vmatpush2.bf16.msra.mxu0 0
        %4577 = vmatprep.subr.bf16.mxu0 0
        %4578 = vmatpush2.bf16.msra.mxu0 0
        %4579 = vmatprep.subr.bf16.mxu0 0
        %4580 = vmatpush2.bf16.msra.mxu0 0
        %4581 = vmatprep.subr.bf16.mxu0 0
        %4582 = vmatpush2.bf16.msra.mxu0 0
        %4583 = vmatprep.subr.bf16.mxu0 0
        %4584 = vmatpush2.bf16.msra.mxu0 0
        %4585 = vmatprep.subr.bf16.mxu0 0
        %4586 = vmatpush2.bf16.msra.mxu0 0
        %4587 = vmatprep.mubr.bf16.mxu0 0
        %4588 = vmatmul.mubr.bf16.gmra.mxu0 %v4475
        %v4589 = vpop.f32.mrf.mxu0
        %v4590 = vadd.f32 0.0, %v4589
        %v4591 = vpop.f32.mrf.mxu0
        %v4592 = vpop.f32.mrf.mxu0
        %v4593 = vadd.f32 0.0, %v4592
        %v4594 = vpop.f32.mrf.mxu0
        %4595 = vmatprep.mubr.bf16.mxu0 0
        %4596 = vmatmul.mubr.bf16.gmra.mxu0 %v4476
        %v4597 = vpop.f32.mrf.mxu0
        %v4598 = vadd.f32 0.0, %v4597
        %v4599 = vpop.f32.mrf.mxu0
        %v4600 = vpop.f32.mrf.mxu0
        %v4601 = vadd.f32 0.0, %v4600
        %v4602 = vpop.f32.mrf.mxu0
        %4603 = vmatprep.mubr.bf16.mxu0 0
        %4604 = vmatmul.mubr.bf16.gmra.mxu0 %v4477
        %v4605 = vpop.f32.mrf.mxu0
        %v4606 = vadd.f32 0.0, %v4605
        %v4607 = vpop.f32.mrf.mxu0
        %v4608 = vpop.f32.mrf.mxu0
        %v4609 = vadd.f32 0.0, %v4608
        %v4610 = vpop.f32.mrf.mxu0
        %4611 = vmatprep.mubr.bf16.mxu0 0
        %4612 = vmatmul.mubr.bf16.gmra.mxu0 %v4478
        %v4613 = vpop.f32.mrf.mxu0
        %v4614 = vadd.f32 0.0, %v4613
        %v4615 = vpop.f32.mrf.mxu0
        %v4616 = vpop.f32.mrf.mxu0
        %v4617 = vadd.f32 0.0, %v4616
        %v4618 = vpop.f32.mrf.mxu0
        %4619 = vmatprep.mubr.bf16.mxu0 0
        %4620 = vmatmul.mubr.bf16.gmra.mxu0 %v4479
        %v4621 = vpop.f32.mrf.mxu0
        %v4622 = vadd.f32 0.0, %v4621
        %v4623 = vpop.f32.mrf.mxu0
        %v4624 = vpop.f32.mrf.mxu0
        %v4625 = vadd.f32 0.0, %v4624
        %v4626 = vpop.f32.mrf.mxu0
        %4627 = vmatprep.mubr.bf16.mxu0 0
        %4628 = vmatmul.mubr.bf16.gmra.mxu0 %v4480
        %v4629 = vpop.f32.mrf.mxu0
        %v4630 = vadd.f32 0.0, %v4629
        %v4631 = vpop.f32.mrf.mxu0
        %v4632 = vpop.f32.mrf.mxu0
        %v4633 = vadd.f32 0.0, %v4632
        %v4634 = vpop.f32.mrf.mxu0
        %4635 = vmatprep.mubr.bf16.mxu0 0
        %4636 = vmatmul.mubr.bf16.gmra.mxu0 %v4481
        %v4637 = vpop.f32.mrf.mxu0
        %v4638 = vadd.f32 0.0, %v4637
        %v4639 = vpop.f32.mrf.mxu0
        %v4640 = vpop.f32.mrf.mxu0
        %v4641 = vadd.f32 0.0, %v4640
        %v4642 = vpop.f32.mrf.mxu0
        %4643 = vmatprep.mubr.bf16.mxu0 0
        %4644 = vmatmul.mubr.bf16.gmra.mxu0 %v4482
        %v4645 = vpop.f32.mrf.mxu0
        %v4646 = vadd.f32 0.0, %v4645
        %v4647 = vpop.f32.mrf.mxu0
        %v4648 = vpop.f32.mrf.mxu0
        %v4649 = vadd.f32 0.0, %v4648
        %v4650 = vpop.f32.mrf.mxu0
        %4651 = vmatprep.mubr.bf16.mxu0 0
        %4652 = vmatmul.mubr.bf16.gmra.mxu0 %v4483
        %v4653 = vpop.f32.mrf.mxu0
        %v4654 = vadd.f32 0.0, %v4653
        %v4655 = vpop.f32.mrf.mxu0
        %v4656 = vpop.f32.mrf.mxu0
        %v4657 = vadd.f32 0.0, %v4656
        %v4658 = vpop.f32.mrf.mxu0
        %4659 = vmatprep.mubr.bf16.mxu0 0
        %4660 = vmatmul.mubr.bf16.gmra.mxu0 %v4484
        %v4661 = vpop.f32.mrf.mxu0
        %v4662 = vadd.f32 0.0, %v4661
        %v4663 = vpop.f32.mrf.mxu0
        %v4664 = vpop.f32.mrf.mxu0
        %v4665 = vadd.f32 0.0, %v4664
        %v4666 = vpop.f32.mrf.mxu0
        %4667 = vmatprep.mubr.bf16.mxu0 0
        %4668 = vmatmul.mubr.bf16.gmra.mxu0 %v4485
        %v4669 = vpop.f32.mrf.mxu0
        %v4670 = vadd.f32 0.0, %v4669
        %v4671 = vpop.f32.mrf.mxu0
        %v4672 = vpop.f32.mrf.mxu0
        %v4673 = vadd.f32 0.0, %v4672
        %v4674 = vpop.f32.mrf.mxu0
        %4675 = vmatprep.mubr.bf16.mxu0 0
        %4676 = vmatmul.mubr.bf16.gmra.mxu0 %v4486
        %v4677 = vpop.f32.mrf.mxu0
        %v4678 = vadd.f32 0.0, %v4677
        %v4679 = vpop.f32.mrf.mxu0
        %v4680 = vpop.f32.mrf.mxu0
        %v4681 = vadd.f32 0.0, %v4680
        %v4682 = vpop.f32.mrf.mxu0
        %4683 = vmatprep.mubr.bf16.mxu0 0
        %4684 = vmatmul.mubr.bf16.gmra.mxu0 %v4487
        %v4685 = vpop.f32.mrf.mxu0
        %v4686 = vadd.f32 0.0, %v4685
        %v4687 = vpop.f32.mrf.mxu0
        %v4688 = vpop.f32.mrf.mxu0
        %v4689 = vadd.f32 0.0, %v4688
        %v4690 = vpop.f32.mrf.mxu0
        %4691 = vmatprep.mubr.bf16.mxu0 0
        %4692 = vmatmul.mubr.bf16.gmra.mxu0 %v4488
        %v4693 = vpop.f32.mrf.mxu0
        %v4694 = vadd.f32 0.0, %v4693
        %v4695 = vpop.f32.mrf.mxu0
        %v4696 = vpop.f32.mrf.mxu0
        %v4697 = vadd.f32 0.0, %v4696
        %v4698 = vpop.f32.mrf.mxu0
        %4699 = vmatprep.mubr.bf16.mxu0 0
        %4700 = vmatmul.mubr.bf16.gmra.mxu0 %v4489
        %v4701 = vpop.f32.mrf.mxu0
        %v4702 = vadd.f32 0.0, %v4701
        %v4703 = vpop.f32.mrf.mxu0
        %v4704 = vpop.f32.mrf.mxu0
        %v4705 = vadd.f32 0.0, %v4704
        %v4706 = vpop.f32.mrf.mxu0
        %4707 = vmatprep.mubr.bf16.mxu0 0
        %4708 = vmatmul.mubr.bf16.gmra.mxu0 %v4490
        %v4709 = vpop.f32.mrf.mxu0
        %v4710 = vadd.f32 0.0, %v4709
        %v4711 = vpop.f32.mrf.mxu0
        %v4712 = vpop.f32.mrf.mxu0
        %v4713 = vadd.f32 0.0, %v4712
        %v4714 = vpop.f32.mrf.mxu0
        %4715 = vdwg.mxu0
        %v4716 = vadd.f32 %v4363, %v4590
        %v4717 = vadd.f32 %v4364, %v4593
        %v4718 = vadd.f32 %v4365, %v4598
        %v4719 = vadd.f32 %v4366, %v4601
        %v4720 = vadd.f32 %v4367, %v4606
        %v4721 = vadd.f32 %v4368, %v4609
        %v4722 = vadd.f32 %v4369, %v4614
        %v4723 = vadd.f32 %v4370, %v4617
        %v4724 = vadd.f32 %v4371, %v4622
        %v4725 = vadd.f32 %v4372, %v4625
        %v4726 = vadd.f32 %v4373, %v4630
        %v4727 = vadd.f32 %v4374, %v4633
        %v4728 = vadd.f32 %v4375, %v4638
        %v4729 = vadd.f32 %v4376, %v4641
        %v4730 = vadd.f32 %v4377, %v4646
        %v4731 = vadd.f32 %v4378, %v4649
        %v4732 = vadd.f32 %v4379, %v4654
        %v4733 = vadd.f32 %v4380, %v4657
        %v4734 = vadd.f32 %v4381, %v4662
        %v4735 = vadd.f32 %v4382, %v4665
        %v4736 = vadd.f32 %v4383, %v4670
        %v4737 = vadd.f32 %v4384, %v4673
        %v4738 = vadd.f32 %v4385, %v4678
        %v4739 = vadd.f32 %v4386, %v4681
        %v4740 = vadd.f32 %v4387, %v4686
        %v4741 = vadd.f32 %v4388, %v4689
        %v4742 = vadd.f32 %v4389, %v4694
        %v4743 = vadd.f32 %v4390, %v4697
        %v4744 = vadd.f32 %v4391, %v4702
        %v4745 = vadd.f32 %v4392, %v4705
        %v4746 = vadd.f32 %v4393, %v4710
        %v4747 = vadd.f32 %v4394, %v4713
        %v4748 = vld [vmem:[#allocation2 + $0x18] sm:$0xf]
        %v4749 = vld [vmem:[#allocation2 + $0x1c] sm:$0xf]
        %v4750 = vld [vmem:[#allocation2 + $0x20] sm:$0xf]
        %v4751 = vld [vmem:[#allocation2 + $0x24] sm:$0xf]
        %v4752 = vld [vmem:[#allocation2 + $0x28] sm:$0xf]
        %v4753 = vld [vmem:[#allocation2 + $0x2c] sm:$0xf]
        %v4754 = vld [vmem:[#allocation2 + $0x30] sm:$0xf]
        %v4755 = vld [vmem:[#allocation2 + $0x34] sm:$0xf]
        %v4756 = vld [vmem:[#allocation2 + $0x38] sm:$0xf]
        %v4757 = vld [vmem:[#allocation2 + $0x3c] sm:$0xf]
        %v4758 = vld [vmem:[#allocation2 + $0x40] sm:$0xf]
        %v4759 = vld [vmem:[#allocation2 + $0x44] sm:$0xf]
        %v4760 = vld [vmem:[#allocation2 + $0x48] sm:$0xf]
        %v4761 = vld [vmem:[#allocation2 + $0x4c] sm:$0xf]
        %v4762 = vld [vmem:[#allocation2 + $0x50] sm:$0xf]
        %v4763 = vld [vmem:[#allocation2 + $0x54] sm:$0xf]
        %v4764 = vld [vmem:[#allocation2 + $0x58] sm:$0xf]
        %v4765 = vld [vmem:[#allocation2 + $0x5c] sm:$0xf]
        %v4766 = vld [vmem:[#allocation2 + $0x60] sm:$0xf]
        %v4767 = vld [vmem:[#allocation2 + $0x64] sm:$0xf]
        %v4768 = vld [vmem:[#allocation2 + $0x68] sm:$0xf]
        %v4769 = vld [vmem:[#allocation2 + $0x6c] sm:$0xf]
        %v4770 = vld [vmem:[#allocation2 + $0x70] sm:$0xf]
        %v4771 = vld [vmem:[#allocation2 + $0x74] sm:$0xf]
        %v4772 = vld [vmem:[#allocation2 + $0x78] sm:$0xf]
        %v4773 = vld [vmem:[#allocation2 + $0x7c] sm:$0xf]
        %v4774 = vld [vmem:[#allocation2 + $0x80] sm:$0xf]
        %v4775 = vld [vmem:[#allocation2 + $0x84] sm:$0xf]
        %v4776 = vld [vmem:[#allocation2 + $0x88] sm:$0xf]
        %v4777 = vld [vmem:[#allocation2 + $0x8c] sm:$0xf]
        %v4778 = vld [vmem:[#allocation2 + $0x90] sm:$0xf]
        %v4779 = vld [vmem:[#allocation2 + $0x94] sm:$0xf]
        %v4780 = vld [vmem:[#allocation2 + $0x98] sm:$0x1]
        %v4781 = vmul.bf16 %v4748, %v1802
        %v4782 = vmul.bf16 %v4749, %v1811
        %v4783 = vmul.bf16 %v4750, %v1813
        %v4784 = vmul.bf16 %v4751, %v1811
        %v4785 = vmul.bf16 %v4752, %v1813
        %v4786 = vmul.bf16 %v4753, %v1811
        %v4787 = vmul.bf16 %v4754, %v1813
        %v4788 = vmul.bf16 %v4755, %v1811
        %v4789 = vmul.bf16 %v4756, %v1813
        %v4790 = vmul.bf16 %v4757, %v1811
        %v4791 = vmul.bf16 %v4758, %v1813
        %v4792 = vmul.bf16 %v4759, %v1811
        %v4793 = vmul.bf16 %v4760, %v1813
        %v4794 = vmul.bf16 %v4761, %v1811
        %v4795 = vmul.bf16 %v4762, %v1813
        %v4796 = vmul.bf16 %v4763, %v1811
        %v4797 = vmul.bf16 %v4764, %v1813
        %v4798 = vmul.bf16 %v4765, %v1811
        %v4799 = vmul.bf16 %v4766, %v1813
        %v4800 = vmul.bf16 %v4767, %v1811
        %v4801 = vmul.bf16 %v4768, %v1813
        %v4802 = vmul.bf16 %v4769, %v1811
        %v4803 = vmul.bf16 %v4770, %v1813
        %v4804 = vmul.bf16 %v4771, %v1811
        %v4805 = vmul.bf16 %v4772, %v1813
        %v4806 = vmul.bf16 %v4773, %v1811
        %v4807 = vmul.bf16 %v4774, %v1813
        %v4808 = vmul.bf16 %v4775, %v1811
        %v4809 = vmul.bf16 %v4776, %v1813
        %v4810 = vmul.bf16 %v4777, %v1811
        %v4811 = vmul.bf16 %v4778, %v1813
        %v4812 = vmul.bf16 %v4779, %v1811
        %v4813 = vmul.bf16 %v4780, %v1812
        %v4814 = vld [vmem:[#allocation8 + $0x200] sm:$0xf]
        %v4815 = vld [vmem:[#allocation8 + $0x204] sm:$0xf]
        %v4816 = vld [vmem:[#allocation8 + $0x208] sm:$0xf]
        %v4817 = vld [vmem:[#allocation8 + $0x20c] sm:$0xf]
        %v4818 = vld [vmem:[#allocation8 + $0x210] sm:$0xf]
        %v4819 = vld [vmem:[#allocation8 + $0x214] sm:$0xf]
        %v4820 = vld [vmem:[#allocation8 + $0x218] sm:$0xf]
        %v4821 = vld [vmem:[#allocation8 + $0x21c] sm:$0xf]
        %v4822 = vld [vmem:[#allocation8 + $0x220] sm:$0xf]
        %v4823 = vld [vmem:[#allocation8 + $0x224] sm:$0xf]
        %v4824 = vld [vmem:[#allocation8 + $0x228] sm:$0xf]
        %v4825 = vld [vmem:[#allocation8 + $0x22c] sm:$0xf]
        %v4826 = vld [vmem:[#allocation8 + $0x230] sm:$0xf]
        %v4827 = vld [vmem:[#allocation8 + $0x234] sm:$0xf]
        %v4828 = vld [vmem:[#allocation8 + $0x238] sm:$0xf]
        %v4829 = vld [vmem:[#allocation8 + $0x23c] sm:$0xf]
        %v4863 = vunpack.c.l.b16 %v4781
        %v4864 = vunpack.c.l.b16 %v4782
        %v4865 = vunpack.c.l.b16 %v4783
        %v4866 = vunpack.c.l.b16 %v4784
        %v4867 = vunpack.c.l.b16 %v4785
        %v4868 = vunpack.c.l.b16 %v4786
        %v4869 = vunpack.c.l.b16 %v4787
        %v4870 = vunpack.c.l.b16 %v4788
        %v4871 = vunpack.c.l.b16 %v4789
        %v4872 = vunpack.c.l.b16 %v4790
        %v4873 = vunpack.c.l.b16 %v4791
        %v4874 = vunpack.c.l.b16 %v4792
        %v4875 = vunpack.c.l.b16 %v4793
        %v4876 = vunpack.c.l.b16 %v4794
        %v4877 = vunpack.c.l.b16 %v4795
        %v4878 = vunpack.c.l.b16 %v4796
        %v4879 = vunpack.c.l.b16 %v4797
        %v4880 = vunpack.c.l.b16 %v4798
        %v4881 = vunpack.c.l.b16 %v4799
        %v4882 = vunpack.c.l.b16 %v4800
        %v4883 = vunpack.c.l.b16 %v4801
        %v4884 = vunpack.c.l.b16 %v4802
        %v4885 = vunpack.c.l.b16 %v4803
        %v4886 = vunpack.c.l.b16 %v4804
        %v4887 = vunpack.c.l.b16 %v4805
        %v4888 = vunpack.c.l.b16 %v4806
        %v4889 = vunpack.c.l.b16 %v4807
        %v4890 = vunpack.c.l.b16 %v4808
        %v4891 = vunpack.c.l.b16 %v4809
        %v4892 = vunpack.c.l.b16 %v4810
        %v4893 = vunpack.c.l.b16 %v4811
        %v4894 = vunpack.c.l.b16 %v4812
        %v4895 = vunpack.c.l.b16 %v4813
        %v4896 = vpack.c.b16 %v4864, %v4863
        %v4897 = vpack.c.b16 %v4866, %v4865
        %v4898 = vpack.c.b16 %v4868, %v4867
        %v4899 = vpack.c.b16 %v4870, %v4869
        %v4900 = vpack.c.b16 %v4872, %v4871
        %v4901 = vpack.c.b16 %v4874, %v4873
        %v4902 = vpack.c.b16 %v4876, %v4875
        %v4903 = vpack.c.b16 %v4878, %v4877
        %v4904 = vpack.c.b16 %v4880, %v4879
        %v4905 = vpack.c.b16 %v4882, %v4881
        %v4906 = vpack.c.b16 %v4884, %v4883
        %v4907 = vpack.c.b16 %v4886, %v4885
        %v4908 = vpack.c.b16 %v4888, %v4887
        %v4909 = vpack.c.b16 %v4890, %v4889
        %v4910 = vpack.c.b16 %v4892, %v4891
        %v4911 = vpack.c.b16 %v4894, %v4893
        %v4912 = vpack.c.b16 %v4895, %v4895
        %v4914 = vshrl.u32 %v4896, 16
        %v4916 = vshll.u32 %v4896, 16
        %v4918 = vrot.slane %v4916, 1
        %v4919 = vor.u32 %v4914, %v4918
        %v4921 = vshll.u32 %v4897, 16
        %v4923 = vrot.slane %v4921, 1
        %v4924 = vsel %vm1950, %v4919, %v4923
        %v4925 = vshrl.u32 %v4897, 16
        %v4927 = vor.u32 %v4925, %v4923
        %v4929 = vshll.u32 %v4898, 16
        %v4931 = vrot.slane %v4929, 1
        %v4932 = vsel %vm1950, %v4927, %v4931
        %v4933 = vshrl.u32 %v4898, 16
        %v4935 = vor.u32 %v4933, %v4931
        %v4937 = vshll.u32 %v4899, 16
        %v4939 = vrot.slane %v4937, 1
        %v4940 = vsel %vm1950, %v4935, %v4939
        %v4941 = vshrl.u32 %v4899, 16
        %v4943 = vor.u32 %v4941, %v4939
        %v4945 = vshll.u32 %v4900, 16
        %v4947 = vrot.slane %v4945, 1
        %v4948 = vsel %vm1950, %v4943, %v4947
        %v4949 = vshrl.u32 %v4900, 16
        %v4951 = vor.u32 %v4949, %v4947
        %v4953 = vshll.u32 %v4901, 16
        %v4955 = vrot.slane %v4953, 1
        %v4956 = vsel %vm1950, %v4951, %v4955
        %v4957 = vshrl.u32 %v4901, 16
        %v4959 = vor.u32 %v4957, %v4955
        %v4961 = vshll.u32 %v4902, 16
        %v4963 = vrot.slane %v4961, 1
        %v4964 = vsel %vm1950, %v4959, %v4963
        %v4965 = vshrl.u32 %v4902, 16
        %v4967 = vor.u32 %v4965, %v4963
        %v4969 = vshll.u32 %v4903, 16
        %v4971 = vrot.slane %v4969, 1
        %v4972 = vsel %vm1950, %v4967, %v4971
        %v4973 = vshrl.u32 %v4903, 16
        %v4975 = vor.u32 %v4973, %v4971
        %v4977 = vshll.u32 %v4904, 16
        %v4979 = vrot.slane %v4977, 1
        %v4980 = vsel %vm1950, %v4975, %v4979
        %v4981 = vshrl.u32 %v4904, 16
        %v4983 = vor.u32 %v4981, %v4979
        %v4985 = vshll.u32 %v4905, 16
        %v4987 = vrot.slane %v4985, 1
        %v4988 = vsel %vm1950, %v4983, %v4987
        %v4989 = vshrl.u32 %v4905, 16
        %v4991 = vor.u32 %v4989, %v4987
        %v4993 = vshll.u32 %v4906, 16
        %v4995 = vrot.slane %v4993, 1
        %v4996 = vsel %vm1950, %v4991, %v4995
        %v4997 = vshrl.u32 %v4906, 16
        %v4999 = vor.u32 %v4997, %v4995
        %v5001 = vshll.u32 %v4907, 16
        %v5003 = vrot.slane %v5001, 1
        %v5004 = vsel %vm1950, %v4999, %v5003
        %v5005 = vshrl.u32 %v4907, 16
        %v5007 = vor.u32 %v5005, %v5003
        %v5009 = vshll.u32 %v4908, 16
        %v5011 = vrot.slane %v5009, 1
        %v5012 = vsel %vm1950, %v5007, %v5011
        %v5013 = vshrl.u32 %v4908, 16
        %v5015 = vor.u32 %v5013, %v5011
        %v5017 = vshll.u32 %v4909, 16
        %v5019 = vrot.slane %v5017, 1
        %v5020 = vsel %vm1950, %v5015, %v5019
        %v5021 = vshrl.u32 %v4909, 16
        %v5023 = vor.u32 %v5021, %v5019
        %v5025 = vshll.u32 %v4910, 16
        %v5027 = vrot.slane %v5025, 1
        %v5028 = vsel %vm1950, %v5023, %v5027
        %v5029 = vshrl.u32 %v4910, 16
        %v5031 = vor.u32 %v5029, %v5027
        %v5033 = vshll.u32 %v4911, 16
        %v5035 = vrot.slane %v5033, 1
        %v5036 = vsel %vm1950, %v5031, %v5035
        %v5037 = vshrl.u32 %v4911, 16
        %v5039 = vor.u32 %v5037, %v5035
        %v5041 = vshll.u32 %v4912, 16
        %v5043 = vrot.slane %v5041, 1
        %v5044 = vsel %vm1950, %v5039, %v5043
        %v5077 = vunpack.c.l.b16 %v4814
        %v5078 = vunpack.c.l.b16 %v4815
        %v5079 = vunpack.c.l.b16 %v4816
        %v5080 = vunpack.c.l.b16 %v4817
        %v5081 = vunpack.c.l.b16 %v4818
        %v5082 = vunpack.c.l.b16 %v4819
        %v5083 = vunpack.c.l.b16 %v4820
        %v5084 = vunpack.c.l.b16 %v4821
        %v5085 = vunpack.c.l.b16 %v4822
        %v5086 = vunpack.c.l.b16 %v4823
        %v5087 = vunpack.c.l.b16 %v4824
        %v5088 = vunpack.c.l.b16 %v4825
        %v5089 = vunpack.c.l.b16 %v4826
        %v5090 = vunpack.c.l.b16 %v4827
        %v5091 = vunpack.c.l.b16 %v4828
        %v5092 = vunpack.c.l.b16 %v4829
        %v5093 = vpack.c.b16 %v5078, %v5077
        %v5094 = vpack.c.b16 %v5080, %v5079
        %v5095 = vpack.c.b16 %v5082, %v5081
        %v5096 = vpack.c.b16 %v5084, %v5083
        %v5097 = vpack.c.b16 %v5086, %v5085
        %v5098 = vpack.c.b16 %v5088, %v5087
        %v5099 = vpack.c.b16 %v5090, %v5089
        %v5100 = vpack.c.b16 %v5092, %v5091
        %5109 = vmatprep.subr.bf16.mxu0 0
        %5110 = vmatpush1.bf16.msra.mxu0 %v5100
        %5111 = vmatprep.subr.bf16.mxu0 0
        %5112 = vmatpush1.bf16.msra.mxu0 %v5099
        %5113 = vmatprep.subr.bf16.mxu0 0
        %5114 = vmatpush1.bf16.msra.mxu0 %v5098
        %5115 = vmatprep.subr.bf16.mxu0 0
        %5116 = vmatpush1.bf16.msra.mxu0 %v5097
        %5117 = vmatprep.subr.bf16.mxu0 0
        %5118 = vmatpush1.bf16.msra.mxu0 %v5096
        %5119 = vmatprep.subr.bf16.mxu0 0
        %5120 = vmatpush1.bf16.msra.mxu0 %v5095
        %5121 = vmatprep.subr.bf16.mxu0 0
        %5122 = vmatpush1.bf16.msra.mxu0 %v5094
        %5123 = vmatprep.subr.bf16.mxu0 0
        %5124 = vmatpush1.bf16.msra.mxu0 %v5093
        %5125 = vmatprep.subr.bf16.mxu0 0
        %5126 = vmatpush2.bf16.msra.mxu0 0
        %5127 = vmatprep.subr.bf16.mxu0 0
        %5128 = vmatpush2.bf16.msra.mxu0 0
        %5129 = vmatprep.subr.bf16.mxu0 0
        %5130 = vmatpush2.bf16.msra.mxu0 0
        %5131 = vmatprep.subr.bf16.mxu0 0
        %5132 = vmatpush2.bf16.msra.mxu0 0
        %5133 = vmatprep.subr.bf16.mxu0 0
        %5134 = vmatpush2.bf16.msra.mxu0 0
        %5135 = vmatprep.subr.bf16.mxu0 0
        %5136 = vmatpush2.bf16.msra.mxu0 0
        %5137 = vmatprep.subr.bf16.mxu0 0
        %5138 = vmatpush2.bf16.msra.mxu0 0
        %5139 = vmatprep.subr.bf16.mxu0 0
        %5140 = vmatpush2.bf16.msra.mxu0 0
        %5141 = vmatprep.mubr.bf16.mxu0 0
        %5142 = vmatmul.mubr.bf16.gmra.mxu0 %v4924
        %v5143 = vpop.f32.mrf.mxu0
        %v5144 = vadd.f32 0.0, %v5143
        %v5145 = vpop.f32.mrf.mxu0
        %v5146 = vpop.f32.mrf.mxu0
        %v5147 = vadd.f32 0.0, %v5146
        %v5148 = vpop.f32.mrf.mxu0
        %5149 = vmatprep.mubr.bf16.mxu0 0
        %5150 = vmatmul.mubr.bf16.gmra.mxu0 %v4932
        %v5151 = vpop.f32.mrf.mxu0
        %v5152 = vadd.f32 0.0, %v5151
        %v5153 = vpop.f32.mrf.mxu0
        %v5154 = vpop.f32.mrf.mxu0
        %v5155 = vadd.f32 0.0, %v5154
        %v5156 = vpop.f32.mrf.mxu0
        %5157 = vmatprep.mubr.bf16.mxu0 0
        %5158 = vmatmul.mubr.bf16.gmra.mxu0 %v4940
        %v5159 = vpop.f32.mrf.mxu0
        %v5160 = vadd.f32 0.0, %v5159
        %v5161 = vpop.f32.mrf.mxu0
        %v5162 = vpop.f32.mrf.mxu0
        %v5163 = vadd.f32 0.0, %v5162
        %v5164 = vpop.f32.mrf.mxu0
        %5165 = vmatprep.mubr.bf16.mxu0 0
        %5166 = vmatmul.mubr.bf16.gmra.mxu0 %v4948
        %v5167 = vpop.f32.mrf.mxu0
        %v5168 = vadd.f32 0.0, %v5167
        %v5169 = vpop.f32.mrf.mxu0
        %v5170 = vpop.f32.mrf.mxu0
        %v5171 = vadd.f32 0.0, %v5170
        %v5172 = vpop.f32.mrf.mxu0
        %5173 = vmatprep.mubr.bf16.mxu0 0
        %5174 = vmatmul.mubr.bf16.gmra.mxu0 %v4956
        %v5175 = vpop.f32.mrf.mxu0
        %v5176 = vadd.f32 0.0, %v5175
        %v5177 = vpop.f32.mrf.mxu0
        %v5178 = vpop.f32.mrf.mxu0
        %v5179 = vadd.f32 0.0, %v5178
        %v5180 = vpop.f32.mrf.mxu0
        %5181 = vmatprep.mubr.bf16.mxu0 0
        %5182 = vmatmul.mubr.bf16.gmra.mxu0 %v4964
        %v5183 = vpop.f32.mrf.mxu0
        %v5184 = vadd.f32 0.0, %v5183
        %v5185 = vpop.f32.mrf.mxu0
        %v5186 = vpop.f32.mrf.mxu0
        %v5187 = vadd.f32 0.0, %v5186
        %v5188 = vpop.f32.mrf.mxu0
        %5189 = vmatprep.mubr.bf16.mxu0 0
        %5190 = vmatmul.mubr.bf16.gmra.mxu0 %v4972
        %v5191 = vpop.f32.mrf.mxu0
        %v5192 = vadd.f32 0.0, %v5191
        %v5193 = vpop.f32.mrf.mxu0
        %v5194 = vpop.f32.mrf.mxu0
        %v5195 = vadd.f32 0.0, %v5194
        %v5196 = vpop.f32.mrf.mxu0
        %5197 = vmatprep.mubr.bf16.mxu0 0
        %5198 = vmatmul.mubr.bf16.gmra.mxu0 %v4980
        %v5199 = vpop.f32.mrf.mxu0
        %v5200 = vadd.f32 0.0, %v5199
        %v5201 = vpop.f32.mrf.mxu0
        %v5202 = vpop.f32.mrf.mxu0
        %v5203 = vadd.f32 0.0, %v5202
        %v5204 = vpop.f32.mrf.mxu0
        %5205 = vmatprep.mubr.bf16.mxu0 0
        %5206 = vmatmul.mubr.bf16.gmra.mxu0 %v4988
        %v5207 = vpop.f32.mrf.mxu0
        %v5208 = vadd.f32 0.0, %v5207
        %v5209 = vpop.f32.mrf.mxu0
        %v5210 = vpop.f32.mrf.mxu0
        %v5211 = vadd.f32 0.0, %v5210
        %v5212 = vpop.f32.mrf.mxu0
        %5213 = vmatprep.mubr.bf16.mxu0 0
        %5214 = vmatmul.mubr.bf16.gmra.mxu0 %v4996
        %v5215 = vpop.f32.mrf.mxu0
        %v5216 = vadd.f32 0.0, %v5215
        %v5217 = vpop.f32.mrf.mxu0
        %v5218 = vpop.f32.mrf.mxu0
        %v5219 = vadd.f32 0.0, %v5218
        %v5220 = vpop.f32.mrf.mxu0
        %5221 = vmatprep.mubr.bf16.mxu0 0
        %5222 = vmatmul.mubr.bf16.gmra.mxu0 %v5004
        %v5223 = vpop.f32.mrf.mxu0
        %v5224 = vadd.f32 0.0, %v5223
        %v5225 = vpop.f32.mrf.mxu0
        %v5226 = vpop.f32.mrf.mxu0
        %v5227 = vadd.f32 0.0, %v5226
        %v5228 = vpop.f32.mrf.mxu0
        %5229 = vmatprep.mubr.bf16.mxu0 0
        %5230 = vmatmul.mubr.bf16.gmra.mxu0 %v5012
        %v5231 = vpop.f32.mrf.mxu0
        %v5232 = vadd.f32 0.0, %v5231
        %v5233 = vpop.f32.mrf.mxu0
        %v5234 = vpop.f32.mrf.mxu0
        %v5235 = vadd.f32 0.0, %v5234
        %v5236 = vpop.f32.mrf.mxu0
        %5237 = vmatprep.mubr.bf16.mxu0 0
        %5238 = vmatmul.mubr.bf16.gmra.mxu0 %v5020
        %v5239 = vpop.f32.mrf.mxu0
        %v5240 = vadd.f32 0.0, %v5239
        %v5241 = vpop.f32.mrf.mxu0
        %v5242 = vpop.f32.mrf.mxu0
        %v5243 = vadd.f32 0.0, %v5242
        %v5244 = vpop.f32.mrf.mxu0
        %5245 = vmatprep.mubr.bf16.mxu0 0
        %5246 = vmatmul.mubr.bf16.gmra.mxu0 %v5028
        %v5247 = vpop.f32.mrf.mxu0
        %v5248 = vadd.f32 0.0, %v5247
        %v5249 = vpop.f32.mrf.mxu0
        %v5250 = vpop.f32.mrf.mxu0
        %v5251 = vadd.f32 0.0, %v5250
        %v5252 = vpop.f32.mrf.mxu0
        %5253 = vmatprep.mubr.bf16.mxu0 0
        %5254 = vmatmul.mubr.bf16.gmra.mxu0 %v5036
        %v5255 = vpop.f32.mrf.mxu0
        %v5256 = vadd.f32 0.0, %v5255
        %v5257 = vpop.f32.mrf.mxu0
        %v5258 = vpop.f32.mrf.mxu0
        %v5259 = vadd.f32 0.0, %v5258
        %v5260 = vpop.f32.mrf.mxu0
        %5261 = vmatprep.mubr.bf16.mxu0 0
        %5262 = vmatmul.mubr.bf16.gmra.mxu0 %v5044
        %v5263 = vpop.f32.mrf.mxu0
        %v5264 = vadd.f32 0.0, %v5263
        %v5265 = vpop.f32.mrf.mxu0
        %v5266 = vpop.f32.mrf.mxu0
        %v5267 = vadd.f32 0.0, %v5266
        %v5268 = vpop.f32.mrf.mxu0
        %5269 = vdwg.mxu0
        %v5270 = vadd.f32 %v4716, %v5144
        %v5271 = vadd.f32 %v4717, %v5147
        %v5272 = vadd.f32 %v4718, %v5152
        %v5273 = vadd.f32 %v4719, %v5155
        %v5274 = vadd.f32 %v4720, %v5160
        %v5275 = vadd.f32 %v4721, %v5163
        %v5276 = vadd.f32 %v4722, %v5168
        %v5277 = vadd.f32 %v4723, %v5171
        %v5278 = vadd.f32 %v4724, %v5176
        %v5279 = vadd.f32 %v4725, %v5179
        %v5280 = vadd.f32 %v4726, %v5184
        %v5281 = vadd.f32 %v4727, %v5187
        %v5282 = vadd.f32 %v4728, %v5192
        %v5283 = vadd.f32 %v4729, %v5195
        %v5284 = vadd.f32 %v4730, %v5200
        %v5285 = vadd.f32 %v4731, %v5203
        %v5286 = vadd.f32 %v4732, %v5208
        %v5287 = vadd.f32 %v4733, %v5211
        %v5288 = vadd.f32 %v4734, %v5216
        %v5289 = vadd.f32 %v4735, %v5219
        %v5290 = vadd.f32 %v4736, %v5224
        %v5291 = vadd.f32 %v4737, %v5227
        %v5292 = vadd.f32 %v4738, %v5232
        %v5293 = vadd.f32 %v4739, %v5235
        %v5294 = vadd.f32 %v4740, %v5240
        %v5295 = vadd.f32 %v4741, %v5243
        %v5296 = vadd.f32 %v4742, %v5248
        %v5297 = vadd.f32 %v4743, %v5251
        %v5298 = vadd.f32 %v4744, %v5256
        %v5299 = vadd.f32 %v4745, %v5259
        %v5300 = vadd.f32 %v4746, %v5264
        %v5301 = vadd.f32 %v4747, %v5267
        %v5302 = vld [vmem:[%s5] sm:$0x1]
        %v5304 = vlaneseq
        %v5305 = vshrl.u32 %v5304, 7
        %v5306 = vsub.s32 0, %v5305
        %v5307 = vrot.slane %v5302, %v5306
        %v5309 = vadd.f32 %v5270, %v5307
        %v5310 = vadd.f32 %v5271, %v5307
        %v5311 = vadd.f32 %v5272, %v5307
        %v5312 = vadd.f32 %v5273, %v5307
        %v5313 = vadd.f32 %v5274, %v5307
        %v5314 = vadd.f32 %v5275, %v5307
        %v5315 = vadd.f32 %v5276, %v5307
        %v5316 = vadd.f32 %v5277, %v5307
        %v5317 = vadd.f32 %v5278, %v5307
        %v5318 = vadd.f32 %v5279, %v5307
        %v5319 = vadd.f32 %v5280, %v5307
        %v5320 = vadd.f32 %v5281, %v5307
        %v5321 = vadd.f32 %v5282, %v5307
        %v5322 = vadd.f32 %v5283, %v5307
        %v5323 = vadd.f32 %v5284, %v5307
        %v5324 = vadd.f32 %v5285, %v5307
        %v5325 = vadd.f32 %v5286, %v5307
        %v5326 = vadd.f32 %v5287, %v5307
        %v5327 = vadd.f32 %v5288, %v5307
        %v5328 = vadd.f32 %v5289, %v5307
        %v5329 = vadd.f32 %v5290, %v5307
        %v5330 = vadd.f32 %v5291, %v5307
        %v5331 = vadd.f32 %v5292, %v5307
        %v5332 = vadd.f32 %v5293, %v5307
        %v5333 = vadd.f32 %v5294, %v5307
        %v5334 = vadd.f32 %v5295, %v5307
        %v5335 = vadd.f32 %v5296, %v5307
        %v5336 = vadd.f32 %v5297, %v5307
        %v5337 = vadd.f32 %v5298, %v5307
        %v5338 = vadd.f32 %v5299, %v5307
        %v5339 = vadd.f32 %v5300, %v5307
        %v5340 = vadd.f32 %v5301, %v5307
        %v5341 = vmax.f32 %v5309, 0.0
        %v5342 = vmax.f32 %v5310, 0.0
        %v5343 = vmax.f32 %v5311, 0.0
        %v5344 = vmax.f32 %v5312, 0.0
        %v5345 = vmax.f32 %v5313, 0.0
        %v5346 = vmax.f32 %v5314, 0.0
        %v5347 = vmax.f32 %v5315, 0.0
        %v5348 = vmax.f32 %v5316, 0.0
        %v5349 = vmax.f32 %v5317, 0.0
        %v5350 = vmax.f32 %v5318, 0.0
        %v5351 = vmax.f32 %v5319, 0.0
        %v5352 = vmax.f32 %v5320, 0.0
        %v5353 = vmax.f32 %v5321, 0.0
        %v5354 = vmax.f32 %v5322, 0.0
        %v5355 = vmax.f32 %v5323, 0.0
        %v5356 = vmax.f32 %v5324, 0.0
        %v5357 = vmax.f32 %v5325, 0.0
        %v5358 = vmax.f32 %v5326, 0.0
        %v5359 = vmax.f32 %v5327, 0.0
        %v5360 = vmax.f32 %v5328, 0.0
        %v5361 = vmax.f32 %v5329, 0.0
        %v5362 = vmax.f32 %v5330, 0.0
        %v5363 = vmax.f32 %v5331, 0.0
        %v5364 = vmax.f32 %v5332, 0.0
        %v5365 = vmax.f32 %v5333, 0.0
        %v5366 = vmax.f32 %v5334, 0.0
        %v5367 = vmax.f32 %v5335, 0.0
        %v5368 = vmax.f32 %v5336, 0.0
        %v5369 = vmax.f32 %v5337, 0.0
        %v5370 = vmax.f32 %v5338, 0.0
        %v5371 = vmax.f32 %v5339, 0.0
        %v5372 = vmax.f32 %v5340, 0.0
        %v5373 = vpack.c.bf16 %v5342, %v5341
        %v5374 = vpack.c.bf16 %v5344, %v5343
        %v5375 = vpack.c.bf16 %v5346, %v5345
        %v5376 = vpack.c.bf16 %v5348, %v5347
        %v5377 = vpack.c.bf16 %v5350, %v5349
        %v5378 = vpack.c.bf16 %v5352, %v5351
        %v5379 = vpack.c.bf16 %v5354, %v5353
        %v5380 = vpack.c.bf16 %v5356, %v5355
        %v5381 = vpack.c.bf16 %v5358, %v5357
        %v5382 = vpack.c.bf16 %v5360, %v5359
        %v5383 = vpack.c.bf16 %v5362, %v5361
        %v5384 = vpack.c.bf16 %v5364, %v5363
        %v5385 = vpack.c.bf16 %v5366, %v5365
        %v5386 = vpack.c.bf16 %v5368, %v5367
        %v5387 = vpack.c.bf16 %v5370, %v5369
        %v5388 = vpack.c.bf16 %v5372, %v5371
        %v5389 = vld [vmem:[#allocation9] sm:$0xf]
        %v5390 = vld [vmem:[#allocation9 + $0x4] sm:$0xf]
        %v5391 = vld [vmem:[#allocation9 + $0x8] sm:$0xf]
        %v5392 = vld [vmem:[#allocation9 + $0xc] sm:$0xf]
        %v5393 = vld [vmem:[#allocation9 + $0x10] sm:$0xf]
        %v5394 = vld [vmem:[#allocation9 + $0x14] sm:$0xf]
        %v5395 = vld [vmem:[#allocation9 + $0x18] sm:$0xf]
        %v5396 = vld [vmem:[#allocation9 + $0x1c] sm:$0xf]
        %v5397 = vld [vmem:[#allocation9 + $0x20] sm:$0xf]
        %v5398 = vld [vmem:[#allocation9 + $0x24] sm:$0xf]
        %v5399 = vld [vmem:[#allocation9 + $0x28] sm:$0xf]
        %v5400 = vld [vmem:[#allocation9 + $0x2c] sm:$0xf]
        %v5401 = vld [vmem:[#allocation9 + $0x30] sm:$0xf]
        %v5402 = vld [vmem:[#allocation9 + $0x34] sm:$0xf]
        %v5403 = vld [vmem:[#allocation9 + $0x38] sm:$0xf]
        %v5404 = vld [vmem:[#allocation9 + $0x3c] sm:$0xf]
        %v5405 = vld [vmem:[%s298] sm:$0xff]
        %v5406 = vld [vmem:[%s298 + $0x8] sm:$0xff]
        %v5407 = vld [vmem:[%s298 + $0x10] sm:$0xff]
        %v5408 = vld [vmem:[%s298 + $0x18] sm:$0xff]
        %v5409 = vld [vmem:[%s298 + $0x20] sm:$0xff]
        %v5410 = vld [vmem:[%s298 + $0x28] sm:$0xff]
        %v5411 = vld [vmem:[%s298 + $0x30] sm:$0xff]
        %v5412 = vld [vmem:[%s298 + $0x38] sm:$0xff]
        %v5413 = vld [vmem:[%s298 + $0x40] sm:$0xff]
        %v5414 = vld [vmem:[%s298 + $0x48] sm:$0xff]
        %v5415 = vld [vmem:[%s298 + $0x50] sm:$0xff]
        %v5416 = vld [vmem:[%s298 + $0x58] sm:$0xff]
        %v5417 = vld [vmem:[%s298 + $0x60] sm:$0xff]
        %v5418 = vld [vmem:[%s298 + $0x68] sm:$0xff]
        %v5419 = vld [vmem:[%s298 + $0x70] sm:$0xff]
        %v5420 = vld [vmem:[%s298 + $0x78] sm:$0xff]
        %v5421 = vld [vmem:[%s298 + $0x80] sm:$0xff]
        %v5422 = vld [vmem:[%s298 + $0x88] sm:$0xff]
        %v5423 = vld [vmem:[%s298 + $0x90] sm:$0xff]
        %v5424 = vld [vmem:[%s298 + $0x98] sm:$0xff]
        %v5425 = vld [vmem:[%s298 + $0xa0] sm:$0xff]
        %v5426 = vld [vmem:[%s298 + $0xa8] sm:$0xff]
        %v5427 = vld [vmem:[%s298 + $0xb0] sm:$0xff]
        %v5428 = vld [vmem:[%s298 + $0xb8] sm:$0xff]
        %v5429 = vld [vmem:[%s298 + $0xc0] sm:$0xff]
        %v5430 = vld [vmem:[%s298 + $0xc8] sm:$0xff]
        %v5431 = vld [vmem:[%s298 + $0xd0] sm:$0xff]
        %v5432 = vld [vmem:[%s298 + $0xd8] sm:$0xff]
        %v5433 = vld [vmem:[%s298 + $0xe0] sm:$0xff]
        %v5434 = vld [vmem:[%s298 + $0xe8] sm:$0xff]
        %v5435 = vld [vmem:[%s298 + $0xf0] sm:$0xff]
        %v5436 = vld [vmem:[%s298 + $0xf8] sm:$0xff]
        %v5437 = vld [vmem:[%s6] sm:$0x1]
        %v5439 = vlaneseq
        %v5440 = vshrl.u32 %v5439, 7
        %v5441 = vsub.s32 0, %v5440
        %v5442 = vrot.slane %v5437, %v5441
        %v5460 = vunpack.c.l.b16 %v5389
        %v5461 = vunpack.c.l.b16 %v5390
        %v5462 = vunpack.c.l.b16 %v5391
        %v5463 = vunpack.c.l.b16 %v5392
        %v5464 = vunpack.c.l.b16 %v5393
        %v5465 = vunpack.c.l.b16 %v5394
        %v5466 = vunpack.c.l.b16 %v5395
        %v5467 = vunpack.c.l.b16 %v5396
        %v5468 = vunpack.c.l.b16 %v5397
        %v5469 = vunpack.c.l.b16 %v5398
        %v5470 = vunpack.c.l.b16 %v5399
        %v5471 = vunpack.c.l.b16 %v5400
        %v5472 = vunpack.c.l.b16 %v5401
        %v5473 = vunpack.c.l.b16 %v5402
        %v5474 = vunpack.c.l.b16 %v5403
        %v5475 = vunpack.c.l.b16 %v5404
        %v5476 = vpack.c.b16 %v5461, %v5460
        %v5477 = vpack.c.b16 %v5463, %v5462
        %v5478 = vpack.c.b16 %v5465, %v5464
        %v5479 = vpack.c.b16 %v5467, %v5466
        %v5480 = vpack.c.b16 %v5469, %v5468
        %v5481 = vpack.c.b16 %v5471, %v5470
        %v5482 = vpack.c.b16 %v5473, %v5472
        %v5483 = vpack.c.b16 %v5475, %v5474
        %5492 = vmatprep.subr.bf16.mxu0 0
        %5493 = vmatpush1.bf16.msra.mxu0 %v5483
        %5494 = vmatprep.subr.bf16.mxu0 0
        %5495 = vmatpush1.bf16.msra.mxu0 %v5482
        %5496 = vmatprep.subr.bf16.mxu0 0
        %5497 = vmatpush1.bf16.msra.mxu0 %v5481
        %5498 = vmatprep.subr.bf16.mxu0 0
        %5499 = vmatpush1.bf16.msra.mxu0 %v5480
        %5500 = vmatprep.subr.bf16.mxu0 0
        %5501 = vmatpush1.bf16.msra.mxu0 %v5479
        %5502 = vmatprep.subr.bf16.mxu0 0
        %5503 = vmatpush1.bf16.msra.mxu0 %v5478
        %5504 = vmatprep.subr.bf16.mxu0 0
        %5505 = vmatpush1.bf16.msra.mxu0 %v5477
        %5506 = vmatprep.subr.bf16.mxu0 0
        %5507 = vmatpush1.bf16.msra.mxu0 %v5476
        %5508 = vmatprep.subr.bf16.mxu0 0
        %5509 = vmatpush2.bf16.msra.mxu0 0
        %5510 = vmatprep.subr.bf16.mxu0 0
        %5511 = vmatpush2.bf16.msra.mxu0 0
        %5512 = vmatprep.subr.bf16.mxu0 0
        %5513 = vmatpush2.bf16.msra.mxu0 0
        %5514 = vmatprep.subr.bf16.mxu0 0
        %5515 = vmatpush2.bf16.msra.mxu0 0
        %5516 = vmatprep.subr.bf16.mxu0 0
        %5517 = vmatpush2.bf16.msra.mxu0 0
        %5518 = vmatprep.subr.bf16.mxu0 0
        %5519 = vmatpush2.bf16.msra.mxu0 0
        %5520 = vmatprep.subr.bf16.mxu0 0
        %5521 = vmatpush2.bf16.msra.mxu0 0
        %5522 = vmatprep.subr.bf16.mxu0 0
        %5523 = vmatpush2.bf16.msra.mxu0 0
        %5524 = vmatprep.mubr.bf16.mxu0 0
        %5525 = vmatmul.mubr.bf16.gmra.mxu0 %v5373
        %v5526 = vpop.f32.mrf.mxu0
        %v5527 = vadd.f32 %v5442, %v5526
        %v5528 = vpop.f32.mrf.mxu0
        %v5529 = vpop.f32.mrf.mxu0
        %v5530 = vadd.f32 %v5442, %v5529
        %v5531 = vpop.f32.mrf.mxu0
        %5532 = vmatprep.mubr.bf16.mxu0 0
        %5533 = vmatmul.mubr.bf16.gmra.mxu0 %v5374
        %v5534 = vpop.f32.mrf.mxu0
        %v5535 = vadd.f32 %v5442, %v5534
        %v5536 = vpop.f32.mrf.mxu0
        %v5537 = vpop.f32.mrf.mxu0
        %v5538 = vadd.f32 %v5442, %v5537
        %v5539 = vpop.f32.mrf.mxu0
        %5540 = vmatprep.mubr.bf16.mxu0 0
        %5541 = vmatmul.mubr.bf16.gmra.mxu0 %v5375
        %v5542 = vpop.f32.mrf.mxu0
        %v5543 = vadd.f32 %v5442, %v5542
        %v5544 = vpop.f32.mrf.mxu0
        %v5545 = vpop.f32.mrf.mxu0
        %v5546 = vadd.f32 %v5442, %v5545
        %v5547 = vpop.f32.mrf.mxu0
        %5548 = vmatprep.mubr.bf16.mxu0 0
        %5549 = vmatmul.mubr.bf16.gmra.mxu0 %v5376
        %v5550 = vpop.f32.mrf.mxu0
        %v5551 = vadd.f32 %v5442, %v5550
        %v5552 = vpop.f32.mrf.mxu0
        %v5553 = vpop.f32.mrf.mxu0
        %v5554 = vadd.f32 %v5442, %v5553
        %v5555 = vpop.f32.mrf.mxu0
        %5556 = vmatprep.mubr.bf16.mxu0 0
        %5557 = vmatmul.mubr.bf16.gmra.mxu0 %v5377
        %v5558 = vpop.f32.mrf.mxu0
        %v5559 = vadd.f32 %v5442, %v5558
        %v5560 = vpop.f32.mrf.mxu0
        %v5561 = vpop.f32.mrf.mxu0
        %v5562 = vadd.f32 %v5442, %v5561
        %v5563 = vpop.f32.mrf.mxu0
        %5564 = vmatprep.mubr.bf16.mxu0 0
        %5565 = vmatmul.mubr.bf16.gmra.mxu0 %v5378
        %v5566 = vpop.f32.mrf.mxu0
        %v5567 = vadd.f32 %v5442, %v5566
        %v5568 = vpop.f32.mrf.mxu0
        %v5569 = vpop.f32.mrf.mxu0
        %v5570 = vadd.f32 %v5442, %v5569
        %v5571 = vpop.f32.mrf.mxu0
        %5572 = vmatprep.mubr.bf16.mxu0 0
        %5573 = vmatmul.mubr.bf16.gmra.mxu0 %v5379
        %v5574 = vpop.f32.mrf.mxu0
        %v5575 = vadd.f32 %v5442, %v5574
        %v5576 = vpop.f32.mrf.mxu0
        %v5577 = vpop.f32.mrf.mxu0
        %v5578 = vadd.f32 %v5442, %v5577
        %v5579 = vpop.f32.mrf.mxu0
        %5580 = vmatprep.mubr.bf16.mxu0 0
        %5581 = vmatmul.mubr.bf16.gmra.mxu0 %v5380
        %v5582 = vpop.f32.mrf.mxu0
        %v5583 = vadd.f32 %v5442, %v5582
        %v5584 = vpop.f32.mrf.mxu0
        %v5585 = vpop.f32.mrf.mxu0
        %v5586 = vadd.f32 %v5442, %v5585
        %v5587 = vpop.f32.mrf.mxu0
        %5588 = vmatprep.mubr.bf16.mxu0 0
        %5589 = vmatmul.mubr.bf16.gmra.mxu0 %v5381
        %v5590 = vpop.f32.mrf.mxu0
        %v5591 = vadd.f32 %v5442, %v5590
        %v5592 = vpop.f32.mrf.mxu0
        %v5593 = vpop.f32.mrf.mxu0
        %v5594 = vadd.f32 %v5442, %v5593
        %v5595 = vpop.f32.mrf.mxu0
        %5596 = vmatprep.mubr.bf16.mxu0 0
        %5597 = vmatmul.mubr.bf16.gmra.mxu0 %v5382
        %v5598 = vpop.f32.mrf.mxu0
        %v5599 = vadd.f32 %v5442, %v5598
        %v5600 = vpop.f32.mrf.mxu0
        %v5601 = vpop.f32.mrf.mxu0
        %v5602 = vadd.f32 %v5442, %v5601
        %v5603 = vpop.f32.mrf.mxu0
        %5604 = vmatprep.mubr.bf16.mxu0 0
        %5605 = vmatmul.mubr.bf16.gmra.mxu0 %v5383
        %v5606 = vpop.f32.mrf.mxu0
        %v5607 = vadd.f32 %v5442, %v5606
        %v5608 = vpop.f32.mrf.mxu0
        %v5609 = vpop.f32.mrf.mxu0
        %v5610 = vadd.f32 %v5442, %v5609
        %v5611 = vpop.f32.mrf.mxu0
        %5612 = vmatprep.mubr.bf16.mxu0 0
        %5613 = vmatmul.mubr.bf16.gmra.mxu0 %v5384
        %v5614 = vpop.f32.mrf.mxu0
        %v5615 = vadd.f32 %v5442, %v5614
        %v5616 = vpop.f32.mrf.mxu0
        %v5617 = vpop.f32.mrf.mxu0
        %v5618 = vadd.f32 %v5442, %v5617
        %v5619 = vpop.f32.mrf.mxu0
        %5620 = vmatprep.mubr.bf16.mxu0 0
        %5621 = vmatmul.mubr.bf16.gmra.mxu0 %v5385
        %v5622 = vpop.f32.mrf.mxu0
        %v5623 = vadd.f32 %v5442, %v5622
        %v5624 = vpop.f32.mrf.mxu0
        %v5625 = vpop.f32.mrf.mxu0
        %v5626 = vadd.f32 %v5442, %v5625
        %v5627 = vpop.f32.mrf.mxu0
        %5628 = vmatprep.mubr.bf16.mxu0 0
        %5629 = vmatmul.mubr.bf16.gmra.mxu0 %v5386
        %v5630 = vpop.f32.mrf.mxu0
        %v5631 = vadd.f32 %v5442, %v5630
        %v5632 = vpop.f32.mrf.mxu0
        %v5633 = vpop.f32.mrf.mxu0
        %v5634 = vadd.f32 %v5442, %v5633
        %v5635 = vpop.f32.mrf.mxu0
        %5636 = vmatprep.mubr.bf16.mxu0 0
        %5637 = vmatmul.mubr.bf16.gmra.mxu0 %v5387
        %v5638 = vpop.f32.mrf.mxu0
        %v5639 = vadd.f32 %v5442, %v5638
        %v5640 = vpop.f32.mrf.mxu0
        %v5641 = vpop.f32.mrf.mxu0
        %v5642 = vadd.f32 %v5442, %v5641
        %v5643 = vpop.f32.mrf.mxu0
        %5644 = vmatprep.mubr.bf16.mxu0 0
        %5645 = vmatmul.mubr.bf16.gmra.mxu0 %v5388
        %v5646 = vpop.f32.mrf.mxu0
        %v5647 = vadd.f32 %v5442, %v5646
        %v5648 = vpop.f32.mrf.mxu0
        %v5649 = vpop.f32.mrf.mxu0
        %v5650 = vadd.f32 %v5442, %v5649
        %v5651 = vpop.f32.mrf.mxu0
        %5652 = vdwg.mxu0
        %v5653 = vadd.f32 %v5527, %v5405
        %v5654 = vadd.f32 %v5530, %v5406
        %v5655 = vadd.f32 %v5535, %v5407
        %v5656 = vadd.f32 %v5538, %v5408
        %v5657 = vadd.f32 %v5543, %v5409
        %v5658 = vadd.f32 %v5546, %v5410
        %v5659 = vadd.f32 %v5551, %v5411
        %v5660 = vadd.f32 %v5554, %v5412
        %v5661 = vadd.f32 %v5559, %v5413
        %v5662 = vadd.f32 %v5562, %v5414
        %v5663 = vadd.f32 %v5567, %v5415
        %v5664 = vadd.f32 %v5570, %v5416
        %v5665 = vadd.f32 %v5575, %v5417
        %v5666 = vadd.f32 %v5578, %v5418
        %v5667 = vadd.f32 %v5583, %v5419
        %v5668 = vadd.f32 %v5586, %v5420
        %v5669 = vadd.f32 %v5591, %v5421
        %v5670 = vadd.f32 %v5594, %v5422
        %v5671 = vadd.f32 %v5599, %v5423
        %v5672 = vadd.f32 %v5602, %v5424
        %v5673 = vadd.f32 %v5607, %v5425
        %v5674 = vadd.f32 %v5610, %v5426
        %v5675 = vadd.f32 %v5615, %v5427
        %v5676 = vadd.f32 %v5618, %v5428
        %v5677 = vadd.f32 %v5623, %v5429
        %v5678 = vadd.f32 %v5626, %v5430
        %v5679 = vadd.f32 %v5631, %v5431
        %v5680 = vadd.f32 %v5634, %v5432
        %v5681 = vadd.f32 %v5639, %v5433
        %v5682 = vadd.f32 %v5642, %v5434
        %v5683 = vadd.f32 %v5647, %v5435
        %v5684 = vadd.f32 %v5650, %v5436
        %v5685 = vmax.f32 %v5653, 0.0
        %v5686 = vmax.f32 %v5654, 0.0
        %v5687 = vmax.f32 %v5655, 0.0
        %v5688 = vmax.f32 %v5656, 0.0
        %v5689 = vmax.f32 %v5657, 0.0
        %v5690 = vmax.f32 %v5658, 0.0
        %v5691 = vmax.f32 %v5659, 0.0
        %v5692 = vmax.f32 %v5660, 0.0
        %v5693 = vmax.f32 %v5661, 0.0
        %v5694 = vmax.f32 %v5662, 0.0
        %v5695 = vmax.f32 %v5663, 0.0
        %v5696 = vmax.f32 %v5664, 0.0
        %v5697 = vmax.f32 %v5665, 0.0
        %v5698 = vmax.f32 %v5666, 0.0
        %v5699 = vmax.f32 %v5667, 0.0
        %v5700 = vmax.f32 %v5668, 0.0
        %v5701 = vmax.f32 %v5669, 0.0
        %v5702 = vmax.f32 %v5670, 0.0
        %v5703 = vmax.f32 %v5671, 0.0
        %v5704 = vmax.f32 %v5672, 0.0
        %v5705 = vmax.f32 %v5673, 0.0
        %v5706 = vmax.f32 %v5674, 0.0
        %v5707 = vmax.f32 %v5675, 0.0
        %v5708 = vmax.f32 %v5676, 0.0
        %v5709 = vmax.f32 %v5677, 0.0
        %v5710 = vmax.f32 %v5678, 0.0
        %v5711 = vmax.f32 %v5679, 0.0
        %v5712 = vmax.f32 %v5680, 0.0
        %v5713 = vmax.f32 %v5681, 0.0
        %v5714 = vmax.f32 %v5682, 0.0
        %v5715 = vmax.f32 %v5683, 0.0
        %v5716 = vmax.f32 %v5684, 0.0
        %5717 = vst [vmem:[%s340] sm:$0xff] %v5685
        %5718 = vst [vmem:[%s340 + $0x8] sm:$0xff] %v5686
        %5719 = vst [vmem:[%s340 + $0x10] sm:$0xff] %v5687
        %5720 = vst [vmem:[%s340 + $0x18] sm:$0xff] %v5688
        %5721 = vst [vmem:[%s340 + $0x20] sm:$0xff] %v5689
        %5722 = vst [vmem:[%s340 + $0x28] sm:$0xff] %v5690
        %5723 = vst [vmem:[%s340 + $0x30] sm:$0xff] %v5691
        %5724 = vst [vmem:[%s340 + $0x38] sm:$0xff] %v5692
        %5725 = vst [vmem:[%s340 + $0x40] sm:$0xff] %v5693
        %5726 = vst [vmem:[%s340 + $0x48] sm:$0xff] %v5694
        %5727 = vst [vmem:[%s340 + $0x50] sm:$0xff] %v5695
        %5728 = vst [vmem:[%s340 + $0x58] sm:$0xff] %v5696
        %5729 = vst [vmem:[%s340 + $0x60] sm:$0xff] %v5697
        %5730 = vst [vmem:[%s340 + $0x68] sm:$0xff] %v5698
        %5731 = vst [vmem:[%s340 + $0x70] sm:$0xff] %v5699
        %5732 = vst [vmem:[%s340 + $0x78] sm:$0xff] %v5700
        %5733 = vst [vmem:[%s340 + $0x80] sm:$0xff] %v5701
        %5734 = vst [vmem:[%s340 + $0x88] sm:$0xff] %v5702
        %5735 = vst [vmem:[%s340 + $0x90] sm:$0xff] %v5703
        %5736 = vst [vmem:[%s340 + $0x98] sm:$0xff] %v5704
        %5737 = vst [vmem:[%s340 + $0xa0] sm:$0xff] %v5705
        %5738 = vst [vmem:[%s340 + $0xa8] sm:$0xff] %v5706
        %5739 = vst [vmem:[%s340 + $0xb0] sm:$0xff] %v5707
        %5740 = vst [vmem:[%s340 + $0xb8] sm:$0xff] %v5708
        %5741 = vst [vmem:[%s340 + $0xc0] sm:$0xff] %v5709
        %5742 = vst [vmem:[%s340 + $0xc8] sm:$0xff] %v5710
        %5743 = vst [vmem:[%s340 + $0xd0] sm:$0xff] %v5711
        %5744 = vst [vmem:[%s340 + $0xd8] sm:$0xff] %v5712
        %5745 = vst [vmem:[%s340 + $0xe0] sm:$0xff] %v5713
        %5746 = vst [vmem:[%s340 + $0xe8] sm:$0xff] %v5714
        %5747 = vst [vmem:[%s340 + $0xf0] sm:$0xff] %v5715
        %5748 = vst [vmem:[%s340 + $0xf8] sm:$0xff] %v5716
        %s5749 = sand.u32 %s186, 1
        %s5750 = scalar_lea.sflag [#allocation5], %s5749
        %s5751 = sand.u32 %s186, 1
        %s5752 = smul.addr %s5751, 256
        %s5753 = scalar_lea.vmem [#allocation11], %s5752
        // Predicated region
        $region65: #{tpu_custom_call.1} parent=47 // pred_check
          %p5754 = pneg %p196
        $region66: #{tpu_custom_call.1} parent=47 // pred_check_branch
          %5756 = sbr.rel (%p5754) target = $region68
        $region67: #{tpu_custom_call.1} parent=47 // pred_region
          %s5758 = ssub.s32 4096, 4096
          %5759 = vsyncadd %s5750, %s5758
          %s5760 = smul.addr %s26, 32
          %s5761 = smul.addr %s5760, 128
          %s5762 = scalar_lea.hbm %s7, %s5761
          %s5763 = sshll.u32 %s5753, 4
          %s5764 = int_to_ptr.vmem [resolvable:$true] %s5763
          %5769 = dma.vmem_to_hbm [thread:$0]  %s5764, 4096, %s5762, %s5750, 128, 128, 8
        $region68: #{tpu_custom_call.1} parent=47 // pred_fallthru
          _
      $region48: #{tpu_custom_call.1} parent=5 // pred_fallthru
        _
      %p5770 = scmp.le.s32.totalorder 2, %s21
      // Predicated region
      $region69: #{tpu_custom_call.1} parent=5 // pred_check
        %p5771 = pneg %p5770
      $region70: #{tpu_custom_call.1} parent=5 // pred_check_branch
        %5773 = sbr.rel (%p5771) target = $region72
      $region71: #{tpu_custom_call.1} parent=5 // pred_region
        %s5774 = ssub.s32 %s21, 2
        // Predicated region
        $region73: #{tpu_custom_call.1} parent=71 // pred_check
          %p5775 = pneg %p202
        $region74: #{tpu_custom_call.1} parent=71 // pred_check_branch
          %5777 = sbr.rel (%p5775) target = $region76
        $region75: #{tpu_custom_call.1} parent=71 // pred_region
          %s5778 = sand.u32 %s187, 1
          %s5779 = scalar_lea.sflag [#allocation5], %s5778
          %s5780 = sand.u32 %s187, 1
          %s5781 = smul.addr %s5780, 256
          %s5782 = scalar_lea.vmem [#allocation11], %s5781
          %5783 = dma.done %s5779, 4096
        $region76: #{tpu_custom_call.1} parent=71 // pred_fallthru
          _
      $region72: #{tpu_custom_call.1} parent=5 // pred_fallthru
        _
    $region6: #{tpu_custom_call.1} parent=1 // loop_footer
      %s25 = sadd.s32 1, %s21
    $region7: #{tpu_custom_call.1} parent=1 // loop_footer_branch
      %20 = sbr.rel target = $region3
    $region8: #{tpu_custom_call.1} parent=1 // loop_exit
      _
    %5784 = vsyncpa [#allocation4], 1
    %s5785 = scalar_lea.sflag [#allocation4], 1
    %5786 = vsyncpa %s5785, 1
    %5787 = vsyncpa [#allocation7], 1
    %5788 = vsyncpa [#allocation10], 1
    %5789 = vsyncpa [#allocation5], 1
    %s5790 = scalar_lea.sflag [#allocation5], 1
    %5791 = vsyncpa %s5790, 1

</llo_original>
